<compile_context>
chip_gen: v5e
topology: v5e:2x2
jax: 0.10.0
libtpu: 0.0.40
codegen_flags: <defaults>
</compile_context>

<pallas_src>
import functools

import jax
import jax.numpy as jnp
from jax.experimental import pallas as pl
from jax.experimental.pallas import tpu as pltpu


def _bn_relu_kernel(x_ref, gb_ref, o_ref, *, eps):
    # x_ref: (Cb, L)   gb_ref: (Cb, 2) [gamma, beta]   o_ref: (Cb, L)
    x = x_ref[...].astype(jnp.float32)
    l = x.shape[-1]
    inv_l = 1.0 / l

    # One-pass statistics: sum(x) and sum(x*x) over the same resident block.
    sum_x = jnp.sum(x, axis=-1, keepdims=True)
    sum_xx = jnp.sum(x * x, axis=-1, keepdims=True)
    mean = sum_x * inv_l
    var = jnp.maximum(sum_xx * inv_l - mean * mean, 0.0)
    inv_std = jax.lax.rsqrt(var + eps)

    gamma = gb_ref[:, 0:1]
    beta = gb_ref[:, 1:2]

    # Fold the affine into per-channel scale/shift so the elementwise pass
    # is a single mul + add (+ max) per element.
    a = inv_std * gamma
    b = beta - mean * a
    o_ref[...] = jnp.maximum(x * a + b, 0.0).astype(o_ref.dtype)


def _device_kind():
    try:
        return jax.devices()[0].device_kind.lower()
    except Exception:
        return ""


def _pick_num_steps(c, kind):
    """Generation-aware grid step count (block_c = C // steps must be %8)."""
    if "v7" in kind:
        # 2 TensorCores: even step count so both get work, a few per core.
        prefs = (6, 4, 2, 1)
    elif "v5" in kind:
        # Serial grid on one TC; ~3 steps pipelines the HBM round trip.
        prefs = (3, 2, 1)
    else:
        # v6e and unknown: 2 steps overlaps input DMA with writeback.
        prefs = (2, 3, 1)
    for s in prefs:
        if c % s == 0 and ((c // s) % 8 == 0 or s == 1):
            return s
    return 1


def batchnorm_relu(x_nchw, gamma, beta, *, eps=1e-5, num_steps=None,
                   dimension_semantics=None):
    """x_nchw: (N, C, H, W) float32; gamma/beta: (C,) float32."""
    n, c, h, w = x_nchw.shape
    l = n * h * w

    if n == 1:
        # NCHW with N=1 is already contiguous as (C, H*W): zero-copy reshape.
        x_cl = x_nchw.reshape(c, l)
    else:
        # TODO(synk): N>1 path materializes a transpose copy in HBM.
        x_cl = jnp.transpose(x_nchw, (1, 0, 2, 3)).reshape(c, l)

    # Pack gamma/beta into a single (C, 2) operand -> one small DMA per step.
    gb = jnp.stack(
        [gamma.astype(jnp.float32), beta.astype(jnp.float32)], axis=-1)

    kind = _device_kind()
    if num_steps is None:
        num_steps = _pick_num_steps(c, kind)
    assert c % num_steps == 0, "bad channel blocking"
    block_c = c // num_steps
    assert block_c % 8 == 0 or num_steps == 1, "bad channel blocking"

    if dimension_semantics is None:
        if num_steps > 1 and "v7" in kind and hasattr(pltpu, "CORE_PARALLEL"):
            # Guarantee the channel axis is sharded across both TensorCores.
            dimension_semantics = (pltpu.CORE_PARALLEL,)
        else:
            dimension_semantics = ("parallel",)

    # Tiny, HBM-bound op: give XLA an accurate cost so it schedules/overlaps
    # the custom call instead of treating it as opaque.
    cost = pl.CostEstimate(
        flops=6 * c * l,            # two reduction sweeps + mul/add/max
        transcendentals=c,          # one rsqrt per channel
        bytes_accessed=2 * c * l * 4 + c * 2 * 4,
    )

    kernel = functools.partial(_bn_relu_kernel, eps=eps)

    out_cl = pl.pallas_call(
        kernel,
        out_shape=jax.ShapeDtypeStruct((c, l), x_cl.dtype),
        grid=(num_steps,),
        in_specs=[
            pl.BlockSpec((block_c, l), lambda i: (i, 0)),
            pl.BlockSpec((block_c, 2), lambda i: (i, 0)),
        ],
        out_specs=pl.BlockSpec((block_c, l), lambda i: (i, 0)),
        compiler_params=pltpu.CompilerParams(
            dimension_semantics=dimension_semantics,
        ),
        cost_estimate=cost,
    )(x_cl, gb)

    if n == 1:
        return out_cl.reshape(n, c, h, w)
    return jnp.transpose(out_cl.reshape(c, n, h, w), (1, 0, 2, 3))


def _reference(x_nchw, gamma, beta, eps=1e-5):
    mean = jnp.mean(x_nchw, axis=(0, 2, 3), keepdims=True)
    var = jnp.mean((x_nchw - mean) ** 2, axis=(0, 2, 3), keepdims=True)
    y = (x_nchw - mean) / jnp.sqrt(var + eps)
    y = y * gamma.reshape(1, -1, 1, 1) + beta.reshape(1, -1, 1, 1)
    return jnp.maximum(y, 0.0)


if __name__ == "__main__":
    key = jax.random.PRNGKey(0)
    kx, kg, kb = jax.random.split(key, 3)

    # Shapes implied by the module: x232 = randn([1, 1008, 14, 14]),
    # BatchNorm2d(1008, eps=1e-5, affine=True).
    N, C, H, W = 1, 1008, 14, 14
    x = jax.random.normal(kx, (N, C, H, W), dtype=jnp.float32)

    # PyTorch default is gamma=1, beta=0; perturb slightly so the affine
    # path is actually exercised.
    gamma = 1.0 + 0.1 * jax.random.normal(kg, (C,), dtype=jnp.float32)
    beta = 0.1 * jax.random.normal(kb, (C,), dtype=jnp.float32)

    out = batchnorm_relu(x, gamma, beta)
    out = jax.block_until_ready(out)

    ref = _reference(x, gamma, beta)
    assert out.shape == (N, C, H, W)
    assert jnp.allclose(out, ref, atol=1e-4, rtol=1e-4), "mismatch vs reference"

    print("KERNEL_OK")
</pallas_src>

<mosaic_0001>
module attributes {stable_mosaic.version = 11 : i64} {
  func.func @_bn_relu_kernel(%arg0: i32, %arg1: memref<504x196xf32, #tpu.memory_space<vmem>>, %arg2: memref<504x2xf32, #tpu.memory_space<vmem>>, %arg3: memref<504x196xf32, #tpu.memory_space<vmem>>) attributes {dimension_semantics = [#tpu.dimension_semantics<parallel>], iteration_bounds = array<i64: 2>, scalar_prefetch = 0 : i64, scratch_operands = 0 : i64, tpu.core_type = #tpu.core_type<tc>, window_params = [{transform_indices = @transform_0, window_bounds = array<i64: 504, 196>}, {transform_indices = @transform_1, window_bounds = array<i64: 504, 2>}, {transform_indices = @transform_2, window_bounds = array<i64: 504, 196>}]} {
    %c0 = arith.constant 0 : index
    %c0_0 = arith.constant 0 : index
    %0 = vector.load %arg1[%c0, %c0_0] : memref<504x196xf32, #tpu.memory_space<vmem>>, vector<504x196xf32>
    %cst = arith.constant dense<0.000000e+00> : vector<504xf32>
    %1 = vector.multi_reduction <add>, %0, %cst [1] : vector<504x196xf32> to vector<504xf32>
    %2 = vector.shape_cast %1 : vector<504xf32> to vector<504x1xf32>
    %3 = arith.mulf %0, %0 : vector<504x196xf32>
    %cst_1 = arith.constant dense<0.000000e+00> : vector<504xf32>
    %4 = vector.multi_reduction <add>, %3, %cst_1 [1] : vector<504x196xf32> to vector<504xf32>
    %5 = vector.shape_cast %4 : vector<504xf32> to vector<504x1xf32>
    %cst_2 = arith.constant 0.00510204071 : f32
    %6 = vector.broadcast %cst_2 : f32 to vector<504x1xf32>
    %7 = arith.mulf %2, %6 : vector<504x1xf32>
    %cst_3 = arith.constant 0.00510204071 : f32
    %8 = vector.broadcast %cst_3 : f32 to vector<504x1xf32>
    %9 = arith.mulf %5, %8 : vector<504x1xf32>
    %10 = arith.mulf %7, %7 : vector<504x1xf32>
    %11 = arith.subf %9, %10 : vector<504x1xf32>
    %cst_4 = arith.constant 0.000000e+00 : f32
    %12 = vector.broadcast %cst_4 : f32 to vector<504x1xf32>
    %13 = arith.maximumf %11, %12 : vector<504x1xf32>
    %cst_5 = arith.constant 9.99999974E-6 : f32
    %14 = vector.broadcast %cst_5 : f32 to vector<504x1xf32>
    %15 = arith.addf %13, %14 : vector<504x1xf32>
    %16 = math.rsqrt %15 : vector<504x1xf32>
    %c0_6 = arith.constant 0 : index
    %c0_7 = arith.constant 0 : index
    %17 = vector.load %arg2[%c0_6, %c0_7] : memref<504x2xf32, #tpu.memory_space<vmem>>, vector<504x1xf32>
    %c0_8 = arith.constant 0 : index
    %c1 = arith.constant 1 : index
    %18 = vector.load %arg2[%c0_8, %c1] : memref<504x2xf32, #tpu.memory_space<vmem>>, vector<504x1xf32>
    %19 = arith.mulf %16, %17 : vector<504x1xf32>
    %20 = arith.mulf %7, %19 : vector<504x1xf32>
    %21 = arith.subf %18, %20 : vector<504x1xf32>
    %22 = vector.broadcast %19 : vector<504x1xf32> to vector<504x196xf32>
    %23 = arith.mulf %0, %22 : vector<504x196xf32>
    %24 = vector.broadcast %21 : vector<504x1xf32> to vector<504x196xf32>
    %25 = arith.addf %23, %24 : vector<504x196xf32>
    %cst_9 = arith.constant 0.000000e+00 : f32
    %26 = vector.broadcast %cst_9 : f32 to vector<504x196xf32>
    %27 = arith.maximumf %25, %26 : vector<504x196xf32>
    %c0_10 = arith.constant 0 : index
    %c0_11 = arith.constant 0 : index
    %28 = vector.load %arg3[%c0_10, %c0_11] : memref<504x196xf32, #tpu.memory_space<vmem>>, vector<504x196xf32>
    tpu.vector_store %arg3[%c0_10, %c0_11], %27 {strides = array<i32>} : memref<504x196xf32, #tpu.memory_space<vmem>>, vector<504x196xf32>,
    return
  }
  func.func @transform_0(%arg0: i32) -> (i32, i32) {
    %c0_i32 = arith.constant 0 : i32
    %c0_i32_0 = arith.constant 0 : i32
    return %arg0, %c0_i32 : i32, i32
  }
  func.func @transform_1(%arg0: i32) -> (i32, i32) {
    %c0_i32 = arith.constant 0 : i32
    %c0_i32_0 = arith.constant 0 : i32
    return %arg0, %c0_i32 : i32, i32
  }
  func.func @transform_2(%arg0: i32) -> (i32, i32) {
    %c0_i32 = arith.constant 0 : i32
    %c0_i32_0 = arith.constant 0 : i32
    return %arg0, %c0_i32 : i32, i32
  }
}

</mosaic_0001>

<llo_original>
// kernel: tpu_custom_call.1
$region0: #{tpu_custom_call.1}
  #allocation0 [shape = 'u32[]', space=smem, size = 0x4, offset = 0x4, fixed_abs, tag = 'smem constant byte address 0x4 - core index']
  #allocation1 [shape = 'u32[72,128]{1,0:T(1,128)}', space=vmem, size = 0x9000, scoped, tag = 'internal scratch']
  %s0 = inlined_call_operand.vmem [shape: f32[1008,196], index: 0, kind: input, shape index: {}]
  %s1 = inlined_call_operand.vmem [shape: f32[1008,2], index: 1, kind: input, shape index: {}]
  %s2 = inlined_call_operand.vmem [shape: f32[1008,196], index: 2, kind: output, shape index: {}]
  %s3 = sld [smem:[#allocation0]]
  $region41: #{tpu_custom_call.1} parent=0
    _
  %s5 = ssub.s32 1, %s3
  %s6 = scalar_select 0, %s5, %s3
  loop: start=0, step=1, limit=4
  $region2: #{tpu_custom_call.1} parent=0 // loop_pre_header
    _
  $region3: #{tpu_custom_call.1} parent=0 // loop_header
    %s8 = sphi 0, %s12
    %p9 = scmp.ge.s32.totalorder %s8, 4
    %s18 = sphi 0, %s20
    %s21 = sphi 0, %s18
    %s22 = sphi 0, %s21
    %s38 = sphi 0, %s22
    %s44 = sphi 0, %s46
    %s47 = sphi 0, %s44
    %s48 = sphi 0, %s47
    %s64 = sphi 0, %s48
    %s70 = sphi 0, %s72
    %s73 = sphi 0, %s70
    %s74 = sphi 0, %s73
    %s90 = sphi 0, %s74
  $region4: #{tpu_custom_call.1} parent=0 // loop_header_branch
    %11 = sbr.rel (%p9) target = $region8
  $region5: #{tpu_custom_call.1} parent=0 // loop_body
    %s13 = ssub.s32 %s8, 1
    %s14 = ssub.s32 %s8, 2
    %s15 = sadd.s32 %s8, 1
    %s16 = ssub.s32 %s8, %s15
    %p17 = scmp.eq.s32.totalorder %s16, 0
    %s19 = sadd.s32 %s18, 1
    %s20 = scalar_select %p17, %s18, %s19
    %p23 = pneg %p17
    %p24 = scmp.eq.s32.totalorder %s8, 1
    %p25 = por %p23, %p24
    %p26 = scmp.ne.s32.totalorder %s18, %s21
    %p27 = scmp.eq.s32.totalorder %s8, 0
    %p28 = por %p26, %p27
    %p29 = scmp.ne.s32.totalorder %s18, %s21
    %p30 = scmp.eq.s32.totalorder %s13, 1
    %p31 = por %p29, %p30
    %p32 = scmp.ne.s32.totalorder %s21, %s22
    %p33 = scmp.eq.s32.totalorder %s13, 0
    %p34 = por %p32, %p33
    %p35 = scmp.ne.s32.totalorder %s21, %s22
    %p36 = scmp.eq.s32.totalorder %s14, 1
    %p37 = por %p35, %p36
    %p39 = scmp.ne.s32.totalorder %s22, %s38
    %p40 = scmp.eq.s32.totalorder %s14, 0
    %p41 = por %p39, %p40
    %s42 = ssub.s32 %s8, %s15
    %p43 = scmp.eq.s32.totalorder %s42, 0
    %s45 = sadd.s32 %s44, 1
    %s46 = scalar_select %p43, %s44, %s45
    %p49 = pneg %p43
    %p50 = scmp.eq.s32.totalorder %s8, 1
    %p51 = por %p49, %p50
    %p52 = scmp.ne.s32.totalorder %s44, %s47
    %p53 = scmp.eq.s32.totalorder %s8, 0
    %p54 = por %p52, %p53
    %p55 = scmp.ne.s32.totalorder %s44, %s47
    %p56 = scmp.eq.s32.totalorder %s13, 1
    %p57 = por %p55, %p56
    %p58 = scmp.ne.s32.totalorder %s47, %s48
    %p59 = scmp.eq.s32.totalorder %s13, 0
    %p60 = por %p58, %p59
    %p61 = scmp.ne.s32.totalorder %s47, %s48
    %p62 = scmp.eq.s32.totalorder %s14, 1
    %p63 = por %p61, %p62
    %p65 = scmp.ne.s32.totalorder %s48, %s64
    %p66 = scmp.eq.s32.totalorder %s14, 0
    %p67 = por %p65, %p66
    %s68 = ssub.s32 %s8, %s15
    %p69 = scmp.eq.s32.totalorder %s68, 0
    %s71 = sadd.s32 %s70, 1
    %s72 = scalar_select %p69, %s70, %s71
    %p75 = pneg %p69
    %p76 = scmp.eq.s32.totalorder %s8, 1
    %p77 = por %p75, %p76
    %p78 = scmp.ne.s32.totalorder %s70, %s73
    %p79 = scmp.eq.s32.totalorder %s8, 0
    %p80 = por %p78, %p79
    %p81 = scmp.ne.s32.totalorder %s70, %s73
    %p82 = scmp.eq.s32.totalorder %s13, 1
    %p83 = por %p81, %p82
    %p84 = scmp.ne.s32.totalorder %s73, %s74
    %p85 = scmp.eq.s32.totalorder %s13, 0
    %p86 = por %p84, %p85
    %p87 = scmp.ne.s32.totalorder %s73, %s74
    %p88 = scmp.eq.s32.totalorder %s14, 1
    %p89 = por %p87, %p88
    %p91 = scmp.ne.s32.totalorder %s74, %s90
    %p92 = scmp.eq.s32.totalorder %s14, 0
    %p93 = por %p91, %p92
    %p94 = scmp.le.s32.totalorder 1, %s8
    %p95 = scmp.lt.s32.totalorder %s8, 3
    %p96 = pnand %p94, %p95
    %p97 = pneg %p96
    // Predicated region
    $region9: #{tpu_custom_call.1} parent=5 // pred_check
      _
    $region10: #{tpu_custom_call.1} parent=5 // pred_check_branch
      %99 = sbr.rel (%p96) target = $region12
    $region11: #{tpu_custom_call.1} parent=5 // pred_region
      %s100 = ssub.s32 %s8, 1
    $region12: #{tpu_custom_call.1} parent=5 // pred_fallthru
      _
    %p101 = scmp.lt.s32.totalorder %s8, 2
    // Predicated region
    $region13: #{tpu_custom_call.1} parent=5 // pred_check
      %p102 = pneg %p101
    $region14: #{tpu_custom_call.1} parent=5 // pred_check_branch
      %104 = sbr.rel (%p102) target = $region16
    $region15: #{tpu_custom_call.1} parent=5 // pred_region
      // Predicated region
      $region17: #{tpu_custom_call.1} parent=15 // pred_check
        %p105 = pneg %p28
      $region18: #{tpu_custom_call.1} parent=15 // pred_check_branch
        %107 = sbr.rel (%p105) target = $region20
      $region19: #{tpu_custom_call.1} parent=15 // pred_region
        %s108 = smul.u32 63, %s8
        %p109 = scmp.lt.s32.totalorder %s108, 125
        %s110 = scalar_select %p109, %s108, 125
        %s111 = smul.addr %s110, 2
        %s112 = smul.addr %s111, 8
        %s113 = scalar_lea.vmem %s0, %s112
        %s114 = smul.u32 63, %s8
      $region20: #{tpu_custom_call.1} parent=15 // pred_fallthru
        _
      // Predicated region
      $region21: #{tpu_custom_call.1} parent=15 // pred_check
        %p115 = pneg %p54
      $region22: #{tpu_custom_call.1} parent=15 // pred_check_branch
        %117 = sbr.rel (%p115) target = $region24
      $region23: #{tpu_custom_call.1} parent=15 // pred_region
        %s118 = smul.u32 63, %s8
        %p119 = scmp.lt.s32.totalorder %s118, 125
        %s120 = scalar_select %p119, %s118, 125
        %s121 = smul.addr %s120, 8
        %s122 = scalar_lea.vmem %s1, %s121
        %s123 = smul.u32 63, %s8
      $region24: #{tpu_custom_call.1} parent=15 // pred_fallthru
        _
    $region16: #{tpu_custom_call.1} parent=5 // pred_fallthru
      _
    %p124 = scmp.le.s32.totalorder 1, %s8
    %p125 = scmp.lt.s32.totalorder %s8, 3
    %p126 = pnand %p124, %p125
    %p127 = pneg %p126
    // Predicated region
    $region25: #{tpu_custom_call.1} parent=5 // pred_check
      _
    $region26: #{tpu_custom_call.1} parent=5 // pred_check_branch
      %129 = sbr.rel (%p126) target = $region28
    $region27: #{tpu_custom_call.1} parent=5 // pred_region
      %s130 = ssub.s32 %s8, 1
      %s131 = smul.u32 63, %s13
      %p132 = scmp.lt.s32.totalorder %s131, 125
      %s133 = scalar_select %p132, %s131, 125
      %s134 = smul.addr %s133, 2
      %s135 = smul.addr %s134, 8
      %s136 = scalar_lea.vmem %s0, %s135
      %p137 = pneg %p34
      %p138 = pneg %p31
      %s139 = smul.u32 63, %s13
      %p140 = scmp.lt.s32.totalorder %s139, 125
      %s141 = scalar_select %p140, %s139, 125
      %s142 = smul.addr %s141, 8
      %s143 = scalar_lea.vmem %s1, %s142
      %p144 = pneg %p60
      %p145 = pneg %p57
      %p146 = pneg %p86
      %p147 = pneg %p83
      %s148 = smul.u32 63, %s13
      %p149 = scmp.lt.s32.totalorder %s148, 125
      %s150 = scalar_select %p149, %s148, 125
      %s151 = smul.addr %s150, 2
      %s152 = smul.addr %s151, 8
      %s153 = scalar_lea.vmem %s2, %s152
      %s154 = smul.u32 63, %s13
      %p155 = scmp.lt.s32.totalorder %s154, 125
      %s156 = scalar_select %p155, %s154, 125
      %s157 = smul.addr %s156, 2
      %s158 = smul.addr %s157, 8
      %s159 = scalar_lea.vmem %s0, %s158
      %s160 = smul.u32 63, %s13
      %s161 = smul.u32 63, %s13
      %p162 = scmp.lt.s32.totalorder %s161, 125
      %s163 = scalar_select %p162, %s161, 125
      %s164 = smul.addr %s163, 8
      %s165 = scalar_lea.vmem %s1, %s164
      %s166 = smul.u32 63, %s13
      %s167 = smul.u32 63, %s13
      %p168 = scmp.lt.s32.totalorder %s167, 125
      %s169 = scalar_select %p168, %s167, 125
      %s170 = smul.addr %s169, 2
      %s171 = smul.addr %s170, 8
      %s172 = scalar_lea.vmem %s2, %s171
      %s173 = smul.u32 63, %s13
      %v174 = vld [vmem:[%s159] sm:$0xff]
      %v175 = vld [vmem:[%s159 + $0x8] sm:$0xff]
      %v176 = vld [vmem:[%s159 + $0x10] sm:$0xff]
      %v177 = vld [vmem:[%s159 + $0x18] sm:$0xff]
      %v178 = vld [vmem:[%s159 + $0x20] sm:$0xff]
      %v179 = vld [vmem:[%s159 + $0x28] sm:$0xff]
      %v180 = vld [vmem:[%s159 + $0x30] sm:$0xff]
      %v181 = vld [vmem:[%s159 + $0x38] sm:$0xff]
      %v182 = vld [vmem:[%s159 + $0x40] sm:$0xff]
      %v183 = vld [vmem:[%s159 + $0x48] sm:$0xff]
      %v184 = vld [vmem:[%s159 + $0x50] sm:$0xff]
      %v185 = vld [vmem:[%s159 + $0x58] sm:$0xff]
      %v186 = vld [vmem:[%s159 + $0x60] sm:$0xff]
      %v187 = vld [vmem:[%s159 + $0x68] sm:$0xff]
      %v188 = vld [vmem:[%s159 + $0x70] sm:$0xff]
      %v189 = vld [vmem:[%s159 + $0x78] sm:$0xff]
      %v190 = vld [vmem:[%s159 + $0x80] sm:$0xff]
      %v191 = vld [vmem:[%s159 + $0x88] sm:$0xff]
      %v192 = vld [vmem:[%s159 + $0x90] sm:$0xff]
      %v193 = vld [vmem:[%s159 + $0x98] sm:$0xff]
      %v194 = vld [vmem:[%s159 + $0xa0] sm:$0xff]
      %v195 = vld [vmem:[%s159 + $0xa8] sm:$0xff]
      %v196 = vld [vmem:[%s159 + $0xb0] sm:$0xff]
      %v197 = vld [vmem:[%s159 + $0xb8] sm:$0xff]
      %v198 = vld [vmem:[%s159 + $0xc0] sm:$0xff]
      %v199 = vld [vmem:[%s159 + $0xc8] sm:$0xff]
      %v200 = vld [vmem:[%s159 + $0xd0] sm:$0xff]
      %v201 = vld [vmem:[%s159 + $0xd8] sm:$0xff]
      %v202 = vld [vmem:[%s159 + $0xe0] sm:$0xff]
      %v203 = vld [vmem:[%s159 + $0xe8] sm:$0xff]
      %v204 = vld [vmem:[%s159 + $0xf0] sm:$0xff]
      %v205 = vld [vmem:[%s159 + $0xf8] sm:$0xff]
      %v206 = vld [vmem:[%s159 + $0x100] sm:$0xff]
      %v207 = vld [vmem:[%s159 + $0x108] sm:$0xff]
      %v208 = vld [vmem:[%s159 + $0x110] sm:$0xff]
      %v209 = vld [vmem:[%s159 + $0x118] sm:$0xff]
      %v210 = vld [vmem:[%s159 + $0x120] sm:$0xff]
      %v211 = vld [vmem:[%s159 + $0x128] sm:$0xff]
      %v212 = vld [vmem:[%s159 + $0x130] sm:$0xff]
      %v213 = vld [vmem:[%s159 + $0x138] sm:$0xff]
      %v214 = vld [vmem:[%s159 + $0x140] sm:$0xff]
      %v215 = vld [vmem:[%s159 + $0x148] sm:$0xff]
      %v216 = vld [vmem:[%s159 + $0x150] sm:$0xff]
      %v217 = vld [vmem:[%s159 + $0x158] sm:$0xff]
      %v218 = vld [vmem:[%s159 + $0x160] sm:$0xff]
      %v219 = vld [vmem:[%s159 + $0x168] sm:$0xff]
      %v220 = vld [vmem:[%s159 + $0x170] sm:$0xff]
      %v221 = vld [vmem:[%s159 + $0x178] sm:$0xff]
      %v222 = vld [vmem:[%s159 + $0x180] sm:$0xff]
      %v223 = vld [vmem:[%s159 + $0x188] sm:$0xff]
      %v224 = vld [vmem:[%s159 + $0x190] sm:$0xff]
      %v225 = vld [vmem:[%s159 + $0x198] sm:$0xff]
      %v226 = vld [vmem:[%s159 + $0x1a0] sm:$0xff]
      %v227 = vld [vmem:[%s159 + $0x1a8] sm:$0xff]
      %v228 = vld [vmem:[%s159 + $0x1b0] sm:$0xff]
      %v229 = vld [vmem:[%s159 + $0x1b8] sm:$0xff]
      %v230 = vld [vmem:[%s159 + $0x1c0] sm:$0xff]
      %v231 = vld [vmem:[%s159 + $0x1c8] sm:$0xff]
      %v232 = vld [vmem:[%s159 + $0x1d0] sm:$0xff]
      %v233 = vld [vmem:[%s159 + $0x1d8] sm:$0xff]
      %v234 = vld [vmem:[%s159 + $0x1e0] sm:$0xff]
      %v235 = vld [vmem:[%s159 + $0x1e8] sm:$0xff]
      %v236 = vld [vmem:[%s159 + $0x1f0] sm:$0xff]
      %v237 = vld [vmem:[%s159 + $0x1f8] sm:$0xff]
      %v238 = vld [vmem:[%s159 + $0x200] sm:$0xff]
      %v239 = vld [vmem:[%s159 + $0x208] sm:$0xff]
      %v240 = vld [vmem:[%s159 + $0x210] sm:$0xff]
      %v241 = vld [vmem:[%s159 + $0x218] sm:$0xff]
      %v242 = vld [vmem:[%s159 + $0x220] sm:$0xff]
      %v243 = vld [vmem:[%s159 + $0x228] sm:$0xff]
      %v244 = vld [vmem:[%s159 + $0x230] sm:$0xff]
      %v245 = vld [vmem:[%s159 + $0x238] sm:$0xff]
      %v246 = vld [vmem:[%s159 + $0x240] sm:$0xff]
      %v247 = vld [vmem:[%s159 + $0x248] sm:$0xff]
      %v248 = vld [vmem:[%s159 + $0x250] sm:$0xff]
      %v249 = vld [vmem:[%s159 + $0x258] sm:$0xff]
      %v250 = vld [vmem:[%s159 + $0x260] sm:$0xff]
      %v251 = vld [vmem:[%s159 + $0x268] sm:$0xff]
      %v252 = vld [vmem:[%s159 + $0x270] sm:$0xff]
      %v253 = vld [vmem:[%s159 + $0x278] sm:$0xff]
      %v254 = vld [vmem:[%s159 + $0x280] sm:$0xff]
      %v255 = vld [vmem:[%s159 + $0x288] sm:$0xff]
      %v256 = vld [vmem:[%s159 + $0x290] sm:$0xff]
      %v257 = vld [vmem:[%s159 + $0x298] sm:$0xff]
      %v258 = vld [vmem:[%s159 + $0x2a0] sm:$0xff]
      %v259 = vld [vmem:[%s159 + $0x2a8] sm:$0xff]
      %v260 = vld [vmem:[%s159 + $0x2b0] sm:$0xff]
      %v261 = vld [vmem:[%s159 + $0x2b8] sm:$0xff]
      %v262 = vld [vmem:[%s159 + $0x2c0] sm:$0xff]
      %v263 = vld [vmem:[%s159 + $0x2c8] sm:$0xff]
      %v264 = vld [vmem:[%s159 + $0x2d0] sm:$0xff]
      %v265 = vld [vmem:[%s159 + $0x2d8] sm:$0xff]
      %v266 = vld [vmem:[%s159 + $0x2e0] sm:$0xff]
      %v267 = vld [vmem:[%s159 + $0x2e8] sm:$0xff]
      %v268 = vld [vmem:[%s159 + $0x2f0] sm:$0xff]
      %v269 = vld [vmem:[%s159 + $0x2f8] sm:$0xff]
      %v270 = vld [vmem:[%s159 + $0x300] sm:$0xff]
      %v271 = vld [vmem:[%s159 + $0x308] sm:$0xff]
      %v272 = vld [vmem:[%s159 + $0x310] sm:$0xff]
      %v273 = vld [vmem:[%s159 + $0x318] sm:$0xff]
      %v274 = vld [vmem:[%s159 + $0x320] sm:$0xff]
      %v275 = vld [vmem:[%s159 + $0x328] sm:$0xff]
      %v276 = vld [vmem:[%s159 + $0x330] sm:$0xff]
      %v277 = vld [vmem:[%s159 + $0x338] sm:$0xff]
      %v278 = vld [vmem:[%s159 + $0x340] sm:$0xff]
      %v279 = vld [vmem:[%s159 + $0x348] sm:$0xff]
      %v280 = vld [vmem:[%s159 + $0x350] sm:$0xff]
      %v281 = vld [vmem:[%s159 + $0x358] sm:$0xff]
      %v282 = vld [vmem:[%s159 + $0x360] sm:$0xff]
      %v283 = vld [vmem:[%s159 + $0x368] sm:$0xff]
      %v284 = vld [vmem:[%s159 + $0x370] sm:$0xff]
      %v285 = vld [vmem:[%s159 + $0x378] sm:$0xff]
      %v286 = vld [vmem:[%s159 + $0x380] sm:$0xff]
      %v287 = vld [vmem:[%s159 + $0x388] sm:$0xff]
      %v288 = vld [vmem:[%s159 + $0x390] sm:$0xff]
      %v289 = vld [vmem:[%s159 + $0x398] sm:$0xff]
      %v290 = vld [vmem:[%s159 + $0x3a0] sm:$0xff]
      %v291 = vld [vmem:[%s159 + $0x3a8] sm:$0xff]
      %v292 = vld [vmem:[%s159 + $0x3b0] sm:$0xff]
      %v293 = vld [vmem:[%s159 + $0x3b8] sm:$0xff]
      %v294 = vld [vmem:[%s159 + $0x3c0] sm:$0xff]
      %v295 = vld [vmem:[%s159 + $0x3c8] sm:$0xff]
      %v296 = vld [vmem:[%s159 + $0x3d0] sm:$0xff]
      %v297 = vld [vmem:[%s159 + $0x3d8] sm:$0xff]
      %v298 = vld [vmem:[%s159 + $0x3e0] sm:$0xff]
      %v299 = vld [vmem:[%s159 + $0x3e8] sm:$0xff]
      %vm300 = vcmask 556032
      %v301 = vsel %vm300, %v175, 0.0
      %v302 = vadd.f32 %v174, %v301
      %303 = vadd.xlane.f32.xlu0 %v302
      %v304 = vpop.xlane.xlu0 %303
      %v305 = vsel %vm300, %v177, 0.0
      %v306 = vadd.f32 %v176, %v305
      %307 = vadd.xlane.f32.xlu0 %v306
      %v308 = vpop.xlane.xlu0 %307
      %v309 = vsel %vm300, %v179, 0.0
      %v310 = vadd.f32 %v178, %v309
      %311 = vadd.xlane.f32.xlu0 %v310
      %v312 = vpop.xlane.xlu0 %311
      %v313 = vsel %vm300, %v181, 0.0
      %v314 = vadd.f32 %v180, %v313
      %315 = vadd.xlane.f32.xlu0 %v314
      %v316 = vpop.xlane.xlu0 %315
      %v317 = vsel %vm300, %v183, 0.0
      %v318 = vadd.f32 %v182, %v317
      %319 = vadd.xlane.f32.xlu0 %v318
      %v320 = vpop.xlane.xlu0 %319
      %v321 = vsel %vm300, %v185, 0.0
      %v322 = vadd.f32 %v184, %v321
      %323 = vadd.xlane.f32.xlu0 %v322
      %v324 = vpop.xlane.xlu0 %323
      %v325 = vsel %vm300, %v187, 0.0
      %v326 = vadd.f32 %v186, %v325
      %327 = vadd.xlane.f32.xlu0 %v326
      %v328 = vpop.xlane.xlu0 %327
      %v329 = vsel %vm300, %v189, 0.0
      %v330 = vadd.f32 %v188, %v329
      %331 = vadd.xlane.f32.xlu0 %v330
      %v332 = vpop.xlane.xlu0 %331
      %v333 = vsel %vm300, %v191, 0.0
      %v334 = vadd.f32 %v190, %v333
      %335 = vadd.xlane.f32.xlu0 %v334
      %v336 = vpop.xlane.xlu0 %335
      %v337 = vsel %vm300, %v193, 0.0
      %v338 = vadd.f32 %v192, %v337
      %339 = vadd.xlane.f32.xlu0 %v338
      %v340 = vpop.xlane.xlu0 %339
      %v341 = vsel %vm300, %v195, 0.0
      %v342 = vadd.f32 %v194, %v341
      %343 = vadd.xlane.f32.xlu0 %v342
      %v344 = vpop.xlane.xlu0 %343
      %v345 = vsel %vm300, %v197, 0.0
      %v346 = vadd.f32 %v196, %v345
      %347 = vadd.xlane.f32.xlu0 %v346
      %v348 = vpop.xlane.xlu0 %347
      %v349 = vsel %vm300, %v199, 0.0
      %v350 = vadd.f32 %v198, %v349
      %351 = vadd.xlane.f32.xlu0 %v350
      %v352 = vpop.xlane.xlu0 %351
      %v353 = vsel %vm300, %v201, 0.0
      %v354 = vadd.f32 %v200, %v353
      %355 = vadd.xlane.f32.xlu0 %v354
      %v356 = vpop.xlane.xlu0 %355
      %v357 = vsel %vm300, %v203, 0.0
      %v358 = vadd.f32 %v202, %v357
      %359 = vadd.xlane.f32.xlu0 %v358
      %v360 = vpop.xlane.xlu0 %359
      %v361 = vsel %vm300, %v205, 0.0
      %v362 = vadd.f32 %v204, %v361
      %363 = vadd.xlane.f32.xlu0 %v362
      %v364 = vpop.xlane.xlu0 %363
      %v365 = vsel %vm300, %v207, 0.0
      %v366 = vadd.f32 %v206, %v365
      %367 = vadd.xlane.f32.xlu0 %v366
      %v368 = vpop.xlane.xlu0 %367
      %v369 = vsel %vm300, %v209, 0.0
      %v370 = vadd.f32 %v208, %v369
      %371 = vadd.xlane.f32.xlu0 %v370
      %v372 = vpop.xlane.xlu0 %371
      %v373 = vsel %vm300, %v211, 0.0
      %v374 = vadd.f32 %v210, %v373
      %375 = vadd.xlane.f32.xlu0 %v374
      %v376 = vpop.xlane.xlu0 %375
      %v377 = vsel %vm300, %v213, 0.0
      %v378 = vadd.f32 %v212, %v377
      %379 = vadd.xlane.f32.xlu0 %v378
      %v380 = vpop.xlane.xlu0 %379
      %v381 = vsel %vm300, %v215, 0.0
      %v382 = vadd.f32 %v214, %v381
      %383 = vadd.xlane.f32.xlu0 %v382
      %v384 = vpop.xlane.xlu0 %383
      %v385 = vsel %vm300, %v217, 0.0
      %v386 = vadd.f32 %v216, %v385
      %387 = vadd.xlane.f32.xlu0 %v386
      %v388 = vpop.xlane.xlu0 %387
      %v389 = vsel %vm300, %v219, 0.0
      %v390 = vadd.f32 %v218, %v389
      %391 = vadd.xlane.f32.xlu0 %v390
      %v392 = vpop.xlane.xlu0 %391
      %v393 = vsel %vm300, %v221, 0.0
      %v394 = vadd.f32 %v220, %v393
      %395 = vadd.xlane.f32.xlu0 %v394
      %v396 = vpop.xlane.xlu0 %395
      %v397 = vsel %vm300, %v223, 0.0
      %v398 = vadd.f32 %v222, %v397
      %399 = vadd.xlane.f32.xlu0 %v398
      %v400 = vpop.xlane.xlu0 %399
      %v401 = vsel %vm300, %v225, 0.0
      %v402 = vadd.f32 %v224, %v401
      %403 = vadd.xlane.f32.xlu0 %v402
      %v404 = vpop.xlane.xlu0 %403
      %v405 = vsel %vm300, %v227, 0.0
      %v406 = vadd.f32 %v226, %v405
      %407 = vadd.xlane.f32.xlu0 %v406
      %v408 = vpop.xlane.xlu0 %407
      %v409 = vsel %vm300, %v229, 0.0
      %v410 = vadd.f32 %v228, %v409
      %411 = vadd.xlane.f32.xlu0 %v410
      %v412 = vpop.xlane.xlu0 %411
      %v413 = vsel %vm300, %v231, 0.0
      %v414 = vadd.f32 %v230, %v413
      %415 = vadd.xlane.f32.xlu0 %v414
      %v416 = vpop.xlane.xlu0 %415
      %v417 = vsel %vm300, %v233, 0.0
      %v418 = vadd.f32 %v232, %v417
      %419 = vadd.xlane.f32.xlu0 %v418
      %v420 = vpop.xlane.xlu0 %419
      %v421 = vsel %vm300, %v235, 0.0
      %v422 = vadd.f32 %v234, %v421
      %423 = vadd.xlane.f32.xlu0 %v422
      %v424 = vpop.xlane.xlu0 %423
      %v425 = vsel %vm300, %v237, 0.0
      %v426 = vadd.f32 %v236, %v425
      %427 = vadd.xlane.f32.xlu0 %v426
      %v428 = vpop.xlane.xlu0 %427
      %v429 = vsel %vm300, %v239, 0.0
      %v430 = vadd.f32 %v238, %v429
      %431 = vadd.xlane.f32.xlu0 %v430
      %v432 = vpop.xlane.xlu0 %431
      %v433 = vsel %vm300, %v241, 0.0
      %v434 = vadd.f32 %v240, %v433
      %435 = vadd.xlane.f32.xlu0 %v434
      %v436 = vpop.xlane.xlu0 %435
      %v437 = vsel %vm300, %v243, 0.0
      %v438 = vadd.f32 %v242, %v437
      %439 = vadd.xlane.f32.xlu0 %v438
      %v440 = vpop.xlane.xlu0 %439
      %v441 = vsel %vm300, %v245, 0.0
      %v442 = vadd.f32 %v244, %v441
      %443 = vadd.xlane.f32.xlu0 %v442
      %v444 = vpop.xlane.xlu0 %443
      %v445 = vsel %vm300, %v247, 0.0
      %v446 = vadd.f32 %v246, %v445
      %447 = vadd.xlane.f32.xlu0 %v446
      %v448 = vpop.xlane.xlu0 %447
      %v449 = vsel %vm300, %v249, 0.0
      %v450 = vadd.f32 %v248, %v449
      %451 = vadd.xlane.f32.xlu0 %v450
      %v452 = vpop.xlane.xlu0 %451
      %v453 = vsel %vm300, %v251, 0.0
      %v454 = vadd.f32 %v250, %v453
      %455 = vadd.xlane.f32.xlu0 %v454
      %v456 = vpop.xlane.xlu0 %455
      %v457 = vsel %vm300, %v253, 0.0
      %v458 = vadd.f32 %v252, %v457
      %459 = vadd.xlane.f32.xlu0 %v458
      %v460 = vpop.xlane.xlu0 %459
      %v461 = vsel %vm300, %v255, 0.0
      %v462 = vadd.f32 %v254, %v461
      %463 = vadd.xlane.f32.xlu0 %v462
      %v464 = vpop.xlane.xlu0 %463
      %v465 = vsel %vm300, %v257, 0.0
      %v466 = vadd.f32 %v256, %v465
      %467 = vadd.xlane.f32.xlu0 %v466
      %v468 = vpop.xlane.xlu0 %467
      %v469 = vsel %vm300, %v259, 0.0
      %v470 = vadd.f32 %v258, %v469
      %471 = vadd.xlane.f32.xlu0 %v470
      %v472 = vpop.xlane.xlu0 %471
      %v473 = vsel %vm300, %v261, 0.0
      %v474 = vadd.f32 %v260, %v473
      %475 = vadd.xlane.f32.xlu0 %v474
      %v476 = vpop.xlane.xlu0 %475
      %v477 = vsel %vm300, %v263, 0.0
      %v478 = vadd.f32 %v262, %v477
      %479 = vadd.xlane.f32.xlu0 %v478
      %v480 = vpop.xlane.xlu0 %479
      %v481 = vsel %vm300, %v265, 0.0
      %v482 = vadd.f32 %v264, %v481
      %483 = vadd.xlane.f32.xlu0 %v482
      %v484 = vpop.xlane.xlu0 %483
      %v485 = vsel %vm300, %v267, 0.0
      %v486 = vadd.f32 %v266, %v485
      %487 = vadd.xlane.f32.xlu0 %v486
      %v488 = vpop.xlane.xlu0 %487
      %v489 = vsel %vm300, %v269, 0.0
      %v490 = vadd.f32 %v268, %v489
      %491 = vadd.xlane.f32.xlu0 %v490
      %v492 = vpop.xlane.xlu0 %491
      %v493 = vsel %vm300, %v271, 0.0
      %v494 = vadd.f32 %v270, %v493
      %495 = vadd.xlane.f32.xlu0 %v494
      %v496 = vpop.xlane.xlu0 %495
      %v497 = vsel %vm300, %v273, 0.0
      %v498 = vadd.f32 %v272, %v497
      %499 = vadd.xlane.f32.xlu0 %v498
      %v500 = vpop.xlane.xlu0 %499
      %v501 = vsel %vm300, %v275, 0.0
      %v502 = vadd.f32 %v274, %v501
      %503 = vadd.xlane.f32.xlu0 %v502
      %v504 = vpop.xlane.xlu0 %503
      %v505 = vsel %vm300, %v277, 0.0
      %v506 = vadd.f32 %v276, %v505
      %507 = vadd.xlane.f32.xlu0 %v506
      %v508 = vpop.xlane.xlu0 %507
      %v509 = vsel %vm300, %v279, 0.0
      %v510 = vadd.f32 %v278, %v509
      %511 = vadd.xlane.f32.xlu0 %v510
      %v512 = vpop.xlane.xlu0 %511
      %v513 = vsel %vm300, %v281, 0.0
      %v514 = vadd.f32 %v280, %v513
      %515 = vadd.xlane.f32.xlu0 %v514
      %v516 = vpop.xlane.xlu0 %515
      %v517 = vsel %vm300, %v283, 0.0
      %v518 = vadd.f32 %v282, %v517
      %519 = vadd.xlane.f32.xlu0 %v518
      %v520 = vpop.xlane.xlu0 %519
      %v521 = vsel %vm300, %v285, 0.0
      %v522 = vadd.f32 %v284, %v521
      %523 = vadd.xlane.f32.xlu0 %v522
      %v524 = vpop.xlane.xlu0 %523
      %v525 = vsel %vm300, %v287, 0.0
      %v526 = vadd.f32 %v286, %v525
      %527 = vadd.xlane.f32.xlu0 %v526
      %v528 = vpop.xlane.xlu0 %527
      %v529 = vsel %vm300, %v289, 0.0
      %v530 = vadd.f32 %v288, %v529
      %531 = vadd.xlane.f32.xlu0 %v530
      %v532 = vpop.xlane.xlu0 %531
      %v533 = vsel %vm300, %v291, 0.0
      %v534 = vadd.f32 %v290, %v533
      %535 = vadd.xlane.f32.xlu0 %v534
      %v536 = vpop.xlane.xlu0 %535
      %v537 = vsel %vm300, %v293, 0.0
      %v538 = vadd.f32 %v292, %v537
      %539 = vadd.xlane.f32.xlu0 %v538
      %v540 = vpop.xlane.xlu0 %539
      %v541 = vsel %vm300, %v295, 0.0
      %v542 = vadd.f32 %v294, %v541
      %543 = vadd.xlane.f32.xlu0 %v542
      %v544 = vpop.xlane.xlu0 %543
      %v545 = vsel %vm300, %v297, 0.0
      %v546 = vadd.f32 %v296, %v545
      %547 = vadd.xlane.f32.xlu0 %v546
      %v548 = vpop.xlane.xlu0 %547
      %v549 = vsel %vm300, %v299, 0.0
      %v550 = vadd.f32 %v298, %v549
      %551 = vadd.xlane.f32.xlu0 %v550
      %v552 = vpop.xlane.xlu0 %551
      %v553 = vmul.f32 %v174, %v174
      %v554 = vmul.f32 %v175, %v175
      %v555 = vmul.f32 %v176, %v176
      %v556 = vmul.f32 %v177, %v177
      %v557 = vmul.f32 %v178, %v178
      %v558 = vmul.f32 %v179, %v179
      %v559 = vmul.f32 %v180, %v180
      %v560 = vmul.f32 %v181, %v181
      %v561 = vmul.f32 %v182, %v182
      %v562 = vmul.f32 %v183, %v183
      %v563 = vmul.f32 %v184, %v184
      %v564 = vmul.f32 %v185, %v185
      %v565 = vmul.f32 %v186, %v186
      %v566 = vmul.f32 %v187, %v187
      %v567 = vmul.f32 %v188, %v188
      %v568 = vmul.f32 %v189, %v189
      %v569 = vmul.f32 %v190, %v190
      %v570 = vmul.f32 %v191, %v191
      %v571 = vmul.f32 %v192, %v192
      %v572 = vmul.f32 %v193, %v193
      %v573 = vmul.f32 %v194, %v194
      %v574 = vmul.f32 %v195, %v195
      %v575 = vmul.f32 %v196, %v196
      %v576 = vmul.f32 %v197, %v197
      %v577 = vmul.f32 %v198, %v198
      %v578 = vmul.f32 %v199, %v199
      %v579 = vmul.f32 %v200, %v200
      %v580 = vmul.f32 %v201, %v201
      %v581 = vmul.f32 %v202, %v202
      %v582 = vmul.f32 %v203, %v203
      %v583 = vmul.f32 %v204, %v204
      %v584 = vmul.f32 %v205, %v205
      %v585 = vmul.f32 %v206, %v206
      %v586 = vmul.f32 %v207, %v207
      %v587 = vmul.f32 %v208, %v208
      %v588 = vmul.f32 %v209, %v209
      %v589 = vmul.f32 %v210, %v210
      %v590 = vmul.f32 %v211, %v211
      %v591 = vmul.f32 %v212, %v212
      %v592 = vmul.f32 %v213, %v213
      %v593 = vmul.f32 %v214, %v214
      %v594 = vmul.f32 %v215, %v215
      %v595 = vmul.f32 %v216, %v216
      %v596 = vmul.f32 %v217, %v217
      %v597 = vmul.f32 %v218, %v218
      %v598 = vmul.f32 %v219, %v219
      %v599 = vmul.f32 %v220, %v220
      %v600 = vmul.f32 %v221, %v221
      %v601 = vmul.f32 %v222, %v222
      %v602 = vmul.f32 %v223, %v223
      %v603 = vmul.f32 %v224, %v224
      %v604 = vmul.f32 %v225, %v225
      %v605 = vmul.f32 %v226, %v226
      %v606 = vmul.f32 %v227, %v227
      %v607 = vmul.f32 %v228, %v228
      %v608 = vmul.f32 %v229, %v229
      %v609 = vmul.f32 %v230, %v230
      %v610 = vmul.f32 %v231, %v231
      %v611 = vmul.f32 %v232, %v232
      %v612 = vmul.f32 %v233, %v233
      %v613 = vmul.f32 %v234, %v234
      %v614 = vmul.f32 %v235, %v235
      %v615 = vmul.f32 %v236, %v236
      %v616 = vmul.f32 %v237, %v237
      %v617 = vmul.f32 %v238, %v238
      %v618 = vmul.f32 %v239, %v239
      %v619 = vmul.f32 %v240, %v240
      %v620 = vmul.f32 %v241, %v241
      %v621 = vmul.f32 %v242, %v242
      %v622 = vmul.f32 %v243, %v243
      %v623 = vmul.f32 %v244, %v244
      %v624 = vmul.f32 %v245, %v245
      %v625 = vmul.f32 %v246, %v246
      %v626 = vmul.f32 %v247, %v247
      %v627 = vmul.f32 %v248, %v248
      %v628 = vmul.f32 %v249, %v249
      %v629 = vmul.f32 %v250, %v250
      %v630 = vmul.f32 %v251, %v251
      %v631 = vmul.f32 %v252, %v252
      %v632 = vmul.f32 %v253, %v253
      %v633 = vmul.f32 %v254, %v254
      %v634 = vmul.f32 %v255, %v255
      %v635 = vmul.f32 %v256, %v256
      %v636 = vmul.f32 %v257, %v257
      %v637 = vmul.f32 %v258, %v258
      %v638 = vmul.f32 %v259, %v259
      %v639 = vmul.f32 %v260, %v260
      %v640 = vmul.f32 %v261, %v261
      %v641 = vmul.f32 %v262, %v262
      %v642 = vmul.f32 %v263, %v263
      %v643 = vmul.f32 %v264, %v264
      %v644 = vmul.f32 %v265, %v265
      %v645 = vmul.f32 %v266, %v266
      %v646 = vmul.f32 %v267, %v267
      %v647 = vmul.f32 %v268, %v268
      %v648 = vmul.f32 %v269, %v269
      %v649 = vmul.f32 %v270, %v270
      %v650 = vmul.f32 %v271, %v271
      %v651 = vmul.f32 %v272, %v272
      %v652 = vmul.f32 %v273, %v273
      %v653 = vmul.f32 %v274, %v274
      %v654 = vmul.f32 %v275, %v275
      %v655 = vmul.f32 %v276, %v276
      %v656 = vmul.f32 %v277, %v277
      %v657 = vmul.f32 %v278, %v278
      %v658 = vmul.f32 %v279, %v279
      %v659 = vmul.f32 %v280, %v280
      %v660 = vmul.f32 %v281, %v281
      %v661 = vmul.f32 %v282, %v282
      %v662 = vmul.f32 %v283, %v283
      %v663 = vmul.f32 %v284, %v284
      %v664 = vmul.f32 %v285, %v285
      %v665 = vmul.f32 %v286, %v286
      %v666 = vmul.f32 %v287, %v287
      %v667 = vmul.f32 %v288, %v288
      %v668 = vmul.f32 %v289, %v289
      %v669 = vmul.f32 %v290, %v290
      %v670 = vmul.f32 %v291, %v291
      %v671 = vmul.f32 %v292, %v292
      %v672 = vmul.f32 %v293, %v293
      %v673 = vmul.f32 %v294, %v294
      %v674 = vmul.f32 %v295, %v295
      %v675 = vmul.f32 %v296, %v296
      %v676 = vmul.f32 %v297, %v297
      %v677 = vmul.f32 %v298, %v298
      %v678 = vmul.f32 %v299, %v299
      %v679 = vsel %vm300, %v554, 0.0
      %v680 = vadd.f32 %v553, %v679
      %681 = vadd.xlane.f32.xlu0 %v680
      %v682 = vpop.xlane.xlu0 %681
      %v683 = vsel %vm300, %v556, 0.0
      %v684 = vadd.f32 %v555, %v683
      %685 = vadd.xlane.f32.xlu0 %v684
      %v686 = vpop.xlane.xlu0 %685
      %v687 = vsel %vm300, %v558, 0.0
      %v688 = vadd.f32 %v557, %v687
      %689 = vadd.xlane.f32.xlu0 %v688
      %v690 = vpop.xlane.xlu0 %689
      %v691 = vsel %vm300, %v560, 0.0
      %v692 = vadd.f32 %v559, %v691
      %693 = vadd.xlane.f32.xlu0 %v692
      %v694 = vpop.xlane.xlu0 %693
      %v695 = vsel %vm300, %v562, 0.0
      %v696 = vadd.f32 %v561, %v695
      %697 = vadd.xlane.f32.xlu0 %v696
      %v698 = vpop.xlane.xlu0 %697
      %v699 = vsel %vm300, %v564, 0.0
      %v700 = vadd.f32 %v563, %v699
      %701 = vadd.xlane.f32.xlu0 %v700
      %v702 = vpop.xlane.xlu0 %701
      %v703 = vsel %vm300, %v566, 0.0
      %v704 = vadd.f32 %v565, %v703
      %705 = vadd.xlane.f32.xlu0 %v704
      %v706 = vpop.xlane.xlu0 %705
      %v707 = vsel %vm300, %v568, 0.0
      %v708 = vadd.f32 %v567, %v707
      %709 = vadd.xlane.f32.xlu0 %v708
      %v710 = vpop.xlane.xlu0 %709
      %v711 = vsel %vm300, %v570, 0.0
      %v712 = vadd.f32 %v569, %v711
      %713 = vadd.xlane.f32.xlu0 %v712
      %v714 = vpop.xlane.xlu0 %713
      %v715 = vsel %vm300, %v572, 0.0
      %v716 = vadd.f32 %v571, %v715
      %717 = vadd.xlane.f32.xlu0 %v716
      %v718 = vpop.xlane.xlu0 %717
      %v719 = vsel %vm300, %v574, 0.0
      %v720 = vadd.f32 %v573, %v719
      %721 = vadd.xlane.f32.xlu0 %v720
      %v722 = vpop.xlane.xlu0 %721
      %v723 = vsel %vm300, %v576, 0.0
      %v724 = vadd.f32 %v575, %v723
      %725 = vadd.xlane.f32.xlu0 %v724
      %v726 = vpop.xlane.xlu0 %725
      %v727 = vsel %vm300, %v578, 0.0
      %v728 = vadd.f32 %v577, %v727
      %729 = vadd.xlane.f32.xlu0 %v728
      %v730 = vpop.xlane.xlu0 %729
      %v731 = vsel %vm300, %v580, 0.0
      %v732 = vadd.f32 %v579, %v731
      %733 = vadd.xlane.f32.xlu0 %v732
      %v734 = vpop.xlane.xlu0 %733
      %v735 = vsel %vm300, %v582, 0.0
      %v736 = vadd.f32 %v581, %v735
      %737 = vadd.xlane.f32.xlu0 %v736
      %v738 = vpop.xlane.xlu0 %737
      %v739 = vsel %vm300, %v584, 0.0
      %v740 = vadd.f32 %v583, %v739
      %741 = vadd.xlane.f32.xlu0 %v740
      %v742 = vpop.xlane.xlu0 %741
      %v743 = vsel %vm300, %v586, 0.0
      %v744 = vadd.f32 %v585, %v743
      %745 = vadd.xlane.f32.xlu0 %v744
      %v746 = vpop.xlane.xlu0 %745
      %v747 = vsel %vm300, %v588, 0.0
      %v748 = vadd.f32 %v587, %v747
      %749 = vadd.xlane.f32.xlu0 %v748
      %v750 = vpop.xlane.xlu0 %749
      %v751 = vsel %vm300, %v590, 0.0
      %v752 = vadd.f32 %v589, %v751
      %753 = vadd.xlane.f32.xlu0 %v752
      %v754 = vpop.xlane.xlu0 %753
      %v755 = vsel %vm300, %v592, 0.0
      %v756 = vadd.f32 %v591, %v755
      %757 = vadd.xlane.f32.xlu0 %v756
      %v758 = vpop.xlane.xlu0 %757
      %v759 = vsel %vm300, %v594, 0.0
      %v760 = vadd.f32 %v593, %v759
      %761 = vadd.xlane.f32.xlu0 %v760
      %v762 = vpop.xlane.xlu0 %761
      %v763 = vsel %vm300, %v596, 0.0
      %v764 = vadd.f32 %v595, %v763
      %765 = vadd.xlane.f32.xlu0 %v764
      %v766 = vpop.xlane.xlu0 %765
      %v767 = vsel %vm300, %v598, 0.0
      %v768 = vadd.f32 %v597, %v767
      %769 = vadd.xlane.f32.xlu0 %v768
      %v770 = vpop.xlane.xlu0 %769
      %v771 = vsel %vm300, %v600, 0.0
      %v772 = vadd.f32 %v599, %v771
      %773 = vadd.xlane.f32.xlu0 %v772
      %v774 = vpop.xlane.xlu0 %773
      %v775 = vsel %vm300, %v602, 0.0
      %v776 = vadd.f32 %v601, %v775
      %777 = vadd.xlane.f32.xlu0 %v776
      %v778 = vpop.xlane.xlu0 %777
      %v779 = vsel %vm300, %v604, 0.0
      %v780 = vadd.f32 %v603, %v779
      %781 = vadd.xlane.f32.xlu0 %v780
      %v782 = vpop.xlane.xlu0 %781
      %v783 = vsel %vm300, %v606, 0.0
      %v784 = vadd.f32 %v605, %v783
      %785 = vadd.xlane.f32.xlu0 %v784
      %v786 = vpop.xlane.xlu0 %785
      %v787 = vsel %vm300, %v608, 0.0
      %v788 = vadd.f32 %v607, %v787
      %789 = vadd.xlane.f32.xlu0 %v788
      %v790 = vpop.xlane.xlu0 %789
      %v791 = vsel %vm300, %v610, 0.0
      %v792 = vadd.f32 %v609, %v791
      %793 = vadd.xlane.f32.xlu0 %v792
      %v794 = vpop.xlane.xlu0 %793
      %v795 = vsel %vm300, %v612, 0.0
      %v796 = vadd.f32 %v611, %v795
      %797 = vadd.xlane.f32.xlu0 %v796
      %v798 = vpop.xlane.xlu0 %797
      %v799 = vsel %vm300, %v614, 0.0
      %v800 = vadd.f32 %v613, %v799
      %801 = vadd.xlane.f32.xlu0 %v800
      %v802 = vpop.xlane.xlu0 %801
      %v803 = vsel %vm300, %v616, 0.0
      %v804 = vadd.f32 %v615, %v803
      %805 = vadd.xlane.f32.xlu0 %v804
      %v806 = vpop.xlane.xlu0 %805
      %v807 = vsel %vm300, %v618, 0.0
      %v808 = vadd.f32 %v617, %v807
      %809 = vadd.xlane.f32.xlu0 %v808
      %v810 = vpop.xlane.xlu0 %809
      %v811 = vsel %vm300, %v620, 0.0
      %v812 = vadd.f32 %v619, %v811
      %813 = vadd.xlane.f32.xlu0 %v812
      %v814 = vpop.xlane.xlu0 %813
      %v815 = vsel %vm300, %v622, 0.0
      %v816 = vadd.f32 %v621, %v815
      %817 = vadd.xlane.f32.xlu0 %v816
      %v818 = vpop.xlane.xlu0 %817
      %v819 = vsel %vm300, %v624, 0.0
      %v820 = vadd.f32 %v623, %v819
      %821 = vadd.xlane.f32.xlu0 %v820
      %v822 = vpop.xlane.xlu0 %821
      %v823 = vsel %vm300, %v626, 0.0
      %v824 = vadd.f32 %v625, %v823
      %825 = vadd.xlane.f32.xlu0 %v824
      %v826 = vpop.xlane.xlu0 %825
      %v827 = vsel %vm300, %v628, 0.0
      %v828 = vadd.f32 %v627, %v827
      %829 = vadd.xlane.f32.xlu0 %v828
      %v830 = vpop.xlane.xlu0 %829
      %v831 = vsel %vm300, %v630, 0.0
      %v832 = vadd.f32 %v629, %v831
      %833 = vadd.xlane.f32.xlu0 %v832
      %v834 = vpop.xlane.xlu0 %833
      %v835 = vsel %vm300, %v632, 0.0
      %v836 = vadd.f32 %v631, %v835
      %837 = vadd.xlane.f32.xlu0 %v836
      %v838 = vpop.xlane.xlu0 %837
      %v839 = vsel %vm300, %v634, 0.0
      %v840 = vadd.f32 %v633, %v839
      %841 = vadd.xlane.f32.xlu0 %v840
      %v842 = vpop.xlane.xlu0 %841
      %v843 = vsel %vm300, %v636, 0.0
      %v844 = vadd.f32 %v635, %v843
      %845 = vadd.xlane.f32.xlu0 %v844
      %v846 = vpop.xlane.xlu0 %845
      %v847 = vsel %vm300, %v638, 0.0
      %v848 = vadd.f32 %v637, %v847
      %849 = vadd.xlane.f32.xlu0 %v848
      %v850 = vpop.xlane.xlu0 %849
      %v851 = vsel %vm300, %v640, 0.0
      %v852 = vadd.f32 %v639, %v851
      %853 = vadd.xlane.f32.xlu0 %v852
      %v854 = vpop.xlane.xlu0 %853
      %v855 = vsel %vm300, %v642, 0.0
      %v856 = vadd.f32 %v641, %v855
      %857 = vadd.xlane.f32.xlu0 %v856
      %v858 = vpop.xlane.xlu0 %857
      %v859 = vsel %vm300, %v644, 0.0
      %v860 = vadd.f32 %v643, %v859
      %861 = vadd.xlane.f32.xlu0 %v860
      %v862 = vpop.xlane.xlu0 %861
      %v863 = vsel %vm300, %v646, 0.0
      %v864 = vadd.f32 %v645, %v863
      %865 = vadd.xlane.f32.xlu0 %v864
      %v866 = vpop.xlane.xlu0 %865
      %v867 = vsel %vm300, %v648, 0.0
      %v868 = vadd.f32 %v647, %v867
      %869 = vadd.xlane.f32.xlu0 %v868
      %v870 = vpop.xlane.xlu0 %869
      %v871 = vsel %vm300, %v650, 0.0
      %v872 = vadd.f32 %v649, %v871
      %873 = vadd.xlane.f32.xlu0 %v872
      %v874 = vpop.xlane.xlu0 %873
      %v875 = vsel %vm300, %v652, 0.0
      %v876 = vadd.f32 %v651, %v875
      %877 = vadd.xlane.f32.xlu0 %v876
      %v878 = vpop.xlane.xlu0 %877
      %v879 = vsel %vm300, %v654, 0.0
      %v880 = vadd.f32 %v653, %v879
      %881 = vadd.xlane.f32.xlu0 %v880
      %v882 = vpop.xlane.xlu0 %881
      %v883 = vsel %vm300, %v656, 0.0
      %v884 = vadd.f32 %v655, %v883
      %885 = vadd.xlane.f32.xlu0 %v884
      %v886 = vpop.xlane.xlu0 %885
      %v887 = vsel %vm300, %v658, 0.0
      %v888 = vadd.f32 %v657, %v887
      %889 = vadd.xlane.f32.xlu0 %v888
      %v890 = vpop.xlane.xlu0 %889
      %v891 = vsel %vm300, %v660, 0.0
      %v892 = vadd.f32 %v659, %v891
      %893 = vadd.xlane.f32.xlu0 %v892
      %v894 = vpop.xlane.xlu0 %893
      %v895 = vsel %vm300, %v662, 0.0
      %v896 = vadd.f32 %v661, %v895
      %897 = vadd.xlane.f32.xlu0 %v896
      %v898 = vpop.xlane.xlu0 %897
      %v899 = vsel %vm300, %v664, 0.0
      %v900 = vadd.f32 %v663, %v899
      %901 = vadd.xlane.f32.xlu0 %v900
      %v902 = vpop.xlane.xlu0 %901
      %v903 = vsel %vm300, %v666, 0.0
      %v904 = vadd.f32 %v665, %v903
      %905 = vadd.xlane.f32.xlu0 %v904
      %v906 = vpop.xlane.xlu0 %905
      %v907 = vsel %vm300, %v668, 0.0
      %v908 = vadd.f32 %v667, %v907
      %909 = vadd.xlane.f32.xlu0 %v908
      %v910 = vpop.xlane.xlu0 %909
      %v911 = vsel %vm300, %v670, 0.0
      %v912 = vadd.f32 %v669, %v911
      %913 = vadd.xlane.f32.xlu0 %v912
      %v914 = vpop.xlane.xlu0 %913
      %v915 = vsel %vm300, %v672, 0.0
      %v916 = vadd.f32 %v671, %v915
      %917 = vadd.xlane.f32.xlu0 %v916
      %v918 = vpop.xlane.xlu0 %917
      %v919 = vsel %vm300, %v674, 0.0
      %v920 = vadd.f32 %v673, %v919
      %921 = vadd.xlane.f32.xlu0 %v920
      %v922 = vpop.xlane.xlu0 %921
      %v923 = vsel %vm300, %v676, 0.0
      %v924 = vadd.f32 %v675, %v923
      %925 = vadd.xlane.f32.xlu0 %v924
      %v926 = vpop.xlane.xlu0 %925
      %v927 = vsel %vm300, %v678, 0.0
      %v928 = vadd.f32 %v677, %v927
      %929 = vadd.xlane.f32.xlu0 %v928
      %v930 = vpop.xlane.xlu0 %929
      %v931 = vmul.f32 %v304, 0.0051020407
      %v932 = vmul.f32 %v308, 0.0051020407
      %v933 = vmul.f32 %v312, 0.0051020407
      %v934 = vmul.f32 %v316, 0.0051020407
      %v935 = vmul.f32 %v320, 0.0051020407
      %v936 = vmul.f32 %v324, 0.0051020407
      %v937 = vmul.f32 %v328, 0.0051020407
      %v938 = vmul.f32 %v332, 0.0051020407
      %v939 = vmul.f32 %v336, 0.0051020407
      %v940 = vmul.f32 %v340, 0.0051020407
      %v941 = vmul.f32 %v344, 0.0051020407
      %v942 = vmul.f32 %v348, 0.0051020407
      %v943 = vmul.f32 %v352, 0.0051020407
      %v944 = vmul.f32 %v356, 0.0051020407
      %v945 = vmul.f32 %v360, 0.0051020407
      %v946 = vmul.f32 %v364, 0.0051020407
      %v947 = vmul.f32 %v368, 0.0051020407
      %v948 = vmul.f32 %v372, 0.0051020407
      %v949 = vmul.f32 %v376, 0.0051020407
      %v950 = vmul.f32 %v380, 0.0051020407
      %v951 = vmul.f32 %v384, 0.0051020407
      %v952 = vmul.f32 %v388, 0.0051020407
      %v953 = vmul.f32 %v392, 0.0051020407
      %v954 = vmul.f32 %v396, 0.0051020407
      %v955 = vmul.f32 %v400, 0.0051020407
      %v956 = vmul.f32 %v404, 0.0051020407
      %v957 = vmul.f32 %v408, 0.0051020407
      %v958 = vmul.f32 %v412, 0.0051020407
      %v959 = vmul.f32 %v416, 0.0051020407
      %v960 = vmul.f32 %v420, 0.0051020407
      %v961 = vmul.f32 %v424, 0.0051020407
      %v962 = vmul.f32 %v428, 0.0051020407
      %v963 = vmul.f32 %v432, 0.0051020407
      %v964 = vmul.f32 %v436, 0.0051020407
      %v965 = vmul.f32 %v440, 0.0051020407
      %v966 = vmul.f32 %v444, 0.0051020407
      %v967 = vmul.f32 %v448, 0.0051020407
      %v968 = vmul.f32 %v452, 0.0051020407
      %v969 = vmul.f32 %v456, 0.0051020407
      %v970 = vmul.f32 %v460, 0.0051020407
      %v971 = vmul.f32 %v464, 0.0051020407
      %v972 = vmul.f32 %v468, 0.0051020407
      %v973 = vmul.f32 %v472, 0.0051020407
      %v974 = vmul.f32 %v476, 0.0051020407
      %v975 = vmul.f32 %v480, 0.0051020407
      %v976 = vmul.f32 %v484, 0.0051020407
      %v977 = vmul.f32 %v488, 0.0051020407
      %v978 = vmul.f32 %v492, 0.0051020407
      %v979 = vmul.f32 %v496, 0.0051020407
      %v980 = vmul.f32 %v500, 0.0051020407
      %v981 = vmul.f32 %v504, 0.0051020407
      %v982 = vmul.f32 %v508, 0.0051020407
      %v983 = vmul.f32 %v512, 0.0051020407
      %v984 = vmul.f32 %v516, 0.0051020407
      %v985 = vmul.f32 %v520, 0.0051020407
      %v986 = vmul.f32 %v524, 0.0051020407
      %v987 = vmul.f32 %v528, 0.0051020407
      %v988 = vmul.f32 %v532, 0.0051020407
      %v989 = vmul.f32 %v536, 0.0051020407
      %v990 = vmul.f32 %v540, 0.0051020407
      %v991 = vmul.f32 %v544, 0.0051020407
      %v992 = vmul.f32 %v548, 0.0051020407
      %v993 = vmul.f32 %v552, 0.0051020407
      %v994 = vmul.f32 %v682, 0.0051020407
      %v995 = vmul.f32 %v686, 0.0051020407
      %v996 = vmul.f32 %v690, 0.0051020407
      %v997 = vmul.f32 %v694, 0.0051020407
      %v998 = vmul.f32 %v698, 0.0051020407
      %v999 = vmul.f32 %v702, 0.0051020407
      %v1000 = vmul.f32 %v706, 0.0051020407
      %v1001 = vmul.f32 %v710, 0.0051020407
      %v1002 = vmul.f32 %v714, 0.0051020407
      %v1003 = vmul.f32 %v718, 0.0051020407
      %v1004 = vmul.f32 %v722, 0.0051020407
      %v1005 = vmul.f32 %v726, 0.0051020407
      %v1006 = vmul.f32 %v730, 0.0051020407
      %v1007 = vmul.f32 %v734, 0.0051020407
      %v1008 = vmul.f32 %v738, 0.0051020407
      %v1009 = vmul.f32 %v742, 0.0051020407
      %v1010 = vmul.f32 %v746, 0.0051020407
      %v1011 = vmul.f32 %v750, 0.0051020407
      %v1012 = vmul.f32 %v754, 0.0051020407
      %v1013 = vmul.f32 %v758, 0.0051020407
      %v1014 = vmul.f32 %v762, 0.0051020407
      %v1015 = vmul.f32 %v766, 0.0051020407
      %v1016 = vmul.f32 %v770, 0.0051020407
      %v1017 = vmul.f32 %v774, 0.0051020407
      %v1018 = vmul.f32 %v778, 0.0051020407
      %v1019 = vmul.f32 %v782, 0.0051020407
      %v1020 = vmul.f32 %v786, 0.0051020407
      %v1021 = vmul.f32 %v790, 0.0051020407
      %v1022 = vmul.f32 %v794, 0.0051020407
      %v1023 = vmul.f32 %v798, 0.0051020407
      %v1024 = vmul.f32 %v802, 0.0051020407
      %v1025 = vmul.f32 %v806, 0.0051020407
      %v1026 = vmul.f32 %v810, 0.0051020407
      %v1027 = vmul.f32 %v814, 0.0051020407
      %v1028 = vmul.f32 %v818, 0.0051020407
      %v1029 = vmul.f32 %v822, 0.0051020407
      %v1030 = vmul.f32 %v826, 0.0051020407
      %v1031 = vmul.f32 %v830, 0.0051020407
      %v1032 = vmul.f32 %v834, 0.0051020407
      %v1033 = vmul.f32 %v838, 0.0051020407
      %v1034 = vmul.f32 %v842, 0.0051020407
      %v1035 = vmul.f32 %v846, 0.0051020407
      %v1036 = vmul.f32 %v850, 0.0051020407
      %v1037 = vmul.f32 %v854, 0.0051020407
      %v1038 = vmul.f32 %v858, 0.0051020407
      %v1039 = vmul.f32 %v862, 0.0051020407
      %v1040 = vmul.f32 %v866, 0.0051020407
      %v1041 = vmul.f32 %v870, 0.0051020407
      %v1042 = vmul.f32 %v874, 0.0051020407
      %v1043 = vmul.f32 %v878, 0.0051020407
      %v1044 = vmul.f32 %v882, 0.0051020407
      %v1045 = vmul.f32 %v886, 0.0051020407
      %v1046 = vmul.f32 %v890, 0.0051020407
      %v1047 = vmul.f32 %v894, 0.0051020407
      %v1048 = vmul.f32 %v898, 0.0051020407
      %v1049 = vmul.f32 %v902, 0.0051020407
      %v1050 = vmul.f32 %v906, 0.0051020407
      %v1051 = vmul.f32 %v910, 0.0051020407
      %v1052 = vmul.f32 %v914, 0.0051020407
      %v1053 = vmul.f32 %v918, 0.0051020407
      %v1054 = vmul.f32 %v922, 0.0051020407
      %v1055 = vmul.f32 %v926, 0.0051020407
      %v1056 = vmul.f32 %v930, 0.0051020407
      %v1057 = vmul.f32 %v931, %v931
      %v1058 = vmul.f32 %v932, %v932
      %v1059 = vmul.f32 %v933, %v933
      %v1060 = vmul.f32 %v934, %v934
      %v1061 = vmul.f32 %v935, %v935
      %v1062 = vmul.f32 %v936, %v936
      %v1063 = vmul.f32 %v937, %v937
      %v1064 = vmul.f32 %v938, %v938
      %v1065 = vmul.f32 %v939, %v939
      %v1066 = vmul.f32 %v940, %v940
      %v1067 = vmul.f32 %v941, %v941
      %v1068 = vmul.f32 %v942, %v942
      %v1069 = vmul.f32 %v943, %v943
      %v1070 = vmul.f32 %v944, %v944
      %v1071 = vmul.f32 %v945, %v945
      %v1072 = vmul.f32 %v946, %v946
      %v1073 = vmul.f32 %v947, %v947
      %v1074 = vmul.f32 %v948, %v948
      %v1075 = vmul.f32 %v949, %v949
      %v1076 = vmul.f32 %v950, %v950
      %v1077 = vmul.f32 %v951, %v951
      %v1078 = vmul.f32 %v952, %v952
      %v1079 = vmul.f32 %v953, %v953
      %v1080 = vmul.f32 %v954, %v954
      %v1081 = vmul.f32 %v955, %v955
      %v1082 = vmul.f32 %v956, %v956
      %v1083 = vmul.f32 %v957, %v957
      %v1084 = vmul.f32 %v958, %v958
      %v1085 = vmul.f32 %v959, %v959
      %v1086 = vmul.f32 %v960, %v960
      %v1087 = vmul.f32 %v961, %v961
      %v1088 = vmul.f32 %v962, %v962
      %v1089 = vmul.f32 %v963, %v963
      %v1090 = vmul.f32 %v964, %v964
      %v1091 = vmul.f32 %v965, %v965
      %v1092 = vmul.f32 %v966, %v966
      %v1093 = vmul.f32 %v967, %v967
      %v1094 = vmul.f32 %v968, %v968
      %v1095 = vmul.f32 %v969, %v969
      %v1096 = vmul.f32 %v970, %v970
      %v1097 = vmul.f32 %v971, %v971
      %v1098 = vmul.f32 %v972, %v972
      %v1099 = vmul.f32 %v973, %v973
      %v1100 = vmul.f32 %v974, %v974
      %v1101 = vmul.f32 %v975, %v975
      %v1102 = vmul.f32 %v976, %v976
      %v1103 = vmul.f32 %v977, %v977
      %v1104 = vmul.f32 %v978, %v978
      %v1105 = vmul.f32 %v979, %v979
      %v1106 = vmul.f32 %v980, %v980
      %v1107 = vmul.f32 %v981, %v981
      %v1108 = vmul.f32 %v982, %v982
      %v1109 = vmul.f32 %v983, %v983
      %v1110 = vmul.f32 %v984, %v984
      %v1111 = vmul.f32 %v985, %v985
      %v1112 = vmul.f32 %v986, %v986
      %v1113 = vmul.f32 %v987, %v987
      %v1114 = vmul.f32 %v988, %v988
      %v1115 = vmul.f32 %v989, %v989
      %v1116 = vmul.f32 %v990, %v990
      %v1117 = vmul.f32 %v991, %v991
      %v1118 = vmul.f32 %v992, %v992
      %v1119 = vmul.f32 %v993, %v993
      %v1120 = vsub.f32 %v994, %v1057
      %v1121 = vsub.f32 %v995, %v1058
      %v1122 = vsub.f32 %v996, %v1059
      %v1123 = vsub.f32 %v997, %v1060
      %v1124 = vsub.f32 %v998, %v1061
      %v1125 = vsub.f32 %v999, %v1062
      %v1126 = vsub.f32 %v1000, %v1063
      %v1127 = vsub.f32 %v1001, %v1064
      %v1128 = vsub.f32 %v1002, %v1065
      %v1129 = vsub.f32 %v1003, %v1066
      %v1130 = vsub.f32 %v1004, %v1067
      %v1131 = vsub.f32 %v1005, %v1068
      %v1132 = vsub.f32 %v1006, %v1069
      %v1133 = vsub.f32 %v1007, %v1070
      %v1134 = vsub.f32 %v1008, %v1071
      %v1135 = vsub.f32 %v1009, %v1072
      %v1136 = vsub.f32 %v1010, %v1073
      %v1137 = vsub.f32 %v1011, %v1074
      %v1138 = vsub.f32 %v1012, %v1075
      %v1139 = vsub.f32 %v1013, %v1076
      %v1140 = vsub.f32 %v1014, %v1077
      %v1141 = vsub.f32 %v1015, %v1078
      %v1142 = vsub.f32 %v1016, %v1079
      %v1143 = vsub.f32 %v1017, %v1080
      %v1144 = vsub.f32 %v1018, %v1081
      %v1145 = vsub.f32 %v1019, %v1082
      %v1146 = vsub.f32 %v1020, %v1083
      %v1147 = vsub.f32 %v1021, %v1084
      %v1148 = vsub.f32 %v1022, %v1085
      %v1149 = vsub.f32 %v1023, %v1086
      %v1150 = vsub.f32 %v1024, %v1087
      %v1151 = vsub.f32 %v1025, %v1088
      %v1152 = vsub.f32 %v1026, %v1089
      %v1153 = vsub.f32 %v1027, %v1090
      %v1154 = vsub.f32 %v1028, %v1091
      %v1155 = vsub.f32 %v1029, %v1092
      %v1156 = vsub.f32 %v1030, %v1093
      %v1157 = vsub.f32 %v1031, %v1094
      %v1158 = vsub.f32 %v1032, %v1095
      %v1159 = vsub.f32 %v1033, %v1096
      %v1160 = vsub.f32 %v1034, %v1097
      %v1161 = vsub.f32 %v1035, %v1098
      %v1162 = vsub.f32 %v1036, %v1099
      %v1163 = vsub.f32 %v1037, %v1100
      %v1164 = vsub.f32 %v1038, %v1101
      %v1165 = vsub.f32 %v1039, %v1102
      %v1166 = vsub.f32 %v1040, %v1103
      %v1167 = vsub.f32 %v1041, %v1104
      %v1168 = vsub.f32 %v1042, %v1105
      %v1169 = vsub.f32 %v1043, %v1106
      %v1170 = vsub.f32 %v1044, %v1107
      %v1171 = vsub.f32 %v1045, %v1108
      %v1172 = vsub.f32 %v1046, %v1109
      %v1173 = vsub.f32 %v1047, %v1110
      %v1174 = vsub.f32 %v1048, %v1111
      %v1175 = vsub.f32 %v1049, %v1112
      %v1176 = vsub.f32 %v1050, %v1113
      %v1177 = vsub.f32 %v1051, %v1114
      %v1178 = vsub.f32 %v1052, %v1115
      %v1179 = vsub.f32 %v1053, %v1116
      %v1180 = vsub.f32 %v1054, %v1117
      %v1181 = vsub.f32 %v1055, %v1118
      %v1182 = vsub.f32 %v1056, %v1119
      %v1183 = vmax.f32 %v1120, 0.0
      %v1184 = vmax.f32 %v1121, 0.0
      %v1185 = vmax.f32 %v1122, 0.0
      %v1186 = vmax.f32 %v1123, 0.0
      %v1187 = vmax.f32 %v1124, 0.0
      %v1188 = vmax.f32 %v1125, 0.0
      %v1189 = vmax.f32 %v1126, 0.0
      %v1190 = vmax.f32 %v1127, 0.0
      %v1191 = vmax.f32 %v1128, 0.0
      %v1192 = vmax.f32 %v1129, 0.0
      %v1193 = vmax.f32 %v1130, 0.0
      %v1194 = vmax.f32 %v1131, 0.0
      %v1195 = vmax.f32 %v1132, 0.0
      %v1196 = vmax.f32 %v1133, 0.0
      %v1197 = vmax.f32 %v1134, 0.0
      %v1198 = vmax.f32 %v1135, 0.0
      %v1199 = vmax.f32 %v1136, 0.0
      %v1200 = vmax.f32 %v1137, 0.0
      %v1201 = vmax.f32 %v1138, 0.0
      %v1202 = vmax.f32 %v1139, 0.0
      %v1203 = vmax.f32 %v1140, 0.0
      %v1204 = vmax.f32 %v1141, 0.0
      %v1205 = vmax.f32 %v1142, 0.0
      %v1206 = vmax.f32 %v1143, 0.0
      %v1207 = vmax.f32 %v1144, 0.0
      %v1208 = vmax.f32 %v1145, 0.0
      %v1209 = vmax.f32 %v1146, 0.0
      %v1210 = vmax.f32 %v1147, 0.0
      %v1211 = vmax.f32 %v1148, 0.0
      %v1212 = vmax.f32 %v1149, 0.0
      %v1213 = vmax.f32 %v1150, 0.0
      %v1214 = vmax.f32 %v1151, 0.0
      %v1215 = vmax.f32 %v1152, 0.0
      %v1216 = vmax.f32 %v1153, 0.0
      %v1217 = vmax.f32 %v1154, 0.0
      %v1218 = vmax.f32 %v1155, 0.0
      %v1219 = vmax.f32 %v1156, 0.0
      %v1220 = vmax.f32 %v1157, 0.0
      %v1221 = vmax.f32 %v1158, 0.0
      %v1222 = vmax.f32 %v1159, 0.0
      %v1223 = vmax.f32 %v1160, 0.0
      %v1224 = vmax.f32 %v1161, 0.0
      %v1225 = vmax.f32 %v1162, 0.0
      %v1226 = vmax.f32 %v1163, 0.0
      %v1227 = vmax.f32 %v1164, 0.0
      %v1228 = vmax.f32 %v1165, 0.0
      %v1229 = vmax.f32 %v1166, 0.0
      %v1230 = vmax.f32 %v1167, 0.0
      %v1231 = vmax.f32 %v1168, 0.0
      %v1232 = vmax.f32 %v1169, 0.0
      %v1233 = vmax.f32 %v1170, 0.0
      %v1234 = vmax.f32 %v1171, 0.0
      %v1235 = vmax.f32 %v1172, 0.0
      %v1236 = vmax.f32 %v1173, 0.0
      %v1237 = vmax.f32 %v1174, 0.0
      %v1238 = vmax.f32 %v1175, 0.0
      %v1239 = vmax.f32 %v1176, 0.0
      %v1240 = vmax.f32 %v1177, 0.0
      %v1241 = vmax.f32 %v1178, 0.0
      %v1242 = vmax.f32 %v1179, 0.0
      %v1243 = vmax.f32 %v1180, 0.0
      %v1244 = vmax.f32 %v1181, 0.0
      %v1245 = vmax.f32 %v1182, 0.0
      %v1246 = vadd.f32 %v1183, 1e-05
      %v1247 = vadd.f32 %v1184, 1e-05
      %v1248 = vadd.f32 %v1185, 1e-05
      %v1249 = vadd.f32 %v1186, 1e-05
      %v1250 = vadd.f32 %v1187, 1e-05
      %v1251 = vadd.f32 %v1188, 1e-05
      %v1252 = vadd.f32 %v1189, 1e-05
      %v1253 = vadd.f32 %v1190, 1e-05
      %v1254 = vadd.f32 %v1191, 1e-05
      %v1255 = vadd.f32 %v1192, 1e-05
      %v1256 = vadd.f32 %v1193, 1e-05
      %v1257 = vadd.f32 %v1194, 1e-05
      %v1258 = vadd.f32 %v1195, 1e-05
      %v1259 = vadd.f32 %v1196, 1e-05
      %v1260 = vadd.f32 %v1197, 1e-05
      %v1261 = vadd.f32 %v1198, 1e-05
      %v1262 = vadd.f32 %v1199, 1e-05
      %v1263 = vadd.f32 %v1200, 1e-05
      %v1264 = vadd.f32 %v1201, 1e-05
      %v1265 = vadd.f32 %v1202, 1e-05
      %v1266 = vadd.f32 %v1203, 1e-05
      %v1267 = vadd.f32 %v1204, 1e-05
      %v1268 = vadd.f32 %v1205, 1e-05
      %v1269 = vadd.f32 %v1206, 1e-05
      %v1270 = vadd.f32 %v1207, 1e-05
      %v1271 = vadd.f32 %v1208, 1e-05
      %v1272 = vadd.f32 %v1209, 1e-05
      %v1273 = vadd.f32 %v1210, 1e-05
      %v1274 = vadd.f32 %v1211, 1e-05
      %v1275 = vadd.f32 %v1212, 1e-05
      %v1276 = vadd.f32 %v1213, 1e-05
      %v1277 = vadd.f32 %v1214, 1e-05
      %v1278 = vadd.f32 %v1215, 1e-05
      %v1279 = vadd.f32 %v1216, 1e-05
      %v1280 = vadd.f32 %v1217, 1e-05
      %v1281 = vadd.f32 %v1218, 1e-05
      %v1282 = vadd.f32 %v1219, 1e-05
      %v1283 = vadd.f32 %v1220, 1e-05
      %v1284 = vadd.f32 %v1221, 1e-05
      %v1285 = vadd.f32 %v1222, 1e-05
      %v1286 = vadd.f32 %v1223, 1e-05
      %v1287 = vadd.f32 %v1224, 1e-05
      %v1288 = vadd.f32 %v1225, 1e-05
      %v1289 = vadd.f32 %v1226, 1e-05
      %v1290 = vadd.f32 %v1227, 1e-05
      %v1291 = vadd.f32 %v1228, 1e-05
      %v1292 = vadd.f32 %v1229, 1e-05
      %v1293 = vadd.f32 %v1230, 1e-05
      %v1294 = vadd.f32 %v1231, 1e-05
      %v1295 = vadd.f32 %v1232, 1e-05
      %v1296 = vadd.f32 %v1233, 1e-05
      %v1297 = vadd.f32 %v1234, 1e-05
      %v1298 = vadd.f32 %v1235, 1e-05
      %v1299 = vadd.f32 %v1236, 1e-05
      %v1300 = vadd.f32 %v1237, 1e-05
      %v1301 = vadd.f32 %v1238, 1e-05
      %v1302 = vadd.f32 %v1239, 1e-05
      %v1303 = vadd.f32 %v1240, 1e-05
      %v1304 = vadd.f32 %v1241, 1e-05
      %v1305 = vadd.f32 %v1242, 1e-05
      %v1306 = vadd.f32 %v1243, 1e-05
      %v1307 = vadd.f32 %v1244, 1e-05
      %v1308 = vadd.f32 %v1245, 1e-05
      %v1309 = vrsqrt.pop %v1246
      %v1310 = vmul.f32 %v1309, %v1246
      %v1311 = vmul.f32 %v1310, %v1309
      %v1312 = vmul.f32 0.5, %v1311
      %v1313 = vsub.f32 1.5, %v1312
      %v1314 = vmul.f32 %v1309, %v1313
      %vm1315 = vweird.f32 %v1246
      %vm1316 = vweird.f32 %v1309
      %vm1317 = vmor %vm1315, %vm1316
      %v1318 = vsel %vm1317, %v1309, %v1314
      %v1319 = vrsqrt.pop %v1247
      %v1320 = vmul.f32 %v1319, %v1247
      %v1321 = vmul.f32 %v1320, %v1319
      %v1322 = vmul.f32 0.5, %v1321
      %v1323 = vsub.f32 1.5, %v1322
      %v1324 = vmul.f32 %v1319, %v1323
      %vm1325 = vweird.f32 %v1247
      %vm1326 = vweird.f32 %v1319
      %vm1327 = vmor %vm1325, %vm1326
      %v1328 = vsel %vm1327, %v1319, %v1324
      %v1329 = vrsqrt.pop %v1248
      %v1330 = vmul.f32 %v1329, %v1248
      %v1331 = vmul.f32 %v1330, %v1329
      %v1332 = vmul.f32 0.5, %v1331
      %v1333 = vsub.f32 1.5, %v1332
      %v1334 = vmul.f32 %v1329, %v1333
      %vm1335 = vweird.f32 %v1248
      %vm1336 = vweird.f32 %v1329
      %vm1337 = vmor %vm1335, %vm1336
      %v1338 = vsel %vm1337, %v1329, %v1334
      %v1339 = vrsqrt.pop %v1249
      %v1340 = vmul.f32 %v1339, %v1249
      %v1341 = vmul.f32 %v1340, %v1339
      %v1342 = vmul.f32 0.5, %v1341
      %v1343 = vsub.f32 1.5, %v1342
      %v1344 = vmul.f32 %v1339, %v1343
      %vm1345 = vweird.f32 %v1249
      %vm1346 = vweird.f32 %v1339
      %vm1347 = vmor %vm1345, %vm1346
      %v1348 = vsel %vm1347, %v1339, %v1344
      %v1349 = vrsqrt.pop %v1250
      %v1350 = vmul.f32 %v1349, %v1250
      %v1351 = vmul.f32 %v1350, %v1349
      %v1352 = vmul.f32 0.5, %v1351
      %v1353 = vsub.f32 1.5, %v1352
      %v1354 = vmul.f32 %v1349, %v1353
      %vm1355 = vweird.f32 %v1250
      %vm1356 = vweird.f32 %v1349
      %vm1357 = vmor %vm1355, %vm1356
      %v1358 = vsel %vm1357, %v1349, %v1354
      %v1359 = vrsqrt.pop %v1251
      %v1360 = vmul.f32 %v1359, %v1251
      %v1361 = vmul.f32 %v1360, %v1359
      %v1362 = vmul.f32 0.5, %v1361
      %v1363 = vsub.f32 1.5, %v1362
      %v1364 = vmul.f32 %v1359, %v1363
      %vm1365 = vweird.f32 %v1251
      %vm1366 = vweird.f32 %v1359
      %vm1367 = vmor %vm1365, %vm1366
      %v1368 = vsel %vm1367, %v1359, %v1364
      %v1369 = vrsqrt.pop %v1252
      %v1370 = vmul.f32 %v1369, %v1252
      %v1371 = vmul.f32 %v1370, %v1369
      %v1372 = vmul.f32 0.5, %v1371
      %v1373 = vsub.f32 1.5, %v1372
      %v1374 = vmul.f32 %v1369, %v1373
      %vm1375 = vweird.f32 %v1252
      %vm1376 = vweird.f32 %v1369
      %vm1377 = vmor %vm1375, %vm1376
      %v1378 = vsel %vm1377, %v1369, %v1374
      %v1379 = vrsqrt.pop %v1253
      %v1380 = vmul.f32 %v1379, %v1253
      %v1381 = vmul.f32 %v1380, %v1379
      %v1382 = vmul.f32 0.5, %v1381
      %v1383 = vsub.f32 1.5, %v1382
      %v1384 = vmul.f32 %v1379, %v1383
      %vm1385 = vweird.f32 %v1253
      %vm1386 = vweird.f32 %v1379
      %vm1387 = vmor %vm1385, %vm1386
      %v1388 = vsel %vm1387, %v1379, %v1384
      %v1389 = vrsqrt.pop %v1254
      %v1390 = vmul.f32 %v1389, %v1254
      %v1391 = vmul.f32 %v1390, %v1389
      %v1392 = vmul.f32 0.5, %v1391
      %v1393 = vsub.f32 1.5, %v1392
      %v1394 = vmul.f32 %v1389, %v1393
      %vm1395 = vweird.f32 %v1254
      %vm1396 = vweird.f32 %v1389
      %vm1397 = vmor %vm1395, %vm1396
      %v1398 = vsel %vm1397, %v1389, %v1394
      %v1399 = vrsqrt.pop %v1255
      %v1400 = vmul.f32 %v1399, %v1255
      %v1401 = vmul.f32 %v1400, %v1399
      %v1402 = vmul.f32 0.5, %v1401
      %v1403 = vsub.f32 1.5, %v1402
      %v1404 = vmul.f32 %v1399, %v1403
      %vm1405 = vweird.f32 %v1255
      %vm1406 = vweird.f32 %v1399
      %vm1407 = vmor %vm1405, %vm1406
      %v1408 = vsel %vm1407, %v1399, %v1404
      %v1409 = vrsqrt.pop %v1256
      %v1410 = vmul.f32 %v1409, %v1256
      %v1411 = vmul.f32 %v1410, %v1409
      %v1412 = vmul.f32 0.5, %v1411
      %v1413 = vsub.f32 1.5, %v1412
      %v1414 = vmul.f32 %v1409, %v1413
      %vm1415 = vweird.f32 %v1256
      %vm1416 = vweird.f32 %v1409
      %vm1417 = vmor %vm1415, %vm1416
      %v1418 = vsel %vm1417, %v1409, %v1414
      %v1419 = vrsqrt.pop %v1257
      %v1420 = vmul.f32 %v1419, %v1257
      %v1421 = vmul.f32 %v1420, %v1419
      %v1422 = vmul.f32 0.5, %v1421
      %v1423 = vsub.f32 1.5, %v1422
      %v1424 = vmul.f32 %v1419, %v1423
      %vm1425 = vweird.f32 %v1257
      %vm1426 = vweird.f32 %v1419
      %vm1427 = vmor %vm1425, %vm1426
      %v1428 = vsel %vm1427, %v1419, %v1424
      %v1429 = vrsqrt.pop %v1258
      %v1430 = vmul.f32 %v1429, %v1258
      %v1431 = vmul.f32 %v1430, %v1429
      %v1432 = vmul.f32 0.5, %v1431
      %v1433 = vsub.f32 1.5, %v1432
      %v1434 = vmul.f32 %v1429, %v1433
      %vm1435 = vweird.f32 %v1258
      %vm1436 = vweird.f32 %v1429
      %vm1437 = vmor %vm1435, %vm1436
      %v1438 = vsel %vm1437, %v1429, %v1434
      %v1439 = vrsqrt.pop %v1259
      %v1440 = vmul.f32 %v1439, %v1259
      %v1441 = vmul.f32 %v1440, %v1439
      %v1442 = vmul.f32 0.5, %v1441
      %v1443 = vsub.f32 1.5, %v1442
      %v1444 = vmul.f32 %v1439, %v1443
      %vm1445 = vweird.f32 %v1259
      %vm1446 = vweird.f32 %v1439
      %vm1447 = vmor %vm1445, %vm1446
      %v1448 = vsel %vm1447, %v1439, %v1444
      %v1449 = vrsqrt.pop %v1260
      %v1450 = vmul.f32 %v1449, %v1260
      %v1451 = vmul.f32 %v1450, %v1449
      %v1452 = vmul.f32 0.5, %v1451
      %v1453 = vsub.f32 1.5, %v1452
      %v1454 = vmul.f32 %v1449, %v1453
      %vm1455 = vweird.f32 %v1260
      %vm1456 = vweird.f32 %v1449
      %vm1457 = vmor %vm1455, %vm1456
      %v1458 = vsel %vm1457, %v1449, %v1454
      %v1459 = vrsqrt.pop %v1261
      %v1460 = vmul.f32 %v1459, %v1261
      %v1461 = vmul.f32 %v1460, %v1459
      %v1462 = vmul.f32 0.5, %v1461
      %v1463 = vsub.f32 1.5, %v1462
      %v1464 = vmul.f32 %v1459, %v1463
      %vm1465 = vweird.f32 %v1261
      %vm1466 = vweird.f32 %v1459
      %vm1467 = vmor %vm1465, %vm1466
      %v1468 = vsel %vm1467, %v1459, %v1464
      %v1469 = vrsqrt.pop %v1262
      %v1470 = vmul.f32 %v1469, %v1262
      %v1471 = vmul.f32 %v1470, %v1469
      %v1472 = vmul.f32 0.5, %v1471
      %v1473 = vsub.f32 1.5, %v1472
      %v1474 = vmul.f32 %v1469, %v1473
      %vm1475 = vweird.f32 %v1262
      %vm1476 = vweird.f32 %v1469
      %vm1477 = vmor %vm1475, %vm1476
      %v1478 = vsel %vm1477, %v1469, %v1474
      %v1479 = vrsqrt.pop %v1263
      %v1480 = vmul.f32 %v1479, %v1263
      %v1481 = vmul.f32 %v1480, %v1479
      %v1482 = vmul.f32 0.5, %v1481
      %v1483 = vsub.f32 1.5, %v1482
      %v1484 = vmul.f32 %v1479, %v1483
      %vm1485 = vweird.f32 %v1263
      %vm1486 = vweird.f32 %v1479
      %vm1487 = vmor %vm1485, %vm1486
      %v1488 = vsel %vm1487, %v1479, %v1484
      %v1489 = vrsqrt.pop %v1264
      %v1490 = vmul.f32 %v1489, %v1264
      %v1491 = vmul.f32 %v1490, %v1489
      %v1492 = vmul.f32 0.5, %v1491
      %v1493 = vsub.f32 1.5, %v1492
      %v1494 = vmul.f32 %v1489, %v1493
      %vm1495 = vweird.f32 %v1264
      %vm1496 = vweird.f32 %v1489
      %vm1497 = vmor %vm1495, %vm1496
      %v1498 = vsel %vm1497, %v1489, %v1494
      %v1499 = vrsqrt.pop %v1265
      %v1500 = vmul.f32 %v1499, %v1265
      %v1501 = vmul.f32 %v1500, %v1499
      %v1502 = vmul.f32 0.5, %v1501
      %v1503 = vsub.f32 1.5, %v1502
      %v1504 = vmul.f32 %v1499, %v1503
      %vm1505 = vweird.f32 %v1265
      %vm1506 = vweird.f32 %v1499
      %vm1507 = vmor %vm1505, %vm1506
      %v1508 = vsel %vm1507, %v1499, %v1504
      %v1509 = vrsqrt.pop %v1266
      %v1510 = vmul.f32 %v1509, %v1266
      %v1511 = vmul.f32 %v1510, %v1509
      %v1512 = vmul.f32 0.5, %v1511
      %v1513 = vsub.f32 1.5, %v1512
      %v1514 = vmul.f32 %v1509, %v1513
      %vm1515 = vweird.f32 %v1266
      %vm1516 = vweird.f32 %v1509
      %vm1517 = vmor %vm1515, %vm1516
      %v1518 = vsel %vm1517, %v1509, %v1514
      %v1519 = vrsqrt.pop %v1267
      %v1520 = vmul.f32 %v1519, %v1267
      %v1521 = vmul.f32 %v1520, %v1519
      %v1522 = vmul.f32 0.5, %v1521
      %v1523 = vsub.f32 1.5, %v1522
      %v1524 = vmul.f32 %v1519, %v1523
      %vm1525 = vweird.f32 %v1267
      %vm1526 = vweird.f32 %v1519
      %vm1527 = vmor %vm1525, %vm1526
      %v1528 = vsel %vm1527, %v1519, %v1524
      %v1529 = vrsqrt.pop %v1268
      %v1530 = vmul.f32 %v1529, %v1268
      %v1531 = vmul.f32 %v1530, %v1529
      %v1532 = vmul.f32 0.5, %v1531
      %v1533 = vsub.f32 1.5, %v1532
      %v1534 = vmul.f32 %v1529, %v1533
      %vm1535 = vweird.f32 %v1268
      %vm1536 = vweird.f32 %v1529
      %vm1537 = vmor %vm1535, %vm1536
      %v1538 = vsel %vm1537, %v1529, %v1534
      %v1539 = vrsqrt.pop %v1269
      %v1540 = vmul.f32 %v1539, %v1269
      %v1541 = vmul.f32 %v1540, %v1539
      %v1542 = vmul.f32 0.5, %v1541
      %v1543 = vsub.f32 1.5, %v1542
      %v1544 = vmul.f32 %v1539, %v1543
      %vm1545 = vweird.f32 %v1269
      %vm1546 = vweird.f32 %v1539
      %vm1547 = vmor %vm1545, %vm1546
      %v1548 = vsel %vm1547, %v1539, %v1544
      %v1549 = vrsqrt.pop %v1270
      %v1550 = vmul.f32 %v1549, %v1270
      %v1551 = vmul.f32 %v1550, %v1549
      %v1552 = vmul.f32 0.5, %v1551
      %v1553 = vsub.f32 1.5, %v1552
      %v1554 = vmul.f32 %v1549, %v1553
      %vm1555 = vweird.f32 %v1270
      %vm1556 = vweird.f32 %v1549
      %vm1557 = vmor %vm1555, %vm1556
      %v1558 = vsel %vm1557, %v1549, %v1554
      %v1559 = vrsqrt.pop %v1271
      %v1560 = vmul.f32 %v1559, %v1271
      %v1561 = vmul.f32 %v1560, %v1559
      %v1562 = vmul.f32 0.5, %v1561
      %v1563 = vsub.f32 1.5, %v1562
      %v1564 = vmul.f32 %v1559, %v1563
      %vm1565 = vweird.f32 %v1271
      %vm1566 = vweird.f32 %v1559
      %vm1567 = vmor %vm1565, %vm1566
      %v1568 = vsel %vm1567, %v1559, %v1564
      %v1569 = vrsqrt.pop %v1272
      %v1570 = vmul.f32 %v1569, %v1272
      %v1571 = vmul.f32 %v1570, %v1569
      %v1572 = vmul.f32 0.5, %v1571
      %v1573 = vsub.f32 1.5, %v1572
      %v1574 = vmul.f32 %v1569, %v1573
      %vm1575 = vweird.f32 %v1272
      %vm1576 = vweird.f32 %v1569
      %vm1577 = vmor %vm1575, %vm1576
      %v1578 = vsel %vm1577, %v1569, %v1574
      %v1579 = vrsqrt.pop %v1273
      %v1580 = vmul.f32 %v1579, %v1273
      %v1581 = vmul.f32 %v1580, %v1579
      %v1582 = vmul.f32 0.5, %v1581
      %v1583 = vsub.f32 1.5, %v1582
      %v1584 = vmul.f32 %v1579, %v1583
      %vm1585 = vweird.f32 %v1273
      %vm1586 = vweird.f32 %v1579
      %vm1587 = vmor %vm1585, %vm1586
      %v1588 = vsel %vm1587, %v1579, %v1584
      %v1589 = vrsqrt.pop %v1274
      %v1590 = vmul.f32 %v1589, %v1274
      %v1591 = vmul.f32 %v1590, %v1589
      %v1592 = vmul.f32 0.5, %v1591
      %v1593 = vsub.f32 1.5, %v1592
      %v1594 = vmul.f32 %v1589, %v1593
      %vm1595 = vweird.f32 %v1274
      %vm1596 = vweird.f32 %v1589
      %vm1597 = vmor %vm1595, %vm1596
      %v1598 = vsel %vm1597, %v1589, %v1594
      %v1599 = vrsqrt.pop %v1275
      %v1600 = vmul.f32 %v1599, %v1275
      %v1601 = vmul.f32 %v1600, %v1599
      %v1602 = vmul.f32 0.5, %v1601
      %v1603 = vsub.f32 1.5, %v1602
      %v1604 = vmul.f32 %v1599, %v1603
      %vm1605 = vweird.f32 %v1275
      %vm1606 = vweird.f32 %v1599
      %vm1607 = vmor %vm1605, %vm1606
      %v1608 = vsel %vm1607, %v1599, %v1604
      %v1609 = vrsqrt.pop %v1276
      %v1610 = vmul.f32 %v1609, %v1276
      %v1611 = vmul.f32 %v1610, %v1609
      %v1612 = vmul.f32 0.5, %v1611
      %v1613 = vsub.f32 1.5, %v1612
      %v1614 = vmul.f32 %v1609, %v1613
      %vm1615 = vweird.f32 %v1276
      %vm1616 = vweird.f32 %v1609
      %vm1617 = vmor %vm1615, %vm1616
      %v1618 = vsel %vm1617, %v1609, %v1614
      %v1619 = vrsqrt.pop %v1277
      %v1620 = vmul.f32 %v1619, %v1277
      %v1621 = vmul.f32 %v1620, %v1619
      %v1622 = vmul.f32 0.5, %v1621
      %v1623 = vsub.f32 1.5, %v1622
      %v1624 = vmul.f32 %v1619, %v1623
      %vm1625 = vweird.f32 %v1277
      %vm1626 = vweird.f32 %v1619
      %vm1627 = vmor %vm1625, %vm1626
      %v1628 = vsel %vm1627, %v1619, %v1624
      %v1629 = vrsqrt.pop %v1278
      %v1630 = vmul.f32 %v1629, %v1278
      %v1631 = vmul.f32 %v1630, %v1629
      %v1632 = vmul.f32 0.5, %v1631
      %v1633 = vsub.f32 1.5, %v1632
      %v1634 = vmul.f32 %v1629, %v1633
      %vm1635 = vweird.f32 %v1278
      %vm1636 = vweird.f32 %v1629
      %vm1637 = vmor %vm1635, %vm1636
      %v1638 = vsel %vm1637, %v1629, %v1634
      %v1639 = vrsqrt.pop %v1279
      %v1640 = vmul.f32 %v1639, %v1279
      %v1641 = vmul.f32 %v1640, %v1639
      %v1642 = vmul.f32 0.5, %v1641
      %v1643 = vsub.f32 1.5, %v1642
      %v1644 = vmul.f32 %v1639, %v1643
      %vm1645 = vweird.f32 %v1279
      %vm1646 = vweird.f32 %v1639
      %vm1647 = vmor %vm1645, %vm1646
      %v1648 = vsel %vm1647, %v1639, %v1644
      %v1649 = vrsqrt.pop %v1280
      %v1650 = vmul.f32 %v1649, %v1280
      %v1651 = vmul.f32 %v1650, %v1649
      %v1652 = vmul.f32 0.5, %v1651
      %v1653 = vsub.f32 1.5, %v1652
      %v1654 = vmul.f32 %v1649, %v1653
      %vm1655 = vweird.f32 %v1280
      %vm1656 = vweird.f32 %v1649
      %vm1657 = vmor %vm1655, %vm1656
      %v1658 = vsel %vm1657, %v1649, %v1654
      %v1659 = vrsqrt.pop %v1281
      %v1660 = vmul.f32 %v1659, %v1281
      %v1661 = vmul.f32 %v1660, %v1659
      %v1662 = vmul.f32 0.5, %v1661
      %v1663 = vsub.f32 1.5, %v1662
      %v1664 = vmul.f32 %v1659, %v1663
      %vm1665 = vweird.f32 %v1281
      %vm1666 = vweird.f32 %v1659
      %vm1667 = vmor %vm1665, %vm1666
      %v1668 = vsel %vm1667, %v1659, %v1664
      %v1669 = vrsqrt.pop %v1282
      %v1670 = vmul.f32 %v1669, %v1282
      %v1671 = vmul.f32 %v1670, %v1669
      %v1672 = vmul.f32 0.5, %v1671
      %v1673 = vsub.f32 1.5, %v1672
      %v1674 = vmul.f32 %v1669, %v1673
      %vm1675 = vweird.f32 %v1282
      %vm1676 = vweird.f32 %v1669
      %vm1677 = vmor %vm1675, %vm1676
      %v1678 = vsel %vm1677, %v1669, %v1674
      %v1679 = vrsqrt.pop %v1283
      %v1680 = vmul.f32 %v1679, %v1283
      %v1681 = vmul.f32 %v1680, %v1679
      %v1682 = vmul.f32 0.5, %v1681
      %v1683 = vsub.f32 1.5, %v1682
      %v1684 = vmul.f32 %v1679, %v1683
      %vm1685 = vweird.f32 %v1283
      %vm1686 = vweird.f32 %v1679
      %vm1687 = vmor %vm1685, %vm1686
      %v1688 = vsel %vm1687, %v1679, %v1684
      %v1689 = vrsqrt.pop %v1284
      %v1690 = vmul.f32 %v1689, %v1284
      %v1691 = vmul.f32 %v1690, %v1689
      %v1692 = vmul.f32 0.5, %v1691
      %v1693 = vsub.f32 1.5, %v1692
      %v1694 = vmul.f32 %v1689, %v1693
      %vm1695 = vweird.f32 %v1284
      %vm1696 = vweird.f32 %v1689
      %vm1697 = vmor %vm1695, %vm1696
      %v1698 = vsel %vm1697, %v1689, %v1694
      %v1699 = vrsqrt.pop %v1285
      %v1700 = vmul.f32 %v1699, %v1285
      %v1701 = vmul.f32 %v1700, %v1699
      %v1702 = vmul.f32 0.5, %v1701
      %v1703 = vsub.f32 1.5, %v1702
      %v1704 = vmul.f32 %v1699, %v1703
      %vm1705 = vweird.f32 %v1285
      %vm1706 = vweird.f32 %v1699
      %vm1707 = vmor %vm1705, %vm1706
      %v1708 = vsel %vm1707, %v1699, %v1704
      %v1709 = vrsqrt.pop %v1286
      %v1710 = vmul.f32 %v1709, %v1286
      %v1711 = vmul.f32 %v1710, %v1709
      %v1712 = vmul.f32 0.5, %v1711
      %v1713 = vsub.f32 1.5, %v1712
      %v1714 = vmul.f32 %v1709, %v1713
      %vm1715 = vweird.f32 %v1286
      %vm1716 = vweird.f32 %v1709
      %vm1717 = vmor %vm1715, %vm1716
      %v1718 = vsel %vm1717, %v1709, %v1714
      %v1719 = vrsqrt.pop %v1287
      %v1720 = vmul.f32 %v1719, %v1287
      %v1721 = vmul.f32 %v1720, %v1719
      %v1722 = vmul.f32 0.5, %v1721
      %v1723 = vsub.f32 1.5, %v1722
      %v1724 = vmul.f32 %v1719, %v1723
      %vm1725 = vweird.f32 %v1287
      %vm1726 = vweird.f32 %v1719
      %vm1727 = vmor %vm1725, %vm1726
      %v1728 = vsel %vm1727, %v1719, %v1724
      %v1729 = vrsqrt.pop %v1288
      %v1730 = vmul.f32 %v1729, %v1288
      %v1731 = vmul.f32 %v1730, %v1729
      %v1732 = vmul.f32 0.5, %v1731
      %v1733 = vsub.f32 1.5, %v1732
      %v1734 = vmul.f32 %v1729, %v1733
      %vm1735 = vweird.f32 %v1288
      %vm1736 = vweird.f32 %v1729
      %vm1737 = vmor %vm1735, %vm1736
      %v1738 = vsel %vm1737, %v1729, %v1734
      %v1739 = vrsqrt.pop %v1289
      %v1740 = vmul.f32 %v1739, %v1289
      %v1741 = vmul.f32 %v1740, %v1739
      %v1742 = vmul.f32 0.5, %v1741
      %v1743 = vsub.f32 1.5, %v1742
      %v1744 = vmul.f32 %v1739, %v1743
      %vm1745 = vweird.f32 %v1289
      %vm1746 = vweird.f32 %v1739
      %vm1747 = vmor %vm1745, %vm1746
      %v1748 = vsel %vm1747, %v1739, %v1744
      %v1749 = vrsqrt.pop %v1290
      %v1750 = vmul.f32 %v1749, %v1290
      %v1751 = vmul.f32 %v1750, %v1749
      %v1752 = vmul.f32 0.5, %v1751
      %v1753 = vsub.f32 1.5, %v1752
      %v1754 = vmul.f32 %v1749, %v1753
      %vm1755 = vweird.f32 %v1290
      %vm1756 = vweird.f32 %v1749
      %vm1757 = vmor %vm1755, %vm1756
      %v1758 = vsel %vm1757, %v1749, %v1754
      %v1759 = vrsqrt.pop %v1291
      %v1760 = vmul.f32 %v1759, %v1291
      %v1761 = vmul.f32 %v1760, %v1759
      %v1762 = vmul.f32 0.5, %v1761
      %v1763 = vsub.f32 1.5, %v1762
      %v1764 = vmul.f32 %v1759, %v1763
      %vm1765 = vweird.f32 %v1291
      %vm1766 = vweird.f32 %v1759
      %vm1767 = vmor %vm1765, %vm1766
      %v1768 = vsel %vm1767, %v1759, %v1764
      %v1769 = vrsqrt.pop %v1292
      %v1770 = vmul.f32 %v1769, %v1292
      %v1771 = vmul.f32 %v1770, %v1769
      %v1772 = vmul.f32 0.5, %v1771
      %v1773 = vsub.f32 1.5, %v1772
      %v1774 = vmul.f32 %v1769, %v1773
      %vm1775 = vweird.f32 %v1292
      %vm1776 = vweird.f32 %v1769
      %vm1777 = vmor %vm1775, %vm1776
      %v1778 = vsel %vm1777, %v1769, %v1774
      %v1779 = vrsqrt.pop %v1293
      %v1780 = vmul.f32 %v1779, %v1293
      %v1781 = vmul.f32 %v1780, %v1779
      %v1782 = vmul.f32 0.5, %v1781
      %v1783 = vsub.f32 1.5, %v1782
      %v1784 = vmul.f32 %v1779, %v1783
      %vm1785 = vweird.f32 %v1293
      %vm1786 = vweird.f32 %v1779
      %vm1787 = vmor %vm1785, %vm1786
      %v1788 = vsel %vm1787, %v1779, %v1784
      %v1789 = vrsqrt.pop %v1294
      %v1790 = vmul.f32 %v1789, %v1294
      %v1791 = vmul.f32 %v1790, %v1789
      %v1792 = vmul.f32 0.5, %v1791
      %v1793 = vsub.f32 1.5, %v1792
      %v1794 = vmul.f32 %v1789, %v1793
      %vm1795 = vweird.f32 %v1294
      %vm1796 = vweird.f32 %v1789
      %vm1797 = vmor %vm1795, %vm1796
      %v1798 = vsel %vm1797, %v1789, %v1794
      %v1799 = vrsqrt.pop %v1295
      %v1800 = vmul.f32 %v1799, %v1295
      %v1801 = vmul.f32 %v1800, %v1799
      %v1802 = vmul.f32 0.5, %v1801
      %v1803 = vsub.f32 1.5, %v1802
      %v1804 = vmul.f32 %v1799, %v1803
      %vm1805 = vweird.f32 %v1295
      %vm1806 = vweird.f32 %v1799
      %vm1807 = vmor %vm1805, %vm1806
      %v1808 = vsel %vm1807, %v1799, %v1804
      %v1809 = vrsqrt.pop %v1296
      %v1810 = vmul.f32 %v1809, %v1296
      %v1811 = vmul.f32 %v1810, %v1809
      %v1812 = vmul.f32 0.5, %v1811
      %v1813 = vsub.f32 1.5, %v1812
      %v1814 = vmul.f32 %v1809, %v1813
      %vm1815 = vweird.f32 %v1296
      %vm1816 = vweird.f32 %v1809
      %vm1817 = vmor %vm1815, %vm1816
      %v1818 = vsel %vm1817, %v1809, %v1814
      %v1819 = vrsqrt.pop %v1297
      %v1820 = vmul.f32 %v1819, %v1297
      %v1821 = vmul.f32 %v1820, %v1819
      %v1822 = vmul.f32 0.5, %v1821
      %v1823 = vsub.f32 1.5, %v1822
      %v1824 = vmul.f32 %v1819, %v1823
      %vm1825 = vweird.f32 %v1297
      %vm1826 = vweird.f32 %v1819
      %vm1827 = vmor %vm1825, %vm1826
      %v1828 = vsel %vm1827, %v1819, %v1824
      %v1829 = vrsqrt.pop %v1298
      %v1830 = vmul.f32 %v1829, %v1298
      %v1831 = vmul.f32 %v1830, %v1829
      %v1832 = vmul.f32 0.5, %v1831
      %v1833 = vsub.f32 1.5, %v1832
      %v1834 = vmul.f32 %v1829, %v1833
      %vm1835 = vweird.f32 %v1298
      %vm1836 = vweird.f32 %v1829
      %vm1837 = vmor %vm1835, %vm1836
      %v1838 = vsel %vm1837, %v1829, %v1834
      %v1839 = vrsqrt.pop %v1299
      %v1840 = vmul.f32 %v1839, %v1299
      %v1841 = vmul.f32 %v1840, %v1839
      %v1842 = vmul.f32 0.5, %v1841
      %v1843 = vsub.f32 1.5, %v1842
      %v1844 = vmul.f32 %v1839, %v1843
      %vm1845 = vweird.f32 %v1299
      %vm1846 = vweird.f32 %v1839
      %vm1847 = vmor %vm1845, %vm1846
      %v1848 = vsel %vm1847, %v1839, %v1844
      %v1849 = vrsqrt.pop %v1300
      %v1850 = vmul.f32 %v1849, %v1300
      %v1851 = vmul.f32 %v1850, %v1849
      %v1852 = vmul.f32 0.5, %v1851
      %v1853 = vsub.f32 1.5, %v1852
      %v1854 = vmul.f32 %v1849, %v1853
      %vm1855 = vweird.f32 %v1300
      %vm1856 = vweird.f32 %v1849
      %vm1857 = vmor %vm1855, %vm1856
      %v1858 = vsel %vm1857, %v1849, %v1854
      %v1859 = vrsqrt.pop %v1301
      %v1860 = vmul.f32 %v1859, %v1301
      %v1861 = vmul.f32 %v1860, %v1859
      %v1862 = vmul.f32 0.5, %v1861
      %v1863 = vsub.f32 1.5, %v1862
      %v1864 = vmul.f32 %v1859, %v1863
      %vm1865 = vweird.f32 %v1301
      %vm1866 = vweird.f32 %v1859
      %vm1867 = vmor %vm1865, %vm1866
      %v1868 = vsel %vm1867, %v1859, %v1864
      %v1869 = vrsqrt.pop %v1302
      %v1870 = vmul.f32 %v1869, %v1302
      %v1871 = vmul.f32 %v1870, %v1869
      %v1872 = vmul.f32 0.5, %v1871
      %v1873 = vsub.f32 1.5, %v1872
      %v1874 = vmul.f32 %v1869, %v1873
      %vm1875 = vweird.f32 %v1302
      %vm1876 = vweird.f32 %v1869
      %vm1877 = vmor %vm1875, %vm1876
      %v1878 = vsel %vm1877, %v1869, %v1874
      %v1879 = vrsqrt.pop %v1303
      %v1880 = vmul.f32 %v1879, %v1303
      %v1881 = vmul.f32 %v1880, %v1879
      %v1882 = vmul.f32 0.5, %v1881
      %v1883 = vsub.f32 1.5, %v1882
      %v1884 = vmul.f32 %v1879, %v1883
      %vm1885 = vweird.f32 %v1303
      %vm1886 = vweird.f32 %v1879
      %vm1887 = vmor %vm1885, %vm1886
      %v1888 = vsel %vm1887, %v1879, %v1884
      %v1889 = vrsqrt.pop %v1304
      %v1890 = vmul.f32 %v1889, %v1304
      %v1891 = vmul.f32 %v1890, %v1889
      %v1892 = vmul.f32 0.5, %v1891
      %v1893 = vsub.f32 1.5, %v1892
      %v1894 = vmul.f32 %v1889, %v1893
      %vm1895 = vweird.f32 %v1304
      %vm1896 = vweird.f32 %v1889
      %vm1897 = vmor %vm1895, %vm1896
      %v1898 = vsel %vm1897, %v1889, %v1894
      %v1899 = vrsqrt.pop %v1305
      %v1900 = vmul.f32 %v1899, %v1305
      %v1901 = vmul.f32 %v1900, %v1899
      %v1902 = vmul.f32 0.5, %v1901
      %v1903 = vsub.f32 1.5, %v1902
      %v1904 = vmul.f32 %v1899, %v1903
      %vm1905 = vweird.f32 %v1305
      %vm1906 = vweird.f32 %v1899
      %vm1907 = vmor %vm1905, %vm1906
      %v1908 = vsel %vm1907, %v1899, %v1904
      %v1909 = vrsqrt.pop %v1306
      %v1910 = vmul.f32 %v1909, %v1306
      %v1911 = vmul.f32 %v1910, %v1909
      %v1912 = vmul.f32 0.5, %v1911
      %v1913 = vsub.f32 1.5, %v1912
      %v1914 = vmul.f32 %v1909, %v1913
      %vm1915 = vweird.f32 %v1306
      %vm1916 = vweird.f32 %v1909
      %vm1917 = vmor %vm1915, %vm1916
      %v1918 = vsel %vm1917, %v1909, %v1914
      %v1919 = vrsqrt.pop %v1307
      %v1920 = vmul.f32 %v1919, %v1307
      %v1921 = vmul.f32 %v1920, %v1919
      %v1922 = vmul.f32 0.5, %v1921
      %v1923 = vsub.f32 1.5, %v1922
      %v1924 = vmul.f32 %v1919, %v1923
      %vm1925 = vweird.f32 %v1307
      %vm1926 = vweird.f32 %v1919
      %vm1927 = vmor %vm1925, %vm1926
      %v1928 = vsel %vm1927, %v1919, %v1924
      %v1929 = vrsqrt.pop %v1308
      %v1930 = vmul.f32 %v1929, %v1308
      %v1931 = vmul.f32 %v1930, %v1929
      %v1932 = vmul.f32 0.5, %v1931
      %v1933 = vsub.f32 1.5, %v1932
      %v1934 = vmul.f32 %v1929, %v1933
      %vm1935 = vweird.f32 %v1308
      %vm1936 = vweird.f32 %v1929
      %vm1937 = vmor %vm1935, %vm1936
      %v1938 = vsel %vm1937, %v1929, %v1934
      %v1939 = vld [vmem:[%s165] sm:$0xff]
      %v1940 = vld [vmem:[%s165 + $0x8] sm:$0xff]
      %v1941 = vld [vmem:[%s165 + $0x10] sm:$0xff]
      %v1942 = vld [vmem:[%s165 + $0x18] sm:$0xff]
      %v1943 = vld [vmem:[%s165 + $0x20] sm:$0xff]
      %v1944 = vld [vmem:[%s165 + $0x28] sm:$0xff]
      %v1945 = vld [vmem:[%s165 + $0x30] sm:$0xff]
      %v1946 = vld [vmem:[%s165 + $0x38] sm:$0xff]
      %v1947 = vld [vmem:[%s165 + $0x40] sm:$0xff]
      %v1948 = vld [vmem:[%s165 + $0x48] sm:$0xff]
      %v1949 = vld [vmem:[%s165 + $0x50] sm:$0xff]
      %v1950 = vld [vmem:[%s165 + $0x58] sm:$0xff]
      %v1951 = vld [vmem:[%s165 + $0x60] sm:$0xff]
      %v1952 = vld [vmem:[%s165 + $0x68] sm:$0xff]
      %v1953 = vld [vmem:[%s165 + $0x70] sm:$0xff]
      %v1954 = vld [vmem:[%s165 + $0x78] sm:$0xff]
      %v1955 = vld [vmem:[%s165 + $0x80] sm:$0xff]
      %v1956 = vld [vmem:[%s165 + $0x88] sm:$0xff]
      %v1957 = vld [vmem:[%s165 + $0x90] sm:$0xff]
      %v1958 = vld [vmem:[%s165 + $0x98] sm:$0xff]
      %v1959 = vld [vmem:[%s165 + $0xa0] sm:$0xff]
      %v1960 = vld [vmem:[%s165 + $0xa8] sm:$0xff]
      %v1961 = vld [vmem:[%s165 + $0xb0] sm:$0xff]
      %v1962 = vld [vmem:[%s165 + $0xb8] sm:$0xff]
      %v1963 = vld [vmem:[%s165 + $0xc0] sm:$0xff]
      %v1964 = vld [vmem:[%s165 + $0xc8] sm:$0xff]
      %v1965 = vld [vmem:[%s165 + $0xd0] sm:$0xff]
      %v1966 = vld [vmem:[%s165 + $0xd8] sm:$0xff]
      %v1967 = vld [vmem:[%s165 + $0xe0] sm:$0xff]
      %v1968 = vld [vmem:[%s165 + $0xe8] sm:$0xff]
      %v1969 = vld [vmem:[%s165 + $0xf0] sm:$0xff]
      %v1970 = vld [vmem:[%s165 + $0xf8] sm:$0xff]
      %v1971 = vld [vmem:[%s165 + $0x100] sm:$0xff]
      %v1972 = vld [vmem:[%s165 + $0x108] sm:$0xff]
      %v1973 = vld [vmem:[%s165 + $0x110] sm:$0xff]
      %v1974 = vld [vmem:[%s165 + $0x118] sm:$0xff]
      %v1975 = vld [vmem:[%s165 + $0x120] sm:$0xff]
      %v1976 = vld [vmem:[%s165 + $0x128] sm:$0xff]
      %v1977 = vld [vmem:[%s165 + $0x130] sm:$0xff]
      %v1978 = vld [vmem:[%s165 + $0x138] sm:$0xff]
      %v1979 = vld [vmem:[%s165 + $0x140] sm:$0xff]
      %v1980 = vld [vmem:[%s165 + $0x148] sm:$0xff]
      %v1981 = vld [vmem:[%s165 + $0x150] sm:$0xff]
      %v1982 = vld [vmem:[%s165 + $0x158] sm:$0xff]
      %v1983 = vld [vmem:[%s165 + $0x160] sm:$0xff]
      %v1984 = vld [vmem:[%s165 + $0x168] sm:$0xff]
      %v1985 = vld [vmem:[%s165 + $0x170] sm:$0xff]
      %v1986 = vld [vmem:[%s165 + $0x178] sm:$0xff]
      %v1987 = vld [vmem:[%s165 + $0x180] sm:$0xff]
      %v1988 = vld [vmem:[%s165 + $0x188] sm:$0xff]
      %v1989 = vld [vmem:[%s165 + $0x190] sm:$0xff]
      %v1990 = vld [vmem:[%s165 + $0x198] sm:$0xff]
      %v1991 = vld [vmem:[%s165 + $0x1a0] sm:$0xff]
      %v1992 = vld [vmem:[%s165 + $0x1a8] sm:$0xff]
      %v1993 = vld [vmem:[%s165 + $0x1b0] sm:$0xff]
      %v1994 = vld [vmem:[%s165 + $0x1b8] sm:$0xff]
      %v1995 = vld [vmem:[%s165 + $0x1c0] sm:$0xff]
      %v1996 = vld [vmem:[%s165 + $0x1c8] sm:$0xff]
      %v1997 = vld [vmem:[%s165 + $0x1d0] sm:$0xff]
      %v1998 = vld [vmem:[%s165 + $0x1d8] sm:$0xff]
      %v1999 = vld [vmem:[%s165 + $0x1e0] sm:$0xff]
      %v2000 = vld [vmem:[%s165 + $0x1e8] sm:$0xff]
      %v2001 = vld [vmem:[%s165 + $0x1f0] sm:$0xff]
      %v2002 = vmul.f32 %v1318, %v1939
      %v2003 = vmul.f32 %v1328, %v1940
      %v2004 = vmul.f32 %v1338, %v1941
      %v2005 = vmul.f32 %v1348, %v1942
      %v2006 = vmul.f32 %v1358, %v1943
      %v2007 = vmul.f32 %v1368, %v1944
      %v2008 = vmul.f32 %v1378, %v1945
      %v2009 = vmul.f32 %v1388, %v1946
      %v2010 = vmul.f32 %v1398, %v1947
      %v2011 = vmul.f32 %v1408, %v1948
      %v2012 = vmul.f32 %v1418, %v1949
      %v2013 = vmul.f32 %v1428, %v1950
      %v2014 = vmul.f32 %v1438, %v1951
      %v2015 = vmul.f32 %v1448, %v1952
      %v2016 = vmul.f32 %v1458, %v1953
      %v2017 = vmul.f32 %v1468, %v1954
      %v2018 = vmul.f32 %v1478, %v1955
      %v2019 = vmul.f32 %v1488, %v1956
      %v2020 = vmul.f32 %v1498, %v1957
      %v2021 = vmul.f32 %v1508, %v1958
      %v2022 = vmul.f32 %v1518, %v1959
      %v2023 = vmul.f32 %v1528, %v1960
      %v2024 = vmul.f32 %v1538, %v1961
      %v2025 = vmul.f32 %v1548, %v1962
      %v2026 = vmul.f32 %v1558, %v1963
      %v2027 = vmul.f32 %v1568, %v1964
      %v2028 = vmul.f32 %v1578, %v1965
      %v2029 = vmul.f32 %v1588, %v1966
      %v2030 = vmul.f32 %v1598, %v1967
      %v2031 = vmul.f32 %v1608, %v1968
      %v2032 = vmul.f32 %v1618, %v1969
      %v2033 = vmul.f32 %v1628, %v1970
      %v2034 = vmul.f32 %v1638, %v1971
      %v2035 = vmul.f32 %v1648, %v1972
      %v2036 = vmul.f32 %v1658, %v1973
      %v2037 = vmul.f32 %v1668, %v1974
      %v2038 = vmul.f32 %v1678, %v1975
      %v2039 = vmul.f32 %v1688, %v1976
      %v2040 = vmul.f32 %v1698, %v1977
      %v2041 = vmul.f32 %v1708, %v1978
      %v2042 = vmul.f32 %v1718, %v1979
      %v2043 = vmul.f32 %v1728, %v1980
      %v2044 = vmul.f32 %v1738, %v1981
      %v2045 = vmul.f32 %v1748, %v1982
      %v2046 = vmul.f32 %v1758, %v1983
      %v2047 = vmul.f32 %v1768, %v1984
      %v2048 = vmul.f32 %v1778, %v1985
      %v2049 = vmul.f32 %v1788, %v1986
      %v2050 = vmul.f32 %v1798, %v1987
      %v2051 = vmul.f32 %v1808, %v1988
      %v2052 = vmul.f32 %v1818, %v1989
      %v2053 = vmul.f32 %v1828, %v1990
      %v2054 = vmul.f32 %v1838, %v1991
      %v2055 = vmul.f32 %v1848, %v1992
      %v2056 = vmul.f32 %v1858, %v1993
      %v2057 = vmul.f32 %v1868, %v1994
      %v2058 = vmul.f32 %v1878, %v1995
      %v2059 = vmul.f32 %v1888, %v1996
      %v2060 = vmul.f32 %v1898, %v1997
      %v2061 = vmul.f32 %v1908, %v1998
      %v2062 = vmul.f32 %v1918, %v1999
      %v2063 = vmul.f32 %v1928, %v2000
      %v2064 = vmul.f32 %v1938, %v2001
      %v2065 = vmul.f32 %v931, %v2002
      %v2066 = vmul.f32 %v932, %v2003
      %v2067 = vmul.f32 %v933, %v2004
      %v2068 = vmul.f32 %v934, %v2005
      %v2069 = vmul.f32 %v935, %v2006
      %v2070 = vmul.f32 %v936, %v2007
      %v2071 = vmul.f32 %v937, %v2008
      %v2072 = vmul.f32 %v938, %v2009
      %v2073 = vmul.f32 %v939, %v2010
      %v2074 = vmul.f32 %v940, %v2011
      %v2075 = vmul.f32 %v941, %v2012
      %v2076 = vmul.f32 %v942, %v2013
      %v2077 = vmul.f32 %v943, %v2014
      %v2078 = vmul.f32 %v944, %v2015
      %v2079 = vmul.f32 %v945, %v2016
      %v2080 = vmul.f32 %v946, %v2017
      %v2081 = vmul.f32 %v947, %v2018
      %v2082 = vmul.f32 %v948, %v2019
      %v2083 = vmul.f32 %v949, %v2020
      %v2084 = vmul.f32 %v950, %v2021
      %v2085 = vmul.f32 %v951, %v2022
      %v2086 = vmul.f32 %v952, %v2023
      %v2087 = vmul.f32 %v953, %v2024
      %v2088 = vmul.f32 %v954, %v2025
      %v2089 = vmul.f32 %v955, %v2026
      %v2090 = vmul.f32 %v956, %v2027
      %v2091 = vmul.f32 %v957, %v2028
      %v2092 = vmul.f32 %v958, %v2029
      %v2093 = vmul.f32 %v959, %v2030
      %v2094 = vmul.f32 %v960, %v2031
      %v2095 = vmul.f32 %v961, %v2032
      %v2096 = vmul.f32 %v962, %v2033
      %v2097 = vmul.f32 %v963, %v2034
      %v2098 = vmul.f32 %v964, %v2035
      %v2099 = vmul.f32 %v965, %v2036
      %v2100 = vmul.f32 %v966, %v2037
      %v2101 = vmul.f32 %v967, %v2038
      %v2102 = vmul.f32 %v968, %v2039
      %v2103 = vmul.f32 %v969, %v2040
      %v2104 = vmul.f32 %v970, %v2041
      %v2105 = vmul.f32 %v971, %v2042
      %v2106 = vmul.f32 %v972, %v2043
      %v2107 = vmul.f32 %v973, %v2044
      %v2108 = vmul.f32 %v974, %v2045
      %v2109 = vmul.f32 %v975, %v2046
      %v2110 = vmul.f32 %v976, %v2047
      %v2111 = vmul.f32 %v977, %v2048
      %v2112 = vmul.f32 %v978, %v2049
      %v2113 = vmul.f32 %v979, %v2050
      %v2114 = vmul.f32 %v980, %v2051
      %v2115 = vmul.f32 %v981, %v2052
      %v2116 = vmul.f32 %v982, %v2053
      %v2117 = vmul.f32 %v983, %v2054
      %v2118 = vmul.f32 %v984, %v2055
      %v2119 = vmul.f32 %v985, %v2056
      %v2120 = vmul.f32 %v986, %v2057
      %v2121 = vmul.f32 %v987, %v2058
      %v2122 = vmul.f32 %v988, %v2059
      %v2123 = vmul.f32 %v989, %v2060
      %v2124 = vmul.f32 %v990, %v2061
      %v2125 = vmul.f32 %v991, %v2062
      %v2126 = vmul.f32 %v992, %v2063
      %v2127 = vmul.f32 %v993, %v2064
      %2191 = vrot.lane.b32.xlu0 %v2065, 1
      %v2192 = vpop.permute.xlu0 %2191
      %2193 = vrot.lane.b32.xlu0 %v2066, 1
      %v2194 = vpop.permute.xlu0 %2193
      %2195 = vrot.lane.b32.xlu0 %v2067, 1
      %v2196 = vpop.permute.xlu0 %2195
      %2197 = vrot.lane.b32.xlu0 %v2068, 1
      %v2198 = vpop.permute.xlu0 %2197
      %2199 = vrot.lane.b32.xlu0 %v2069, 1
      %v2200 = vpop.permute.xlu0 %2199
      %2201 = vrot.lane.b32.xlu0 %v2070, 1
      %v2202 = vpop.permute.xlu0 %2201
      %2203 = vrot.lane.b32.xlu0 %v2071, 1
      %v2204 = vpop.permute.xlu0 %2203
      %2205 = vrot.lane.b32.xlu0 %v2072, 1
      %v2206 = vpop.permute.xlu0 %2205
      %2207 = vrot.lane.b32.xlu0 %v2073, 1
      %v2208 = vpop.permute.xlu0 %2207
      %2209 = vrot.lane.b32.xlu0 %v2074, 1
      %v2210 = vpop.permute.xlu0 %2209
      %2211 = vrot.lane.b32.xlu0 %v2075, 1
      %v2212 = vpop.permute.xlu0 %2211
      %2213 = vrot.lane.b32.xlu0 %v2076, 1
      %v2214 = vpop.permute.xlu0 %2213
      %2215 = vrot.lane.b32.xlu0 %v2077, 1
      %v2216 = vpop.permute.xlu0 %2215
      %2217 = vrot.lane.b32.xlu0 %v2078, 1
      %v2218 = vpop.permute.xlu0 %2217
      %2219 = vrot.lane.b32.xlu0 %v2079, 1
      %v2220 = vpop.permute.xlu0 %2219
      %2221 = vrot.lane.b32.xlu0 %v2080, 1
      %v2222 = vpop.permute.xlu0 %2221
      %2223 = vrot.lane.b32.xlu0 %v2081, 1
      %v2224 = vpop.permute.xlu0 %2223
      %2225 = vrot.lane.b32.xlu0 %v2082, 1
      %v2226 = vpop.permute.xlu0 %2225
      %2227 = vrot.lane.b32.xlu0 %v2083, 1
      %v2228 = vpop.permute.xlu0 %2227
      %2229 = vrot.lane.b32.xlu0 %v2084, 1
      %v2230 = vpop.permute.xlu0 %2229
      %2231 = vrot.lane.b32.xlu0 %v2085, 1
      %v2232 = vpop.permute.xlu0 %2231
      %2233 = vrot.lane.b32.xlu0 %v2086, 1
      %v2234 = vpop.permute.xlu0 %2233
      %2235 = vrot.lane.b32.xlu0 %v2087, 1
      %v2236 = vpop.permute.xlu0 %2235
      %2237 = vrot.lane.b32.xlu0 %v2088, 1
      %v2238 = vpop.permute.xlu0 %2237
      %2239 = vrot.lane.b32.xlu0 %v2089, 1
      %v2240 = vpop.permute.xlu0 %2239
      %2241 = vrot.lane.b32.xlu0 %v2090, 1
      %v2242 = vpop.permute.xlu0 %2241
      %2243 = vrot.lane.b32.xlu0 %v2091, 1
      %v2244 = vpop.permute.xlu0 %2243
      %2245 = vrot.lane.b32.xlu0 %v2092, 1
      %v2246 = vpop.permute.xlu0 %2245
      %2247 = vrot.lane.b32.xlu0 %v2093, 1
      %v2248 = vpop.permute.xlu0 %2247
      %2249 = vrot.lane.b32.xlu0 %v2094, 1
      %v2250 = vpop.permute.xlu0 %2249
      %2251 = vrot.lane.b32.xlu0 %v2095, 1
      %v2252 = vpop.permute.xlu0 %2251
      %2253 = vrot.lane.b32.xlu0 %v2096, 1
      %v2254 = vpop.permute.xlu0 %2253
      %2255 = vrot.lane.b32.xlu0 %v2097, 1
      %v2256 = vpop.permute.xlu0 %2255
      %2257 = vrot.lane.b32.xlu0 %v2098, 1
      %v2258 = vpop.permute.xlu0 %2257
      %2259 = vrot.lane.b32.xlu0 %v2099, 1
      %v2260 = vpop.permute.xlu0 %2259
      %2261 = vrot.lane.b32.xlu0 %v2100, 1
      %v2262 = vpop.permute.xlu0 %2261
      %2263 = vrot.lane.b32.xlu0 %v2101, 1
      %v2264 = vpop.permute.xlu0 %2263
      %2265 = vrot.lane.b32.xlu0 %v2102, 1
      %v2266 = vpop.permute.xlu0 %2265
      %2267 = vrot.lane.b32.xlu0 %v2103, 1
      %v2268 = vpop.permute.xlu0 %2267
      %2269 = vrot.lane.b32.xlu0 %v2104, 1
      %v2270 = vpop.permute.xlu0 %2269
      %2271 = vrot.lane.b32.xlu0 %v2105, 1
      %v2272 = vpop.permute.xlu0 %2271
      %2273 = vrot.lane.b32.xlu0 %v2106, 1
      %v2274 = vpop.permute.xlu0 %2273
      %2275 = vrot.lane.b32.xlu0 %v2107, 1
      %v2276 = vpop.permute.xlu0 %2275
      %2277 = vrot.lane.b32.xlu0 %v2108, 1
      %v2278 = vpop.permute.xlu0 %2277
      %2279 = vrot.lane.b32.xlu0 %v2109, 1
      %v2280 = vpop.permute.xlu0 %2279
      %2281 = vrot.lane.b32.xlu0 %v2110, 1
      %v2282 = vpop.permute.xlu0 %2281
      %2283 = vrot.lane.b32.xlu0 %v2111, 1
      %v2284 = vpop.permute.xlu0 %2283
      %2285 = vrot.lane.b32.xlu0 %v2112, 1
      %v2286 = vpop.permute.xlu0 %2285
      %2287 = vrot.lane.b32.xlu0 %v2113, 1
      %v2288 = vpop.permute.xlu0 %2287
      %2289 = vrot.lane.b32.xlu0 %v2114, 1
      %v2290 = vpop.permute.xlu0 %2289
      %2291 = vrot.lane.b32.xlu0 %v2115, 1
      %v2292 = vpop.permute.xlu0 %2291
      %2293 = vrot.lane.b32.xlu0 %v2116, 1
      %v2294 = vpop.permute.xlu0 %2293
      %2295 = vrot.lane.b32.xlu0 %v2117, 1
      %v2296 = vpop.permute.xlu0 %2295
      %2297 = vrot.lane.b32.xlu0 %v2118, 1
      %v2298 = vpop.permute.xlu0 %2297
      %2299 = vrot.lane.b32.xlu0 %v2119, 1
      %v2300 = vpop.permute.xlu0 %2299
      %2301 = vrot.lane.b32.xlu0 %v2120, 1
      %v2302 = vpop.permute.xlu0 %2301
      %2303 = vrot.lane.b32.xlu0 %v2121, 1
      %v2304 = vpop.permute.xlu0 %2303
      %2305 = vrot.lane.b32.xlu0 %v2122, 1
      %v2306 = vpop.permute.xlu0 %2305
      %2307 = vrot.lane.b32.xlu0 %v2123, 1
      %v2308 = vpop.permute.xlu0 %2307
      %2309 = vrot.lane.b32.xlu0 %v2124, 1
      %v2310 = vpop.permute.xlu0 %2309
      %2311 = vrot.lane.b32.xlu0 %v2125, 1
      %v2312 = vpop.permute.xlu0 %2311
      %2313 = vrot.lane.b32.xlu0 %v2126, 1
      %v2314 = vpop.permute.xlu0 %2313
      %2315 = vrot.lane.b32.xlu0 %v2127, 1
      %v2316 = vpop.permute.xlu0 %2315
      %v2380 = vsub.f32 %v1939, %v2192
      %v2381 = vsub.f32 %v1940, %v2194
      %v2382 = vsub.f32 %v1941, %v2196
      %v2383 = vsub.f32 %v1942, %v2198
      %v2384 = vsub.f32 %v1943, %v2200
      %v2385 = vsub.f32 %v1944, %v2202
      %v2386 = vsub.f32 %v1945, %v2204
      %v2387 = vsub.f32 %v1946, %v2206
      %v2388 = vsub.f32 %v1947, %v2208
      %v2389 = vsub.f32 %v1948, %v2210
      %v2390 = vsub.f32 %v1949, %v2212
      %v2391 = vsub.f32 %v1950, %v2214
      %v2392 = vsub.f32 %v1951, %v2216
      %v2393 = vsub.f32 %v1952, %v2218
      %v2394 = vsub.f32 %v1953, %v2220
      %v2395 = vsub.f32 %v1954, %v2222
      %v2396 = vsub.f32 %v1955, %v2224
      %v2397 = vsub.f32 %v1956, %v2226
      %v2398 = vsub.f32 %v1957, %v2228
      %v2399 = vsub.f32 %v1958, %v2230
      %v2400 = vsub.f32 %v1959, %v2232
      %v2401 = vsub.f32 %v1960, %v2234
      %v2402 = vsub.f32 %v1961, %v2236
      %v2403 = vsub.f32 %v1962, %v2238
      %v2404 = vsub.f32 %v1963, %v2240
      %v2405 = vsub.f32 %v1964, %v2242
      %v2406 = vsub.f32 %v1965, %v2244
      %v2407 = vsub.f32 %v1966, %v2246
      %v2408 = vsub.f32 %v1967, %v2248
      %v2409 = vsub.f32 %v1968, %v2250
      %v2410 = vsub.f32 %v1969, %v2252
      %v2411 = vsub.f32 %v1970, %v2254
      %v2412 = vsub.f32 %v1971, %v2256
      %v2413 = vsub.f32 %v1972, %v2258
      %v2414 = vsub.f32 %v1973, %v2260
      %v2415 = vsub.f32 %v1974, %v2262
      %v2416 = vsub.f32 %v1975, %v2264
      %v2417 = vsub.f32 %v1976, %v2266
      %v2418 = vsub.f32 %v1977, %v2268
      %v2419 = vsub.f32 %v1978, %v2270
      %v2420 = vsub.f32 %v1979, %v2272
      %v2421 = vsub.f32 %v1980, %v2274
      %v2422 = vsub.f32 %v1981, %v2276
      %v2423 = vsub.f32 %v1982, %v2278
      %v2424 = vsub.f32 %v1983, %v2280
      %v2425 = vsub.f32 %v1984, %v2282
      %v2426 = vsub.f32 %v1985, %v2284
      %v2427 = vsub.f32 %v1986, %v2286
      %v2428 = vsub.f32 %v1987, %v2288
      %v2429 = vsub.f32 %v1988, %v2290
      %v2430 = vsub.f32 %v1989, %v2292
      %v2431 = vsub.f32 %v1990, %v2294
      %v2432 = vsub.f32 %v1991, %v2296
      %v2433 = vsub.f32 %v1992, %v2298
      %v2434 = vsub.f32 %v1993, %v2300
      %v2435 = vsub.f32 %v1994, %v2302
      %v2436 = vsub.f32 %v1995, %v2304
      %v2437 = vsub.f32 %v1996, %v2306
      %v2438 = vsub.f32 %v1997, %v2308
      %v2439 = vsub.f32 %v1998, %v2310
      %v2440 = vsub.f32 %v1999, %v2312
      %v2441 = vsub.f32 %v2000, %v2314
      %v2442 = vsub.f32 %v2001, %v2316
      %2444 = vset.pattern.permute.xlu0 0
      %2445 = vperm.xlu0 %2444, %v2002
      %v2446 = vpop.permute.xlu0 %2445
      %2449 = vset.pattern.permute.xlu0 0
      %2450 = vperm.xlu0 %2449, %v2003
      %v2451 = vpop.permute.xlu0 %2450
      %2454 = vset.pattern.permute.xlu0 0
      %2455 = vperm.xlu0 %2454, %v2004
      %v2456 = vpop.permute.xlu0 %2455
      %2459 = vset.pattern.permute.xlu0 0
      %2460 = vperm.xlu0 %2459, %v2005
      %v2461 = vpop.permute.xlu0 %2460
      %2464 = vset.pattern.permute.xlu0 0
      %2465 = vperm.xlu0 %2464, %v2006
      %v2466 = vpop.permute.xlu0 %2465
      %2469 = vset.pattern.permute.xlu0 0
      %2470 = vperm.xlu0 %2469, %v2007
      %v2471 = vpop.permute.xlu0 %2470
      %2474 = vset.pattern.permute.xlu0 0
      %2475 = vperm.xlu0 %2474, %v2008
      %v2476 = vpop.permute.xlu0 %2475
      %2479 = vset.pattern.permute.xlu0 0
      %2480 = vperm.xlu0 %2479, %v2009
      %v2481 = vpop.permute.xlu0 %2480
      %2484 = vset.pattern.permute.xlu0 0
      %2485 = vperm.xlu0 %2484, %v2010
      %v2486 = vpop.permute.xlu0 %2485
      %2489 = vset.pattern.permute.xlu0 0
      %2490 = vperm.xlu0 %2489, %v2011
      %v2491 = vpop.permute.xlu0 %2490
      %2494 = vset.pattern.permute.xlu0 0
      %2495 = vperm.xlu0 %2494, %v2012
      %v2496 = vpop.permute.xlu0 %2495
      %2499 = vset.pattern.permute.xlu0 0
      %2500 = vperm.xlu0 %2499, %v2013
      %v2501 = vpop.permute.xlu0 %2500
      %2504 = vset.pattern.permute.xlu0 0
      %2505 = vperm.xlu0 %2504, %v2014
      %v2506 = vpop.permute.xlu0 %2505
      %2509 = vset.pattern.permute.xlu0 0
      %2510 = vperm.xlu0 %2509, %v2015
      %v2511 = vpop.permute.xlu0 %2510
      %2514 = vset.pattern.permute.xlu0 0
      %2515 = vperm.xlu0 %2514, %v2016
      %v2516 = vpop.permute.xlu0 %2515
      %2519 = vset.pattern.permute.xlu0 0
      %2520 = vperm.xlu0 %2519, %v2017
      %v2521 = vpop.permute.xlu0 %2520
      %2524 = vset.pattern.permute.xlu0 0
      %2525 = vperm.xlu0 %2524, %v2018
      %v2526 = vpop.permute.xlu0 %2525
      %2529 = vset.pattern.permute.xlu0 0
      %2530 = vperm.xlu0 %2529, %v2019
      %v2531 = vpop.permute.xlu0 %2530
      %2534 = vset.pattern.permute.xlu0 0
      %2535 = vperm.xlu0 %2534, %v2020
      %v2536 = vpop.permute.xlu0 %2535
      %2539 = vset.pattern.permute.xlu0 0
      %2540 = vperm.xlu0 %2539, %v2021
      %v2541 = vpop.permute.xlu0 %2540
      %2544 = vset.pattern.permute.xlu0 0
      %2545 = vperm.xlu0 %2544, %v2022
      %v2546 = vpop.permute.xlu0 %2545
      %2549 = vset.pattern.permute.xlu0 0
      %2550 = vperm.xlu0 %2549, %v2023
      %v2551 = vpop.permute.xlu0 %2550
      %2554 = vset.pattern.permute.xlu0 0
      %2555 = vperm.xlu0 %2554, %v2024
      %v2556 = vpop.permute.xlu0 %2555
      %2559 = vset.pattern.permute.xlu0 0
      %2560 = vperm.xlu0 %2559, %v2025
      %v2561 = vpop.permute.xlu0 %2560
      %2564 = vset.pattern.permute.xlu0 0
      %2565 = vperm.xlu0 %2564, %v2026
      %v2566 = vpop.permute.xlu0 %2565
      %2569 = vset.pattern.permute.xlu0 0
      %2570 = vperm.xlu0 %2569, %v2027
      %v2571 = vpop.permute.xlu0 %2570
      %2574 = vset.pattern.permute.xlu0 0
      %2575 = vperm.xlu0 %2574, %v2028
      %v2576 = vpop.permute.xlu0 %2575
      %2579 = vset.pattern.permute.xlu0 0
      %2580 = vperm.xlu0 %2579, %v2029
      %v2581 = vpop.permute.xlu0 %2580
      %2584 = vset.pattern.permute.xlu0 0
      %2585 = vperm.xlu0 %2584, %v2030
      %v2586 = vpop.permute.xlu0 %2585
      %2589 = vset.pattern.permute.xlu0 0
      %2590 = vperm.xlu0 %2589, %v2031
      %v2591 = vpop.permute.xlu0 %2590
      %2594 = vset.pattern.permute.xlu0 0
      %2595 = vperm.xlu0 %2594, %v2032
      %v2596 = vpop.permute.xlu0 %2595
      %2599 = vset.pattern.permute.xlu0 0
      %2600 = vperm.xlu0 %2599, %v2033
      %v2601 = vpop.permute.xlu0 %2600
      %2604 = vset.pattern.permute.xlu0 0
      %2605 = vperm.xlu0 %2604, %v2034
      %v2606 = vpop.permute.xlu0 %2605
      %2609 = vset.pattern.permute.xlu0 0
      %2610 = vperm.xlu0 %2609, %v2035
      %v2611 = vpop.permute.xlu0 %2610
      %2614 = vset.pattern.permute.xlu0 0
      %2615 = vperm.xlu0 %2614, %v2036
      %v2616 = vpop.permute.xlu0 %2615
      %2619 = vset.pattern.permute.xlu0 0
      %2620 = vperm.xlu0 %2619, %v2037
      %v2621 = vpop.permute.xlu0 %2620
      %2624 = vset.pattern.permute.xlu0 0
      %2625 = vperm.xlu0 %2624, %v2038
      %v2626 = vpop.permute.xlu0 %2625
      %2629 = vset.pattern.permute.xlu0 0
      %2630 = vperm.xlu0 %2629, %v2039
      %v2631 = vpop.permute.xlu0 %2630
      %2634 = vset.pattern.permute.xlu0 0
      %2635 = vperm.xlu0 %2634, %v2040
      %v2636 = vpop.permute.xlu0 %2635
      %2639 = vset.pattern.permute.xlu0 0
      %2640 = vperm.xlu0 %2639, %v2041
      %v2641 = vpop.permute.xlu0 %2640
      %2644 = vset.pattern.permute.xlu0 0
      %2645 = vperm.xlu0 %2644, %v2042
      %v2646 = vpop.permute.xlu0 %2645
      %2649 = vset.pattern.permute.xlu0 0
      %2650 = vperm.xlu0 %2649, %v2043
      %v2651 = vpop.permute.xlu0 %2650
      %2654 = vset.pattern.permute.xlu0 0
      %2655 = vperm.xlu0 %2654, %v2044
      %v2656 = vpop.permute.xlu0 %2655
      %2659 = vset.pattern.permute.xlu0 0
      %2660 = vperm.xlu0 %2659, %v2045
      %v2661 = vpop.permute.xlu0 %2660
      %2664 = vset.pattern.permute.xlu0 0
      %2665 = vperm.xlu0 %2664, %v2046
      %v2666 = vpop.permute.xlu0 %2665
      %2669 = vset.pattern.permute.xlu0 0
      %2670 = vperm.xlu0 %2669, %v2047
      %v2671 = vpop.permute.xlu0 %2670
      %2674 = vset.pattern.permute.xlu0 0
      %2675 = vperm.xlu0 %2674, %v2048
      %v2676 = vpop.permute.xlu0 %2675
      %2679 = vset.pattern.permute.xlu0 0
      %2680 = vperm.xlu0 %2679, %v2049
      %v2681 = vpop.permute.xlu0 %2680
      %2684 = vset.pattern.permute.xlu0 0
      %2685 = vperm.xlu0 %2684, %v2050
      %v2686 = vpop.permute.xlu0 %2685
      %2689 = vset.pattern.permute.xlu0 0
      %2690 = vperm.xlu0 %2689, %v2051
      %v2691 = vpop.permute.xlu0 %2690
      %2694 = vset.pattern.permute.xlu0 0
      %2695 = vperm.xlu0 %2694, %v2052
      %v2696 = vpop.permute.xlu0 %2695
      %2699 = vset.pattern.permute.xlu0 0
      %2700 = vperm.xlu0 %2699, %v2053
      %v2701 = vpop.permute.xlu0 %2700
      %2704 = vset.pattern.permute.xlu0 0
      %2705 = vperm.xlu0 %2704, %v2054
      %v2706 = vpop.permute.xlu0 %2705
      %2709 = vset.pattern.permute.xlu0 0
      %2710 = vperm.xlu0 %2709, %v2055
      %v2711 = vpop.permute.xlu0 %2710
      %2714 = vset.pattern.permute.xlu0 0
      %2715 = vperm.xlu0 %2714, %v2056
      %v2716 = vpop.permute.xlu0 %2715
      %2719 = vset.pattern.permute.xlu0 0
      %2720 = vperm.xlu0 %2719, %v2057
      %v2721 = vpop.permute.xlu0 %2720
      %2724 = vset.pattern.permute.xlu0 0
      %2725 = vperm.xlu0 %2724, %v2058
      %v2726 = vpop.permute.xlu0 %2725
      %2729 = vset.pattern.permute.xlu0 0
      %2730 = vperm.xlu0 %2729, %v2059
      %v2731 = vpop.permute.xlu0 %2730
      %2734 = vset.pattern.permute.xlu0 0
      %2735 = vperm.xlu0 %2734, %v2060
      %v2736 = vpop.permute.xlu0 %2735
      %2739 = vset.pattern.permute.xlu0 0
      %2740 = vperm.xlu0 %2739, %v2061
      %v2741 = vpop.permute.xlu0 %2740
      %2744 = vset.pattern.permute.xlu0 0
      %2745 = vperm.xlu0 %2744, %v2062
      %v2746 = vpop.permute.xlu0 %2745
      %2749 = vset.pattern.permute.xlu0 0
      %2750 = vperm.xlu0 %2749, %v2063
      %v2751 = vpop.permute.xlu0 %2750
      %2754 = vset.pattern.permute.xlu0 0
      %2755 = vperm.xlu0 %2754, %v2064
      %v2756 = vpop.permute.xlu0 %2755
      %v2758 = vmul.f32 %v174, %v2446
      %v2759 = vmul.f32 %v175, %v2446
      %v2760 = vmul.f32 %v176, %v2451
      %v2761 = vmul.f32 %v177, %v2451
      %v2762 = vmul.f32 %v178, %v2456
      %v2763 = vmul.f32 %v179, %v2456
      %v2764 = vmul.f32 %v180, %v2461
      %v2765 = vmul.f32 %v181, %v2461
      %v2766 = vmul.f32 %v182, %v2466
      %v2767 = vmul.f32 %v183, %v2466
      %v2768 = vmul.f32 %v184, %v2471
      %v2769 = vmul.f32 %v185, %v2471
      %v2770 = vmul.f32 %v186, %v2476
      %v2771 = vmul.f32 %v187, %v2476
      %v2772 = vmul.f32 %v188, %v2481
      %v2773 = vmul.f32 %v189, %v2481
      %v2774 = vmul.f32 %v190, %v2486
      %v2775 = vmul.f32 %v191, %v2486
      %v2776 = vmul.f32 %v192, %v2491
      %v2777 = vmul.f32 %v193, %v2491
      %v2778 = vmul.f32 %v194, %v2496
      %v2779 = vmul.f32 %v195, %v2496
      %v2780 = vmul.f32 %v196, %v2501
      %v2781 = vmul.f32 %v197, %v2501
      %v2782 = vmul.f32 %v198, %v2506
      %v2783 = vmul.f32 %v199, %v2506
      %v2784 = vmul.f32 %v200, %v2511
      %v2785 = vmul.f32 %v201, %v2511
      %v2786 = vmul.f32 %v202, %v2516
      %v2787 = vmul.f32 %v203, %v2516
      %v2788 = vmul.f32 %v204, %v2521
      %v2789 = vmul.f32 %v205, %v2521
      %v2790 = vmul.f32 %v206, %v2526
      %v2791 = vmul.f32 %v207, %v2526
      %v2792 = vmul.f32 %v208, %v2531
      %v2793 = vmul.f32 %v209, %v2531
      %v2794 = vmul.f32 %v210, %v2536
      %v2795 = vmul.f32 %v211, %v2536
      %v2796 = vmul.f32 %v212, %v2541
      %v2797 = vmul.f32 %v213, %v2541
      %v2798 = vmul.f32 %v214, %v2546
      %v2799 = vmul.f32 %v215, %v2546
      %v2800 = vmul.f32 %v216, %v2551
      %v2801 = vmul.f32 %v217, %v2551
      %v2802 = vmul.f32 %v218, %v2556
      %v2803 = vmul.f32 %v219, %v2556
      %v2804 = vmul.f32 %v220, %v2561
      %v2805 = vmul.f32 %v221, %v2561
      %v2806 = vmul.f32 %v222, %v2566
      %v2807 = vmul.f32 %v223, %v2566
      %v2808 = vmul.f32 %v224, %v2571
      %v2809 = vmul.f32 %v225, %v2571
      %v2810 = vmul.f32 %v226, %v2576
      %v2811 = vmul.f32 %v227, %v2576
      %v2812 = vmul.f32 %v228, %v2581
      %v2813 = vmul.f32 %v229, %v2581
      %v2814 = vmul.f32 %v230, %v2586
      %v2815 = vmul.f32 %v231, %v2586
      %v2816 = vmul.f32 %v232, %v2591
      %v2817 = vmul.f32 %v233, %v2591
      %v2818 = vmul.f32 %v234, %v2596
      %v2819 = vmul.f32 %v235, %v2596
      %v2820 = vmul.f32 %v236, %v2601
      %v2821 = vmul.f32 %v237, %v2601
      %v2822 = vmul.f32 %v238, %v2606
      %v2823 = vmul.f32 %v239, %v2606
      %v2824 = vmul.f32 %v240, %v2611
      %v2825 = vmul.f32 %v241, %v2611
      %v2826 = vmul.f32 %v242, %v2616
      %v2827 = vmul.f32 %v243, %v2616
      %v2828 = vmul.f32 %v244, %v2621
      %v2829 = vmul.f32 %v245, %v2621
      %v2830 = vmul.f32 %v246, %v2626
      %v2831 = vmul.f32 %v247, %v2626
      %v2832 = vmul.f32 %v248, %v2631
      %v2833 = vmul.f32 %v249, %v2631
      %v2834 = vmul.f32 %v250, %v2636
      %v2835 = vmul.f32 %v251, %v2636
      %v2836 = vmul.f32 %v252, %v2641
      %v2837 = vmul.f32 %v253, %v2641
      %v2838 = vmul.f32 %v254, %v2646
      %v2839 = vmul.f32 %v255, %v2646
      %v2840 = vmul.f32 %v256, %v2651
      %v2841 = vmul.f32 %v257, %v2651
      %v2842 = vmul.f32 %v258, %v2656
      %v2843 = vmul.f32 %v259, %v2656
      %v2844 = vmul.f32 %v260, %v2661
      %v2845 = vmul.f32 %v261, %v2661
      %v2846 = vmul.f32 %v262, %v2666
      %v2847 = vmul.f32 %v263, %v2666
      %v2848 = vmul.f32 %v264, %v2671
      %v2849 = vmul.f32 %v265, %v2671
      %v2850 = vmul.f32 %v266, %v2676
      %v2851 = vmul.f32 %v267, %v2676
      %v2852 = vmul.f32 %v268, %v2681
      %v2853 = vmul.f32 %v269, %v2681
      %v2854 = vmul.f32 %v270, %v2686
      %v2855 = vmul.f32 %v271, %v2686
      %v2856 = vmul.f32 %v272, %v2691
      %v2857 = vmul.f32 %v273, %v2691
      %v2858 = vmul.f32 %v274, %v2696
      %v2859 = vmul.f32 %v275, %v2696
      %v2860 = vmul.f32 %v276, %v2701
      %v2861 = vmul.f32 %v277, %v2701
      %v2862 = vmul.f32 %v278, %v2706
      %v2863 = vmul.f32 %v279, %v2706
      %v2864 = vmul.f32 %v280, %v2711
      %v2865 = vmul.f32 %v281, %v2711
      %v2866 = vmul.f32 %v282, %v2716
      %v2867 = vmul.f32 %v283, %v2716
      %v2868 = vmul.f32 %v284, %v2721
      %v2869 = vmul.f32 %v285, %v2721
      %v2870 = vmul.f32 %v286, %v2726
      %v2871 = vmul.f32 %v287, %v2726
      %v2872 = vmul.f32 %v288, %v2731
      %v2873 = vmul.f32 %v289, %v2731
      %v2874 = vmul.f32 %v290, %v2736
      %v2875 = vmul.f32 %v291, %v2736
      %v2876 = vmul.f32 %v292, %v2741
      %v2877 = vmul.f32 %v293, %v2741
      %v2878 = vmul.f32 %v294, %v2746
      %v2879 = vmul.f32 %v295, %v2746
      %v2880 = vmul.f32 %v296, %v2751
      %v2881 = vmul.f32 %v297, %v2751
      %v2882 = vmul.f32 %v298, %v2756
      %v2883 = vmul.f32 %v299, %v2756
      %2885 = vset.pattern.permute.xlu0 1
      %2886 = vperm.xlu0 %2885, %v2380
      %v2887 = vpop.permute.xlu0 %2886
      %2890 = vset.pattern.permute.xlu0 1
      %2891 = vperm.xlu0 %2890, %v2381
      %v2892 = vpop.permute.xlu0 %2891
      %2895 = vset.pattern.permute.xlu0 1
      %2896 = vperm.xlu0 %2895, %v2382
      %v2897 = vpop.permute.xlu0 %2896
      %2900 = vset.pattern.permute.xlu0 1
      %2901 = vperm.xlu0 %2900, %v2383
      %v2902 = vpop.permute.xlu0 %2901
      %2905 = vset.pattern.permute.xlu0 1
      %2906 = vperm.xlu0 %2905, %v2384
      %v2907 = vpop.permute.xlu0 %2906
      %2910 = vset.pattern.permute.xlu0 1
      %2911 = vperm.xlu0 %2910, %v2385
      %v2912 = vpop.permute.xlu0 %2911
      %2915 = vset.pattern.permute.xlu0 1
      %2916 = vperm.xlu0 %2915, %v2386
      %v2917 = vpop.permute.xlu0 %2916
      %2920 = vset.pattern.permute.xlu0 1
      %2921 = vperm.xlu0 %2920, %v2387
      %v2922 = vpop.permute.xlu0 %2921
      %2925 = vset.pattern.permute.xlu0 1
      %2926 = vperm.xlu0 %2925, %v2388
      %v2927 = vpop.permute.xlu0 %2926
      %2930 = vset.pattern.permute.xlu0 1
      %2931 = vperm.xlu0 %2930, %v2389
      %v2932 = vpop.permute.xlu0 %2931
      %2935 = vset.pattern.permute.xlu0 1
      %2936 = vperm.xlu0 %2935, %v2390
      %v2937 = vpop.permute.xlu0 %2936
      %2940 = vset.pattern.permute.xlu0 1
      %2941 = vperm.xlu0 %2940, %v2391
      %v2942 = vpop.permute.xlu0 %2941
      %2945 = vset.pattern.permute.xlu0 1
      %2946 = vperm.xlu0 %2945, %v2392
      %v2947 = vpop.permute.xlu0 %2946
      %2950 = vset.pattern.permute.xlu0 1
      %2951 = vperm.xlu0 %2950, %v2393
      %v2952 = vpop.permute.xlu0 %2951
      %2955 = vset.pattern.permute.xlu0 1
      %2956 = vperm.xlu0 %2955, %v2394
      %v2957 = vpop.permute.xlu0 %2956
      %2960 = vset.pattern.permute.xlu0 1
      %2961 = vperm.xlu0 %2960, %v2395
      %v2962 = vpop.permute.xlu0 %2961
      %2965 = vset.pattern.permute.xlu0 1
      %2966 = vperm.xlu0 %2965, %v2396
      %v2967 = vpop.permute.xlu0 %2966
      %2970 = vset.pattern.permute.xlu0 1
      %2971 = vperm.xlu0 %2970, %v2397
      %v2972 = vpop.permute.xlu0 %2971
      %2975 = vset.pattern.permute.xlu0 1
      %2976 = vperm.xlu0 %2975, %v2398
      %v2977 = vpop.permute.xlu0 %2976
      %2980 = vset.pattern.permute.xlu0 1
      %2981 = vperm.xlu0 %2980, %v2399
      %v2982 = vpop.permute.xlu0 %2981
      %2985 = vset.pattern.permute.xlu0 1
      %2986 = vperm.xlu0 %2985, %v2400
      %v2987 = vpop.permute.xlu0 %2986
      %2990 = vset.pattern.permute.xlu0 1
      %2991 = vperm.xlu0 %2990, %v2401
      %v2992 = vpop.permute.xlu0 %2991
      %2995 = vset.pattern.permute.xlu0 1
      %2996 = vperm.xlu0 %2995, %v2402
      %v2997 = vpop.permute.xlu0 %2996
      %3000 = vset.pattern.permute.xlu0 1
      %3001 = vperm.xlu0 %3000, %v2403
      %v3002 = vpop.permute.xlu0 %3001
      %3005 = vset.pattern.permute.xlu0 1
      %3006 = vperm.xlu0 %3005, %v2404
      %v3007 = vpop.permute.xlu0 %3006
      %3010 = vset.pattern.permute.xlu0 1
      %3011 = vperm.xlu0 %3010, %v2405
      %v3012 = vpop.permute.xlu0 %3011
      %3015 = vset.pattern.permute.xlu0 1
      %3016 = vperm.xlu0 %3015, %v2406
      %v3017 = vpop.permute.xlu0 %3016
      %3020 = vset.pattern.permute.xlu0 1
      %3021 = vperm.xlu0 %3020, %v2407
      %v3022 = vpop.permute.xlu0 %3021
      %3025 = vset.pattern.permute.xlu0 1
      %3026 = vperm.xlu0 %3025, %v2408
      %v3027 = vpop.permute.xlu0 %3026
      %3030 = vset.pattern.permute.xlu0 1
      %3031 = vperm.xlu0 %3030, %v2409
      %v3032 = vpop.permute.xlu0 %3031
      %3035 = vset.pattern.permute.xlu0 1
      %3036 = vperm.xlu0 %3035, %v2410
      %v3037 = vpop.permute.xlu0 %3036
      %3040 = vset.pattern.permute.xlu0 1
      %3041 = vperm.xlu0 %3040, %v2411
      %v3042 = vpop.permute.xlu0 %3041
      %3045 = vset.pattern.permute.xlu0 1
      %3046 = vperm.xlu0 %3045, %v2412
      %v3047 = vpop.permute.xlu0 %3046
      %3050 = vset.pattern.permute.xlu0 1
      %3051 = vperm.xlu0 %3050, %v2413
      %v3052 = vpop.permute.xlu0 %3051
      %3055 = vset.pattern.permute.xlu0 1
      %3056 = vperm.xlu0 %3055, %v2414
      %v3057 = vpop.permute.xlu0 %3056
      %3060 = vset.pattern.permute.xlu0 1
      %3061 = vperm.xlu0 %3060, %v2415
      %v3062 = vpop.permute.xlu0 %3061
      %3065 = vset.pattern.permute.xlu0 1
      %3066 = vperm.xlu0 %3065, %v2416
      %v3067 = vpop.permute.xlu0 %3066
      %3070 = vset.pattern.permute.xlu0 1
      %3071 = vperm.xlu0 %3070, %v2417
      %v3072 = vpop.permute.xlu0 %3071
      %3075 = vset.pattern.permute.xlu0 1
      %3076 = vperm.xlu0 %3075, %v2418
      %v3077 = vpop.permute.xlu0 %3076
      %3080 = vset.pattern.permute.xlu0 1
      %3081 = vperm.xlu0 %3080, %v2419
      %v3082 = vpop.permute.xlu0 %3081
      %3085 = vset.pattern.permute.xlu0 1
      %3086 = vperm.xlu0 %3085, %v2420
      %v3087 = vpop.permute.xlu0 %3086
      %3090 = vset.pattern.permute.xlu0 1
      %3091 = vperm.xlu0 %3090, %v2421
      %v3092 = vpop.permute.xlu0 %3091
      %3095 = vset.pattern.permute.xlu0 1
      %3096 = vperm.xlu0 %3095, %v2422
      %v3097 = vpop.permute.xlu0 %3096
      %3100 = vset.pattern.permute.xlu0 1
      %3101 = vperm.xlu0 %3100, %v2423
      %v3102 = vpop.permute.xlu0 %3101
      %3105 = vset.pattern.permute.xlu0 1
      %3106 = vperm.xlu0 %3105, %v2424
      %v3107 = vpop.permute.xlu0 %3106
      %3110 = vset.pattern.permute.xlu0 1
      %3111 = vperm.xlu0 %3110, %v2425
      %v3112 = vpop.permute.xlu0 %3111
      %3115 = vset.pattern.permute.xlu0 1
      %3116 = vperm.xlu0 %3115, %v2426
      %v3117 = vpop.permute.xlu0 %3116
      %3120 = vset.pattern.permute.xlu0 1
      %3121 = vperm.xlu0 %3120, %v2427
      %v3122 = vpop.permute.xlu0 %3121
      %3125 = vset.pattern.permute.xlu0 1
      %3126 = vperm.xlu0 %3125, %v2428
      %v3127 = vpop.permute.xlu0 %3126
      %3130 = vset.pattern.permute.xlu0 1
      %3131 = vperm.xlu0 %3130, %v2429
      %v3132 = vpop.permute.xlu0 %3131
      %3135 = vset.pattern.permute.xlu0 1
      %3136 = vperm.xlu0 %3135, %v2430
      %v3137 = vpop.permute.xlu0 %3136
      %3140 = vset.pattern.permute.xlu0 1
      %3141 = vperm.xlu0 %3140, %v2431
      %v3142 = vpop.permute.xlu0 %3141
      %3145 = vset.pattern.permute.xlu0 1
      %3146 = vperm.xlu0 %3145, %v2432
      %v3147 = vpop.permute.xlu0 %3146
      %3150 = vset.pattern.permute.xlu0 1
      %3151 = vperm.xlu0 %3150, %v2433
      %v3152 = vpop.permute.xlu0 %3151
      %3155 = vset.pattern.permute.xlu0 1
      %3156 = vperm.xlu0 %3155, %v2434
      %v3157 = vpop.permute.xlu0 %3156
      %3160 = vset.pattern.permute.xlu0 1
      %3161 = vperm.xlu0 %3160, %v2435
      %v3162 = vpop.permute.xlu0 %3161
      %3165 = vset.pattern.permute.xlu0 1
      %3166 = vperm.xlu0 %3165, %v2436
      %v3167 = vpop.permute.xlu0 %3166
      %3170 = vset.pattern.permute.xlu0 1
      %3171 = vperm.xlu0 %3170, %v2437
      %v3172 = vpop.permute.xlu0 %3171
      %3175 = vset.pattern.permute.xlu0 1
      %3176 = vperm.xlu0 %3175, %v2438
      %v3177 = vpop.permute.xlu0 %3176
      %3180 = vset.pattern.permute.xlu0 1
      %3181 = vperm.xlu0 %3180, %v2439
      %v3182 = vpop.permute.xlu0 %3181
      %3185 = vset.pattern.permute.xlu0 1
      %3186 = vperm.xlu0 %3185, %v2440
      %v3187 = vpop.permute.xlu0 %3186
      %3190 = vset.pattern.permute.xlu0 1
      %3191 = vperm.xlu0 %3190, %v2441
      %v3192 = vpop.permute.xlu0 %3191
      %3195 = vset.pattern.permute.xlu0 1
      %3196 = vperm.xlu0 %3195, %v2442
      %v3197 = vpop.permute.xlu0 %3196
      %v3199 = vadd.f32 %v2758, %v2887
      %v3200 = vadd.f32 %v2759, %v2887
      %v3201 = vadd.f32 %v2760, %v2892
      %v3202 = vadd.f32 %v2761, %v2892
      %v3203 = vadd.f32 %v2762, %v2897
      %v3204 = vadd.f32 %v2763, %v2897
      %v3205 = vadd.f32 %v2764, %v2902
      %v3206 = vadd.f32 %v2765, %v2902
      %v3207 = vadd.f32 %v2766, %v2907
      %v3208 = vadd.f32 %v2767, %v2907
      %v3209 = vadd.f32 %v2768, %v2912
      %v3210 = vadd.f32 %v2769, %v2912
      %v3211 = vadd.f32 %v2770, %v2917
      %v3212 = vadd.f32 %v2771, %v2917
      %v3213 = vadd.f32 %v2772, %v2922
      %v3214 = vadd.f32 %v2773, %v2922
      %v3215 = vadd.f32 %v2774, %v2927
      %v3216 = vadd.f32 %v2775, %v2927
      %v3217 = vadd.f32 %v2776, %v2932
      %v3218 = vadd.f32 %v2777, %v2932
      %v3219 = vadd.f32 %v2778, %v2937
      %v3220 = vadd.f32 %v2779, %v2937
      %v3221 = vadd.f32 %v2780, %v2942
      %v3222 = vadd.f32 %v2781, %v2942
      %v3223 = vadd.f32 %v2782, %v2947
      %v3224 = vadd.f32 %v2783, %v2947
      %v3225 = vadd.f32 %v2784, %v2952
      %v3226 = vadd.f32 %v2785, %v2952
      %v3227 = vadd.f32 %v2786, %v2957
      %v3228 = vadd.f32 %v2787, %v2957
      %v3229 = vadd.f32 %v2788, %v2962
      %v3230 = vadd.f32 %v2789, %v2962
      %v3231 = vadd.f32 %v2790, %v2967
      %v3232 = vadd.f32 %v2791, %v2967
      %v3233 = vadd.f32 %v2792, %v2972
      %v3234 = vadd.f32 %v2793, %v2972
      %v3235 = vadd.f32 %v2794, %v2977
      %v3236 = vadd.f32 %v2795, %v2977
      %v3237 = vadd.f32 %v2796, %v2982
      %v3238 = vadd.f32 %v2797, %v2982
      %v3239 = vadd.f32 %v2798, %v2987
      %v3240 = vadd.f32 %v2799, %v2987
      %v3241 = vadd.f32 %v2800, %v2992
      %v3242 = vadd.f32 %v2801, %v2992
      %v3243 = vadd.f32 %v2802, %v2997
      %v3244 = vadd.f32 %v2803, %v2997
      %v3245 = vadd.f32 %v2804, %v3002
      %v3246 = vadd.f32 %v2805, %v3002
      %v3247 = vadd.f32 %v2806, %v3007
      %v3248 = vadd.f32 %v2807, %v3007
      %v3249 = vadd.f32 %v2808, %v3012
      %v3250 = vadd.f32 %v2809, %v3012
      %v3251 = vadd.f32 %v2810, %v3017
      %v3252 = vadd.f32 %v2811, %v3017
      %v3253 = vadd.f32 %v2812, %v3022
      %v3254 = vadd.f32 %v2813, %v3022
      %v3255 = vadd.f32 %v2814, %v3027
      %v3256 = vadd.f32 %v2815, %v3027
      %v3257 = vadd.f32 %v2816, %v3032
      %v3258 = vadd.f32 %v2817, %v3032
      %v3259 = vadd.f32 %v2818, %v3037
      %v3260 = vadd.f32 %v2819, %v3037
      %v3261 = vadd.f32 %v2820, %v3042
      %v3262 = vadd.f32 %v2821, %v3042
      %v3263 = vadd.f32 %v2822, %v3047
      %v3264 = vadd.f32 %v2823, %v3047
      %v3265 = vadd.f32 %v2824, %v3052
      %v3266 = vadd.f32 %v2825, %v3052
      %v3267 = vadd.f32 %v2826, %v3057
      %v3268 = vadd.f32 %v2827, %v3057
      %v3269 = vadd.f32 %v2828, %v3062
      %v3270 = vadd.f32 %v2829, %v3062
      %v3271 = vadd.f32 %v2830, %v3067
      %v3272 = vadd.f32 %v2831, %v3067
      %v3273 = vadd.f32 %v2832, %v3072
      %v3274 = vadd.f32 %v2833, %v3072
      %v3275 = vadd.f32 %v2834, %v3077
      %v3276 = vadd.f32 %v2835, %v3077
      %v3277 = vadd.f32 %v2836, %v3082
      %v3278 = vadd.f32 %v2837, %v3082
      %v3279 = vadd.f32 %v2838, %v3087
      %v3280 = vadd.f32 %v2839, %v3087
      %v3281 = vadd.f32 %v2840, %v3092
      %v3282 = vadd.f32 %v2841, %v3092
      %v3283 = vadd.f32 %v2842, %v3097
      %v3284 = vadd.f32 %v2843, %v3097
      %v3285 = vadd.f32 %v2844, %v3102
      %v3286 = vadd.f32 %v2845, %v3102
      %v3287 = vadd.f32 %v2846, %v3107
      %v3288 = vadd.f32 %v2847, %v3107
      %v3289 = vadd.f32 %v2848, %v3112
      %v3290 = vadd.f32 %v2849, %v3112
      %v3291 = vadd.f32 %v2850, %v3117
      %v3292 = vadd.f32 %v2851, %v3117
      %v3293 = vadd.f32 %v2852, %v3122
      %v3294 = vadd.f32 %v2853, %v3122
      %v3295 = vadd.f32 %v2854, %v3127
      %v3296 = vadd.f32 %v2855, %v3127
      %v3297 = vadd.f32 %v2856, %v3132
      %v3298 = vadd.f32 %v2857, %v3132
      %v3299 = vadd.f32 %v2858, %v3137
      %v3300 = vadd.f32 %v2859, %v3137
      %v3301 = vadd.f32 %v2860, %v3142
      %v3302 = vadd.f32 %v2861, %v3142
      %v3303 = vadd.f32 %v2862, %v3147
      %v3304 = vadd.f32 %v2863, %v3147
      %v3305 = vadd.f32 %v2864, %v3152
      %v3306 = vadd.f32 %v2865, %v3152
      %v3307 = vadd.f32 %v2866, %v3157
      %v3308 = vadd.f32 %v2867, %v3157
      %v3309 = vadd.f32 %v2868, %v3162
      %v3310 = vadd.f32 %v2869, %v3162
      %v3311 = vadd.f32 %v2870, %v3167
      %v3312 = vadd.f32 %v2871, %v3167
      %v3313 = vadd.f32 %v2872, %v3172
      %v3314 = vadd.f32 %v2873, %v3172
      %v3315 = vadd.f32 %v2874, %v3177
      %v3316 = vadd.f32 %v2875, %v3177
      %v3317 = vadd.f32 %v2876, %v3182
      %v3318 = vadd.f32 %v2877, %v3182
      %v3319 = vadd.f32 %v2878, %v3187
      %v3320 = vadd.f32 %v2879, %v3187
      %v3321 = vadd.f32 %v2880, %v3192
      %v3322 = vadd.f32 %v2881, %v3192
      %v3323 = vadd.f32 %v2882, %v3197
      %v3324 = vadd.f32 %v2883, %v3197
      %v3325 = vmax.f32 %v3199, 0.0
      %v3326 = vmax.f32 %v3200, 0.0
      %v3327 = vmax.f32 %v3201, 0.0
      %v3328 = vmax.f32 %v3202, 0.0
      %v3329 = vmax.f32 %v3203, 0.0
      %v3330 = vmax.f32 %v3204, 0.0
      %v3331 = vmax.f32 %v3205, 0.0
      %v3332 = vmax.f32 %v3206, 0.0
      %v3333 = vmax.f32 %v3207, 0.0
      %v3334 = vmax.f32 %v3208, 0.0
      %v3335 = vmax.f32 %v3209, 0.0
      %v3336 = vmax.f32 %v3210, 0.0
      %v3337 = vmax.f32 %v3211, 0.0
      %v3338 = vmax.f32 %v3212, 0.0
      %v3339 = vmax.f32 %v3213, 0.0
      %v3340 = vmax.f32 %v3214, 0.0
      %v3341 = vmax.f32 %v3215, 0.0
      %v3342 = vmax.f32 %v3216, 0.0
      %v3343 = vmax.f32 %v3217, 0.0
      %v3344 = vmax.f32 %v3218, 0.0
      %v3345 = vmax.f32 %v3219, 0.0
      %v3346 = vmax.f32 %v3220, 0.0
      %v3347 = vmax.f32 %v3221, 0.0
      %v3348 = vmax.f32 %v3222, 0.0
      %v3349 = vmax.f32 %v3223, 0.0
      %v3350 = vmax.f32 %v3224, 0.0
      %v3351 = vmax.f32 %v3225, 0.0
      %v3352 = vmax.f32 %v3226, 0.0
      %v3353 = vmax.f32 %v3227, 0.0
      %v3354 = vmax.f32 %v3228, 0.0
      %v3355 = vmax.f32 %v3229, 0.0
      %v3356 = vmax.f32 %v3230, 0.0
      %v3357 = vmax.f32 %v3231, 0.0
      %v3358 = vmax.f32 %v3232, 0.0
      %v3359 = vmax.f32 %v3233, 0.0
      %v3360 = vmax.f32 %v3234, 0.0
      %v3361 = vmax.f32 %v3235, 0.0
      %v3362 = vmax.f32 %v3236, 0.0
      %v3363 = vmax.f32 %v3237, 0.0
      %v3364 = vmax.f32 %v3238, 0.0
      %v3365 = vmax.f32 %v3239, 0.0
      %v3366 = vmax.f32 %v3240, 0.0
      %v3367 = vmax.f32 %v3241, 0.0
      %v3368 = vmax.f32 %v3242, 0.0
      %v3369 = vmax.f32 %v3243, 0.0
      %v3370 = vmax.f32 %v3244, 0.0
      %v3371 = vmax.f32 %v3245, 0.0
      %v3372 = vmax.f32 %v3246, 0.0
      %v3373 = vmax.f32 %v3247, 0.0
      %v3374 = vmax.f32 %v3248, 0.0
      %v3375 = vmax.f32 %v3249, 0.0
      %v3376 = vmax.f32 %v3250, 0.0
      %v3377 = vmax.f32 %v3251, 0.0
      %v3378 = vmax.f32 %v3252, 0.0
      %v3379 = vmax.f32 %v3253, 0.0
      %v3380 = vmax.f32 %v3254, 0.0
      %v3381 = vmax.f32 %v3255, 0.0
      %v3382 = vmax.f32 %v3256, 0.0
      %v3383 = vmax.f32 %v3257, 0.0
      %v3384 = vmax.f32 %v3258, 0.0
      %v3385 = vmax.f32 %v3259, 0.0
      %v3386 = vmax.f32 %v3260, 0.0
      %v3387 = vmax.f32 %v3261, 0.0
      %v3388 = vmax.f32 %v3262, 0.0
      %v3389 = vmax.f32 %v3263, 0.0
      %v3390 = vmax.f32 %v3264, 0.0
      %v3391 = vmax.f32 %v3265, 0.0
      %v3392 = vmax.f32 %v3266, 0.0
      %v3393 = vmax.f32 %v3267, 0.0
      %v3394 = vmax.f32 %v3268, 0.0
      %v3395 = vmax.f32 %v3269, 0.0
      %v3396 = vmax.f32 %v3270, 0.0
      %v3397 = vmax.f32 %v3271, 0.0
      %v3398 = vmax.f32 %v3272, 0.0
      %v3399 = vmax.f32 %v3273, 0.0
      %v3400 = vmax.f32 %v3274, 0.0
      %v3401 = vmax.f32 %v3275, 0.0
      %v3402 = vmax.f32 %v3276, 0.0
      %v3403 = vmax.f32 %v3277, 0.0
      %v3404 = vmax.f32 %v3278, 0.0
      %v3405 = vmax.f32 %v3279, 0.0
      %v3406 = vmax.f32 %v3280, 0.0
      %v3407 = vmax.f32 %v3281, 0.0
      %v3408 = vmax.f32 %v3282, 0.0
      %v3409 = vmax.f32 %v3283, 0.0
      %v3410 = vmax.f32 %v3284, 0.0
      %v3411 = vmax.f32 %v3285, 0.0
      %v3412 = vmax.f32 %v3286, 0.0
      %v3413 = vmax.f32 %v3287, 0.0
      %v3414 = vmax.f32 %v3288, 0.0
      %v3415 = vmax.f32 %v3289, 0.0
      %v3416 = vmax.f32 %v3290, 0.0
      %v3417 = vmax.f32 %v3291, 0.0
      %v3418 = vmax.f32 %v3292, 0.0
      %v3419 = vmax.f32 %v3293, 0.0
      %v3420 = vmax.f32 %v3294, 0.0
      %v3421 = vmax.f32 %v3295, 0.0
      %v3422 = vmax.f32 %v3296, 0.0
      %v3423 = vmax.f32 %v3297, 0.0
      %v3424 = vmax.f32 %v3298, 0.0
      %v3425 = vmax.f32 %v3299, 0.0
      %v3426 = vmax.f32 %v3300, 0.0
      %v3427 = vmax.f32 %v3301, 0.0
      %v3428 = vmax.f32 %v3302, 0.0
      %v3429 = vmax.f32 %v3303, 0.0
      %v3430 = vmax.f32 %v3304, 0.0
      %v3431 = vmax.f32 %v3305, 0.0
      %v3432 = vmax.f32 %v3306, 0.0
      %v3433 = vmax.f32 %v3307, 0.0
      %v3434 = vmax.f32 %v3308, 0.0
      %v3435 = vmax.f32 %v3309, 0.0
      %v3436 = vmax.f32 %v3310, 0.0
      %v3437 = vmax.f32 %v3311, 0.0
      %v3438 = vmax.f32 %v3312, 0.0
      %v3439 = vmax.f32 %v3313, 0.0
      %v3440 = vmax.f32 %v3314, 0.0
      %v3441 = vmax.f32 %v3315, 0.0
      %v3442 = vmax.f32 %v3316, 0.0
      %v3443 = vmax.f32 %v3317, 0.0
      %v3444 = vmax.f32 %v3318, 0.0
      %v3445 = vmax.f32 %v3319, 0.0
      %v3446 = vmax.f32 %v3320, 0.0
      %v3447 = vmax.f32 %v3321, 0.0
      %v3448 = vmax.f32 %v3322, 0.0
      %v3449 = vmax.f32 %v3323, 0.0
      %v3450 = vmax.f32 %v3324, 0.0
      %3451 = vst [vmem:[%s172] sm:$0xff] %v3325
      %3452 = vst.msk [vmem:[%s172 + $0x8] sm:$0xff] %vm300, %v3326
      %3453 = vst [vmem:[%s172 + $0x10] sm:$0xff] %v3327
      %3454 = vst.msk [vmem:[%s172 + $0x18] sm:$0xff] %vm300, %v3328
      %3455 = vst [vmem:[%s172 + $0x20] sm:$0xff] %v3329
      %3456 = vst.msk [vmem:[%s172 + $0x28] sm:$0xff] %vm300, %v3330
      %3457 = vst [vmem:[%s172 + $0x30] sm:$0xff] %v3331
      %3458 = vst.msk [vmem:[%s172 + $0x38] sm:$0xff] %vm300, %v3332
      %3459 = vst [vmem:[%s172 + $0x40] sm:$0xff] %v3333
      %3460 = vst.msk [vmem:[%s172 + $0x48] sm:$0xff] %vm300, %v3334
      %3461 = vst [vmem:[%s172 + $0x50] sm:$0xff] %v3335
      %3462 = vst.msk [vmem:[%s172 + $0x58] sm:$0xff] %vm300, %v3336
      %3463 = vst [vmem:[%s172 + $0x60] sm:$0xff] %v3337
      %3464 = vst.msk [vmem:[%s172 + $0x68] sm:$0xff] %vm300, %v3338
      %3465 = vst [vmem:[%s172 + $0x70] sm:$0xff] %v3339
      %3466 = vst.msk [vmem:[%s172 + $0x78] sm:$0xff] %vm300, %v3340
      %3467 = vst [vmem:[%s172 + $0x80] sm:$0xff] %v3341
      %3468 = vst.msk [vmem:[%s172 + $0x88] sm:$0xff] %vm300, %v3342
      %3469 = vst [vmem:[%s172 + $0x90] sm:$0xff] %v3343
      %3470 = vst.msk [vmem:[%s172 + $0x98] sm:$0xff] %vm300, %v3344
      %3471 = vst [vmem:[%s172 + $0xa0] sm:$0xff] %v3345
      %3472 = vst.msk [vmem:[%s172 + $0xa8] sm:$0xff] %vm300, %v3346
      %3473 = vst [vmem:[%s172 + $0xb0] sm:$0xff] %v3347
      %3474 = vst.msk [vmem:[%s172 + $0xb8] sm:$0xff] %vm300, %v3348
      %3475 = vst [vmem:[%s172 + $0xc0] sm:$0xff] %v3349
      %3476 = vst.msk [vmem:[%s172 + $0xc8] sm:$0xff] %vm300, %v3350
      %3477 = vst [vmem:[%s172 + $0xd0] sm:$0xff] %v3351
      %3478 = vst.msk [vmem:[%s172 + $0xd8] sm:$0xff] %vm300, %v3352
      %3479 = vst [vmem:[%s172 + $0xe0] sm:$0xff] %v3353
      %3480 = vst.msk [vmem:[%s172 + $0xe8] sm:$0xff] %vm300, %v3354
      %3481 = vst [vmem:[%s172 + $0xf0] sm:$0xff] %v3355
      %3482 = vst.msk [vmem:[%s172 + $0xf8] sm:$0xff] %vm300, %v3356
      %3483 = vst [vmem:[%s172 + $0x100] sm:$0xff] %v3357
      %3484 = vst.msk [vmem:[%s172 + $0x108] sm:$0xff] %vm300, %v3358
      %3485 = vst [vmem:[%s172 + $0x110] sm:$0xff] %v3359
      %3486 = vst.msk [vmem:[%s172 + $0x118] sm:$0xff] %vm300, %v3360
      %3487 = vst [vmem:[%s172 + $0x120] sm:$0xff] %v3361
      %3488 = vst.msk [vmem:[%s172 + $0x128] sm:$0xff] %vm300, %v3362
      %3489 = vst [vmem:[%s172 + $0x130] sm:$0xff] %v3363
      %3490 = vst.msk [vmem:[%s172 + $0x138] sm:$0xff] %vm300, %v3364
      %3491 = vst [vmem:[%s172 + $0x140] sm:$0xff] %v3365
      %3492 = vst.msk [vmem:[%s172 + $0x148] sm:$0xff] %vm300, %v3366
      %3493 = vst [vmem:[%s172 + $0x150] sm:$0xff] %v3367
      %3494 = vst.msk [vmem:[%s172 + $0x158] sm:$0xff] %vm300, %v3368
      %3495 = vst [vmem:[%s172 + $0x160] sm:$0xff] %v3369
      %3496 = vst.msk [vmem:[%s172 + $0x168] sm:$0xff] %vm300, %v3370
      %3497 = vst [vmem:[%s172 + $0x170] sm:$0xff] %v3371
      %3498 = vst.msk [vmem:[%s172 + $0x178] sm:$0xff] %vm300, %v3372
      %3499 = vst [vmem:[%s172 + $0x180] sm:$0xff] %v3373
      %3500 = vst.msk [vmem:[%s172 + $0x188] sm:$0xff] %vm300, %v3374
      %3501 = vst [vmem:[%s172 + $0x190] sm:$0xff] %v3375
      %3502 = vst.msk [vmem:[%s172 + $0x198] sm:$0xff] %vm300, %v3376
      %3503 = vst [vmem:[%s172 + $0x1a0] sm:$0xff] %v3377
      %3504 = vst.msk [vmem:[%s172 + $0x1a8] sm:$0xff] %vm300, %v3378
      %3505 = vst [vmem:[%s172 + $0x1b0] sm:$0xff] %v3379
      %3506 = vst.msk [vmem:[%s172 + $0x1b8] sm:$0xff] %vm300, %v3380
      %3507 = vst [vmem:[%s172 + $0x1c0] sm:$0xff] %v3381
      %3508 = vst.msk [vmem:[%s172 + $0x1c8] sm:$0xff] %vm300, %v3382
      %3509 = vst [vmem:[%s172 + $0x1d0] sm:$0xff] %v3383
      %3510 = vst.msk [vmem:[%s172 + $0x1d8] sm:$0xff] %vm300, %v3384
      %3511 = vst [vmem:[%s172 + $0x1e0] sm:$0xff] %v3385
      %3512 = vst.msk [vmem:[%s172 + $0x1e8] sm:$0xff] %vm300, %v3386
      %3513 = vst [vmem:[%s172 + $0x1f0] sm:$0xff] %v3387
      %3514 = vst.msk [vmem:[%s172 + $0x1f8] sm:$0xff] %vm300, %v3388
      %3515 = vst [vmem:[%s172 + $0x200] sm:$0xff] %v3389
      %3516 = vst.msk [vmem:[%s172 + $0x208] sm:$0xff] %vm300, %v3390
      %3517 = vst [vmem:[%s172 + $0x210] sm:$0xff] %v3391
      %3518 = vst.msk [vmem:[%s172 + $0x218] sm:$0xff] %vm300, %v3392
      %3519 = vst [vmem:[%s172 + $0x220] sm:$0xff] %v3393
      %3520 = vst.msk [vmem:[%s172 + $0x228] sm:$0xff] %vm300, %v3394
      %3521 = vst [vmem:[%s172 + $0x230] sm:$0xff] %v3395
      %3522 = vst.msk [vmem:[%s172 + $0x238] sm:$0xff] %vm300, %v3396
      %3523 = vst [vmem:[%s172 + $0x240] sm:$0xff] %v3397
      %3524 = vst.msk [vmem:[%s172 + $0x248] sm:$0xff] %vm300, %v3398
      %3525 = vst [vmem:[%s172 + $0x250] sm:$0xff] %v3399
      %3526 = vst.msk [vmem:[%s172 + $0x258] sm:$0xff] %vm300, %v3400
      %3527 = vst [vmem:[%s172 + $0x260] sm:$0xff] %v3401
      %3528 = vst.msk [vmem:[%s172 + $0x268] sm:$0xff] %vm300, %v3402
      %3529 = vst [vmem:[%s172 + $0x270] sm:$0xff] %v3403
      %3530 = vst.msk [vmem:[%s172 + $0x278] sm:$0xff] %vm300, %v3404
      %3531 = vst [vmem:[%s172 + $0x280] sm:$0xff] %v3405
      %3532 = vst.msk [vmem:[%s172 + $0x288] sm:$0xff] %vm300, %v3406
      %3533 = vst [vmem:[%s172 + $0x290] sm:$0xff] %v3407
      %3534 = vst.msk [vmem:[%s172 + $0x298] sm:$0xff] %vm300, %v3408
      %3535 = vst [vmem:[%s172 + $0x2a0] sm:$0xff] %v3409
      %3536 = vst.msk [vmem:[%s172 + $0x2a8] sm:$0xff] %vm300, %v3410
      %3537 = vst [vmem:[%s172 + $0x2b0] sm:$0xff] %v3411
      %3538 = vst.msk [vmem:[%s172 + $0x2b8] sm:$0xff] %vm300, %v3412
      %3539 = vst [vmem:[%s172 + $0x2c0] sm:$0xff] %v3413
      %3540 = vst.msk [vmem:[%s172 + $0x2c8] sm:$0xff] %vm300, %v3414
      %3541 = vst [vmem:[%s172 + $0x2d0] sm:$0xff] %v3415
      %3542 = vst.msk [vmem:[%s172 + $0x2d8] sm:$0xff] %vm300, %v3416
      %3543 = vst [vmem:[%s172 + $0x2e0] sm:$0xff] %v3417
      %3544 = vst.msk [vmem:[%s172 + $0x2e8] sm:$0xff] %vm300, %v3418
      %3545 = vst [vmem:[%s172 + $0x2f0] sm:$0xff] %v3419
      %3546 = vst.msk [vmem:[%s172 + $0x2f8] sm:$0xff] %vm300, %v3420
      %3547 = vst [vmem:[%s172 + $0x300] sm:$0xff] %v3421
      %3548 = vst.msk [vmem:[%s172 + $0x308] sm:$0xff] %vm300, %v3422
      %3549 = vst [vmem:[%s172 + $0x310] sm:$0xff] %v3423
      %3550 = vst.msk [vmem:[%s172 + $0x318] sm:$0xff] %vm300, %v3424
      %3551 = vst [vmem:[%s172 + $0x320] sm:$0xff] %v3425
      %3552 = vst.msk [vmem:[%s172 + $0x328] sm:$0xff] %vm300, %v3426
      %3553 = vst [vmem:[%s172 + $0x330] sm:$0xff] %v3427
      %3554 = vst.msk [vmem:[%s172 + $0x338] sm:$0xff] %vm300, %v3428
      %3555 = vst [vmem:[%s172 + $0x340] sm:$0xff] %v3429
      %3556 = vst.msk [vmem:[%s172 + $0x348] sm:$0xff] %vm300, %v3430
      %3557 = vst [vmem:[%s172 + $0x350] sm:$0xff] %v3431
      %3558 = vst.msk [vmem:[%s172 + $0x358] sm:$0xff] %vm300, %v3432
      %3559 = vst [vmem:[%s172 + $0x360] sm:$0xff] %v3433
      %3560 = vst.msk [vmem:[%s172 + $0x368] sm:$0xff] %vm300, %v3434
      %3561 = vst [vmem:[%s172 + $0x370] sm:$0xff] %v3435
      %3562 = vst.msk [vmem:[%s172 + $0x378] sm:$0xff] %vm300, %v3436
      %3563 = vst [vmem:[%s172 + $0x380] sm:$0xff] %v3437
      %3564 = vst.msk [vmem:[%s172 + $0x388] sm:$0xff] %vm300, %v3438
      %3565 = vst [vmem:[%s172 + $0x390] sm:$0xff] %v3439
      %3566 = vst.msk [vmem:[%s172 + $0x398] sm:$0xff] %vm300, %v3440
      %3567 = vst [vmem:[%s172 + $0x3a0] sm:$0xff] %v3441
      %3568 = vst.msk [vmem:[%s172 + $0x3a8] sm:$0xff] %vm300, %v3442
      %3569 = vst [vmem:[%s172 + $0x3b0] sm:$0xff] %v3443
      %3570 = vst.msk [vmem:[%s172 + $0x3b8] sm:$0xff] %vm300, %v3444
      %3571 = vst [vmem:[%s172 + $0x3c0] sm:$0xff] %v3445
      %3572 = vst.msk [vmem:[%s172 + $0x3c8] sm:$0xff] %vm300, %v3446
      %3573 = vst [vmem:[%s172 + $0x3d0] sm:$0xff] %v3447
      %3574 = vst.msk [vmem:[%s172 + $0x3d8] sm:$0xff] %vm300, %v3448
      %3575 = vst [vmem:[%s172 + $0x3e0] sm:$0xff] %v3449
      %3576 = vst.msk [vmem:[%s172 + $0x3e8] sm:$0xff] %vm300, %v3450
      %s3577 = smul.u32 63, %s13
      %p3578 = scmp.lt.s32.totalorder %s3577, 125
      %s3579 = scalar_select %p3578, %s3577, 125
      %s3580 = smul.addr %s3579, 2
      %s3581 = smul.addr %s3580, 8
      %s3582 = scalar_lea.vmem %s2, %s3581
      // Predicated region
      $region29: #{tpu_custom_call.1} parent=27 // pred_check
        %p3583 = pneg %p83
      $region30: #{tpu_custom_call.1} parent=27 // pred_check_branch
        %3585 = sbr.rel (%p3583) target = $region32
      $region31: #{tpu_custom_call.1} parent=27 // pred_region
        %s3586 = smul.u32 63, %s13
      $region32: #{tpu_custom_call.1} parent=27 // pred_fallthru
        _
    $region28: #{tpu_custom_call.1} parent=5 // pred_fallthru
      _
    %p3587 = scmp.le.s32.totalorder 2, %s8
    // Predicated region
    $region33: #{tpu_custom_call.1} parent=5 // pred_check
      %p3588 = pneg %p3587
    $region34: #{tpu_custom_call.1} parent=5 // pred_check_branch
      %3590 = sbr.rel (%p3588) target = $region36
    $region35: #{tpu_custom_call.1} parent=5 // pred_region
      %s3591 = ssub.s32 %s8, 2
      // Predicated region
      $region37: #{tpu_custom_call.1} parent=35 // pred_check
        %p3592 = pneg %p89
      $region38: #{tpu_custom_call.1} parent=35 // pred_check_branch
        %3594 = sbr.rel (%p3592) target = $region40
      $region39: #{tpu_custom_call.1} parent=35 // pred_region
        %s3595 = smul.u32 63, %s14
        %p3596 = scmp.lt.s32.totalorder %s3595, 125
        %s3597 = scalar_select %p3596, %s3595, 125
        %s3598 = smul.addr %s3597, 2
        %s3599 = smul.addr %s3598, 8
        %s3600 = scalar_lea.vmem %s2, %s3599
      $region40: #{tpu_custom_call.1} parent=35 // pred_fallthru
        _
    $region36: #{tpu_custom_call.1} parent=5 // pred_fallthru
      _
  $region6: #{tpu_custom_call.1} parent=0 // loop_footer
    %s12 = sadd.s32 1, %s8
  $region7: #{tpu_custom_call.1} parent=0 // loop_footer_branch
    %7 = sbr.rel target = $region3
  $region8: #{tpu_custom_call.1} parent=0 // loop_exit
    _

</llo_original>
